<compile_context>
chip_gen: v7x
topology: tpu7x:2x2x1
jax: 0.10.0
libtpu: 0.0.40
codegen_flags: <defaults>
</compile_context>

<pallas_src>
import math

import jax
import jax.numpy as jnp
from jax import lax
from jax.experimental import pallas as pl
from jax.experimental.pallas import tpu as pltpu

# ----------------------------- small config ---------------------------------
BATCH = 2
SEQ = 8
HIDDEN = 32
NUM_HEADS = 4
HEAD_DIM = HIDDEN // NUM_HEADS
INTERMEDIATE = 64
BANDS = 4
TABLE_SIZE = 16
NUM_HASHES = 2
NHB = NUM_HASHES * BANDS              # random vectors per head
LN_EPS = 1e-12

BS = BATCH * SEQ                      # batch folded into the sublane/M dim
N_BH = BATCH * NUM_HEADS
R_COLS = N_BH * NHB                   # 64  (all batches*heads sign projections)
C_COLS = N_BH * NUM_HASHES            # 16  (all batches*heads hash values)

# w1 slab column offsets: [wq|wk|wv | wo | wi | R]
_QKV0, _QKV1 = 0, 3 * HIDDEN
_WO0, _WO1 = _QKV1, _QKV1 + HIDDEN
_WI0, _WI1 = _WO1, _WO1 + INTERMEDIATE
_R0, _R1 = _WI1, _WI1 + R_COLS        # -> w1 is (HIDDEN, 256)
# w2 slab column offsets: [wo2 | C]
_WO2_0, _WO2_1 = 0, HIDDEN
_C0, _C1 = _WO2_1, _WO2_1 + C_COLS    # -> w2 is (INTERMEDIATE, 48)

_CONTRACT_LAST = (((1,), (1,)), ((), ()))   # dot_general: contract last axes
_APPROX_SOFTMAX_RECIP = True                # EUP vrcp; flip for exact division


def _mod_table(x_i32):
    """Exact `x mod TABLE_SIZE` for small non-negative int32 without integer div."""
    if TABLE_SIZE & (TABLE_SIZE - 1) == 0:          # power of two -> bitwise AND
        return x_i32 & (TABLE_SIZE - 1)
    xf = x_i32.astype(jnp.float32)                  # exact for these small ints
    return (xf - jnp.floor(xf * (1.0 / TABLE_SIZE)) * TABLE_SIZE).astype(jnp.int32)


def _layernorm(x, g, b):
    mu = jnp.mean(x, axis=-1, keepdims=True)
    xc = x - mu
    var = jnp.mean(xc * xc, axis=-1, keepdims=True)
    return xc * lax.rsqrt(var + LN_EPS) * g + b


def _softmax_rows(scores):
    m = jnp.max(scores, axis=-1, keepdims=True)
    e = jnp.exp(scores - m)
    d = jnp.sum(e, axis=-1, keepdims=True)
    if _APPROX_SOFTMAX_RECIP:
        return e * pl.reciprocal(d, approx=True)
    return e / d


# ----------------------------- fused kernel ---------------------------------
def _fused_layer_kernel(x_ref, w1_ref, w2_ref, bias_ref, o_ref, ctx_ref):
    x = x_ref[...]                                                # (BS, H) f32

    # ---- bias / LayerNorm parameter slab (one (3,128) input) ----------------
    bqkv  = bias_ref[0:1, 0:3 * HIDDEN]
    bo    = bias_ref[0:1, 3 * HIDDEN:4 * HIDDEN]
    ln1_g = bias_ref[1:2, 0:HIDDEN]
    ln1_b = bias_ref[1:2, HIDDEN:2 * HIDDEN]
    bi    = bias_ref[1:2, 2 * HIDDEN:2 * HIDDEN + INTERMEDIATE]
    bo2   = bias_ref[2:3, 0:HIDDEN]
    ln2_g = bias_ref[2:3, HIDDEN:2 * HIDDEN]
    ln2_b = bias_ref[2:3, 2 * HIDDEN:3 * HIDDEN]

    # ---- fused Q|K|V projection: one MXU pass, M = B*S ----------------------
    qkv = jnp.dot(x, w1_ref[:, _QKV0:_QKV1],
                  preferred_element_type=jnp.float32) + bqkv      # (BS, 3H)
    q_slab = qkv[:, 0:HIDDEN]
    k_slab = qkv[:, HIDDEN:2 * HIDDEN]

    # ---- LSH: all (batch, head) sign projections in two matmuls -------------
    r_all = w1_ref[:, _R0:_R1]                                    # (H, 64) block-diag
    bits_q = (jnp.dot(q_slab, r_all, preferred_element_type=jnp.float32)
              > 0.0).astype(jnp.float32)                          # (BS, 64)
    bits_k = (jnp.dot(k_slab, r_all, preferred_element_type=jnp.float32)
              > 0.0).astype(jnp.float32)

    # hash values via one dot with block-diagonal coefficient matrix; values
    # are exact small integers (<= BANDS * (TABLE_SIZE-1)) so f32 MXU is exact.
    c_mat = w2_ref[:, _C0:_C1]                                    # (64, 16)
    hq_pre = jnp.dot(bits_q, c_mat, preferred_element_type=jnp.float32)   # (BS, 16)
    hk_pre = jnp.dot(bits_k, c_mat, preferred_element_type=jnp.float32)
    hq   = _mod_table(jnp.round(hq_pre).astype(jnp.int32))        # (BS, 16)
    hk_t = _mod_table(jnp.round(hk_pre.T).astype(jnp.int32))      # (16, BS) one XLU transpose

    row = lax.broadcasted_iota(jnp.int32, (SEQ, SEQ), 0)
    col = lax.broadcasted_iota(jnp.int32, (SEQ, SEQ), 1)
    upper = row <= col
    inv_sqrt_d = 1.0 / math.sqrt(HEAD_DIM)

    # TODO(synk): at real sizes move (batch, head) onto a grid axis / fori_loop
    # to bound live ranges instead of this static unroll.
    for b in range(BATCH):                                        # static unroll
        rs = slice(b * SEQ, (b + 1) * SEQ)
        for h in range(NUM_HEADS):                                # static unroll
            cs = slice(h * HEAD_DIM, (h + 1) * HEAD_DIM)
            vs = slice(2 * HIDDEN + h * HEAD_DIM, 2 * HIDDEN + (h + 1) * HEAD_DIM)
            q = q_slab[rs, cs]                                    # (S, Dh)
            k = k_slab[rs, cs]
            v = qkv[rs, vs]

            # coll[i, j] = exists hash hf : hash_hf(q_i) == hash_hf(k_j)
            coll = None
            base = (b * NUM_HEADS + h) * NUM_HASHES
            for hf in range(NUM_HASHES):                          # static unroll
                c_ix = base + hf
                eq = hq[rs, c_ix:c_ix + 1] == hk_t[c_ix:c_ix + 1, rs]   # (S, S)
                coll = eq if coll is None else (coll | eq)

            # raw scores qk[i,j] = q_i.k_j ; masked upper triangle mirrored by
            # one small transpose (scores[i,j] = scores[j,i] for i > j).
            qk = lax.dot_general(q, k, _CONTRACT_LAST,
                                 preferred_element_type=jnp.float32)     # (S, S)
            a = jnp.where(coll, qk, 0.0)           # non-collided stay 0 (not -inf)
            scores = jnp.where(upper, a, a.T) * inv_sqrt_d

            probs = _softmax_rows(scores)          # attn dropout: identity (eval)
            # write head context straight into the (BS, H) scratch slab
            ctx_ref[rs, cs] = jnp.dot(probs, v, preferred_element_type=jnp.float32)

    ctx = ctx_ref[...]                                            # (BS, H)

    # ---- BertSelfOutput: dense + dropout(identity) + LayerNorm(residual x) --
    attn = jnp.dot(ctx, w1_ref[:, _WO0:_WO1],
                   preferred_element_type=jnp.float32) + bo
    attn = _layernorm(attn + x, ln1_g, ln1_b)

    # ---- BertIntermediate (exact erf GELU) + BertOutput ---------------------
    inter = jnp.dot(attn, w1_ref[:, _WI0:_WI1],
                    preferred_element_type=jnp.float32) + bi
    inter = 0.5 * inter * (1.0 + lax.erf(inter * (1.0 / math.sqrt(2.0))))
    ffn = jnp.dot(inter, w2_ref[:, _WO2_0:_WO2_1],
                  preferred_element_type=jnp.float32) + bo2
    out = _layernorm(ffn + attn, ln2_g, ln2_b)

    o_ref[...] = out.astype(o_ref.dtype)


# ----------------------------- layer wrapper ---------------------------------
def bert_lsh_layer(hidden_states, params, rvec, coef):
    """Fused forward pass of BertLSHLayer (encoder, no mask, eval mode).

    hidden_states : (B, S, HIDDEN) f32
    rvec          : (B, NUM_HEADS, NUM_HASHES*BANDS, HEAD_DIM) f32 LSH vectors
    coef          : (B, NUM_HEADS, NUM_HASHES, BANDS) int32 LSH coefficients
    """
    B, S, H = hidden_states.shape
    assert (B, S, H) == (BATCH, SEQ, HIDDEN)

    # block-diagonal LSH projection matrix R (H, B*NH*NHB) and block-diagonal
    # hash-coefficient matrix C (B*NH*NHB, B*NH*NUM_HASHES)
    R = jnp.zeros((HIDDEN, R_COLS), jnp.float32)
    C = jnp.zeros((R_COLS, C_COLS), jnp.float32)
    coef_f = coef.astype(jnp.float32)
    for b in range(BATCH):
        for h in range(NUM_HEADS):
            c0 = (b * NUM_HEADS + h) * NHB
            R = R.at[h * HEAD_DIM:(h + 1) * HEAD_DIM, c0:c0 + NHB].set(
                jnp.transpose(rvec[b, h]))
            for hf in range(NUM_HASHES):
                r0 = c0 + hf * BANDS
                cc = (b * NUM_HEADS + h) * NUM_HASHES + hf
                C = C.at[r0:r0 + BANDS, cc].set(coef_f[b, h, hf])

    # lane-dense weight / bias slabs (4 inputs total instead of 17)
    w1 = jnp.concatenate([params["wq"], params["wk"], params["wv"],
                          params["wo"], params["wi"], R], axis=1)        # (32, 256)
    w2 = jnp.concatenate([params["wo2"], C], axis=1)                     # (64, 48)

    bqkv = jnp.concatenate([params["bq"], params["bk"], params["bv"]], axis=1)  # (1, 96)
    pad32 = jnp.zeros((1, HIDDEN), jnp.float32)
    bias_slab = jnp.concatenate([
        jnp.concatenate([bqkv, params["bo"]], axis=1),
        jnp.concatenate([params["ln1_g"], params["ln1_b"], params["bi"]], axis=1),
        jnp.concatenate([params["bo2"], params["ln2_g"], params["ln2_b"], pad32], axis=1),
    ], axis=0)                                                           # (3, 128)

    x2d = hidden_states.reshape(B * S, H)        # batch folded into sublane/M dim

    out = pl.pallas_call(
        _fused_layer_kernel,
        out_shape=jax.ShapeDtypeStruct((B * S, H), hidden_states.dtype),
        in_specs=[pl.BlockSpec(memory_space=pltpu.MemorySpace.VMEM)] * 4,
        out_specs=pl.BlockSpec(memory_space=pltpu.MemorySpace.VMEM),
        scratch_shapes=[pltpu.VMEM((B * S, H), jnp.float32)],   # per-head ctx slab
    )(x2d, w1, w2, bias_slab)

    # TODO(synk): relative_key / relative_key_query position embeddings,
    # attention_mask / head_mask / cross-attention / kv-cache paths not implemented.
    return out.reshape(B, S, H)


def init_params(key):
    ks = jax.random.split(key, 8)

    def w(k, shape):
        return (0.02 * jax.random.normal(k, shape)).astype(jnp.float32)

    return dict(
        wq=w(ks[0], (HIDDEN, HIDDEN)), bq=jnp.zeros((1, HIDDEN), jnp.float32),
        wk=w(ks[1], (HIDDEN, HIDDEN)), bk=jnp.zeros((1, HIDDEN), jnp.float32),
        wv=w(ks[2], (HIDDEN, HIDDEN)), bv=jnp.zeros((1, HIDDEN), jnp.float32),
        wo=w(ks[3], (HIDDEN, HIDDEN)), bo=jnp.zeros((1, HIDDEN), jnp.float32),
        ln1_g=jnp.ones((1, HIDDEN), jnp.float32),
        ln1_b=jnp.zeros((1, HIDDEN), jnp.float32),
        wi=w(ks[4], (HIDDEN, INTERMEDIATE)), bi=jnp.zeros((1, INTERMEDIATE), jnp.float32),
        wo2=w(ks[5], (INTERMEDIATE, HIDDEN)), bo2=jnp.zeros((1, HIDDEN), jnp.float32),
        ln2_g=jnp.ones((1, HIDDEN), jnp.float32),
        ln2_b=jnp.zeros((1, HIDDEN), jnp.float32),
    )


if __name__ == "__main__":
    key = jax.random.PRNGKey(0)
    k_x, k_p, k_r, k_c = jax.random.split(key, 4)

    hidden_states = jax.random.normal(k_x, (BATCH, SEQ, HIDDEN), jnp.float32)
    params = init_params(k_p)

    # per-(batch, head) LSH randomness (fresh draws per head, like the module)
    rvec = jax.random.normal(
        k_r, (BATCH, NUM_HEADS, NHB, HEAD_DIM), jnp.float32)
    coef = jax.random.randint(
        k_c, (BATCH, NUM_HEADS, NUM_HASHES, BANDS), 0, TABLE_SIZE, dtype=jnp.int32)

    fwd = jax.jit(bert_lsh_layer)
    out = fwd(hidden_states, params, rvec, coef)
    out = jax.block_until_ready(out)
    assert out.shape == (BATCH, SEQ, HIDDEN)
    print("KERNEL_OK")
</pallas_src>

<mosaic_0001>
module attributes {stable_mosaic.version = 11 : i64} {
  func.func @_fused_layer_kernel(%arg0: memref<16x32xf32, #tpu.memory_space<vmem>>, %arg1: memref<32x256xf32, #tpu.memory_space<vmem>>, %arg2: memref<64x48xf32, #tpu.memory_space<vmem>>, %arg3: memref<3x128xf32, #tpu.memory_space<vmem>>, %arg4: memref<16x32xf32, #tpu.memory_space<vmem>>, %arg5: memref<16x32xf32, #tpu.memory_space<vmem>>) attributes {dimension_semantics = [], scalar_prefetch = 0 : i64, scratch_operands = 1 : i64, tpu.core_type = #tpu.core_type<tc>} {
    %c0 = arith.constant 0 : index
    %c0_0 = arith.constant 0 : index
    %0 = vector.load %arg0[%c0, %c0_0] : memref<16x32xf32, #tpu.memory_space<vmem>>, vector<16x32xf32>
    %c0_1 = arith.constant 0 : index
    %c0_2 = arith.constant 0 : index
    %1 = vector.load %arg3[%c0_1, %c0_2] : memref<3x128xf32, #tpu.memory_space<vmem>>, vector<1x96xf32>
    %c0_3 = arith.constant 0 : index
    %c96 = arith.constant 96 : index
    %2 = vector.load %arg3[%c0_3, %c96] : memref<3x128xf32, #tpu.memory_space<vmem>>, vector<1x32xf32>
    %c1 = arith.constant 1 : index
    %c0_4 = arith.constant 0 : index
    %3 = vector.load %arg3[%c1, %c0_4] : memref<3x128xf32, #tpu.memory_space<vmem>>, vector<1x32xf32>
    %c1_5 = arith.constant 1 : index
    %c32 = arith.constant 32 : index
    %4 = vector.load %arg3[%c1_5, %c32] : memref<3x128xf32, #tpu.memory_space<vmem>>, vector<1x32xf32>
    %c1_6 = arith.constant 1 : index
    %c64 = arith.constant 64 : index
    %5 = vector.load %arg3[%c1_6, %c64] : memref<3x128xf32, #tpu.memory_space<vmem>>, vector<1x64xf32>
    %c2 = arith.constant 2 : index
    %c0_7 = arith.constant 0 : index
    %6 = vector.load %arg3[%c2, %c0_7] : memref<3x128xf32, #tpu.memory_space<vmem>>, vector<1x32xf32>
    %c2_8 = arith.constant 2 : index
    %c32_9 = arith.constant 32 : index
    %7 = vector.load %arg3[%c2_8, %c32_9] : memref<3x128xf32, #tpu.memory_space<vmem>>, vector<1x32xf32>
    %c2_10 = arith.constant 2 : index
    %c64_11 = arith.constant 64 : index
    %8 = vector.load %arg3[%c2_10, %c64_11] : memref<3x128xf32, #tpu.memory_space<vmem>>, vector<1x32xf32>
    %c0_12 = arith.constant 0 : index
    %c0_13 = arith.constant 0 : index
    %9 = vector.load %arg1[%c0_12, %c0_13] : memref<32x256xf32, #tpu.memory_space<vmem>>, vector<32x96xf32>
    %cst = arith.constant dense<0.000000e+00> : vector<16x96xf32>
    %10 = tpu.matmul %0, %9, %cst {dimension_numbers = #tpu.dot_dimension_numbers<[1], [0], [0], [1], [0, 0, 1, 1], [], []>} : vector<16x32xf32>, vector<32x96xf32>, vector<16x96xf32> -> vector<16x96xf32>
    %11 = vector.broadcast %1 : vector<1x96xf32> to vector<16x96xf32>
    %12 = arith.addf %10, %11 : vector<16x96xf32>
    %13 = vector.extract_strided_slice %12 {offsets = [0, 0], sizes = [16, 32], strides = [1, 1]} : vector<16x96xf32> to vector<16x32xf32>
    %14 = vector.extract_strided_slice %12 {offsets = [0, 32], sizes = [16, 32], strides = [1, 1]} : vector<16x96xf32> to vector<16x32xf32>
    %c0_14 = arith.constant 0 : index
    %c192 = arith.constant 192 : index
    %15 = vector.load %arg1[%c0_14, %c192] : memref<32x256xf32, #tpu.memory_space<vmem>>, vector<32x64xf32>
    %cst_15 = arith.constant dense<0.000000e+00> : vector<16x64xf32>
    %16 = tpu.matmul %13, %15, %cst_15 {dimension_numbers = #tpu.dot_dimension_numbers<[1], [0], [0], [1], [0, 0, 1, 1], [], []>} : vector<16x32xf32>, vector<32x64xf32>, vector<16x64xf32> -> vector<16x64xf32>
    %cst_16 = arith.constant 0.000000e+00 : f32
    %17 = vector.broadcast %cst_16 : f32 to vector<16x64xf32>
    %18 = arith.cmpf ogt, %16, %17 : vector<16x64xf32>
    %19 = arith.extui %18 : vector<16x64xi1> to vector<16x64xi32>
    %20 = arith.sitofp %19 : vector<16x64xi32> to vector<16x64xf32>
    %cst_17 = arith.constant dense<0.000000e+00> : vector<16x64xf32>
    %21 = tpu.matmul %14, %15, %cst_17 {dimension_numbers = #tpu.dot_dimension_numbers<[1], [0], [0], [1], [0, 0, 1, 1], [], []>} : vector<16x32xf32>, vector<32x64xf32>, vector<16x64xf32> -> vector<16x64xf32>
    %cst_18 = arith.constant 0.000000e+00 : f32
    %22 = vector.broadcast %cst_18 : f32 to vector<16x64xf32>
    %23 = arith.cmpf ogt, %21, %22 : vector<16x64xf32>
    %24 = arith.extui %23 : vector<16x64xi1> to vector<16x64xi32>
    %25 = arith.sitofp %24 : vector<16x64xi32> to vector<16x64xf32>
    %c0_19 = arith.constant 0 : index
    %c32_20 = arith.constant 32 : index
    %26 = vector.load %arg2[%c0_19, %c32_20] : memref<64x48xf32, #tpu.memory_space<vmem>>, vector<64x16xf32>
    %cst_21 = arith.constant dense<0.000000e+00> : vector<16x16xf32>
    %27 = tpu.matmul %20, %26, %cst_21 {dimension_numbers = #tpu.dot_dimension_numbers<[1], [0], [0], [1], [0, 0, 1, 1], [], []>} : vector<16x64xf32>, vector<64x16xf32>, vector<16x16xf32> -> vector<16x16xf32>
    %cst_22 = arith.constant dense<0.000000e+00> : vector<16x16xf32>
    %28 = tpu.matmul %25, %26, %cst_22 {dimension_numbers = #tpu.dot_dimension_numbers<[1], [0], [0], [1], [0, 0, 1, 1], [], []>} : vector<16x64xf32>, vector<64x16xf32>, vector<16x16xf32> -> vector<16x16xf32>
    %29 = math.roundeven %27 : vector<16x16xf32>
    %30 = arith.fptosi %29 : vector<16x16xf32> to vector<16x16xi32>
    %c15_i32 = arith.constant 15 : i32
    %31 = vector.broadcast %c15_i32 : i32 to vector<16x16xi32>
    %32 = arith.andi %30, %31 : vector<16x16xi32>
    %33 = tpu.transpose %28, [1, 0] : vector<16x16xf32> -> vector<16x16xf32>
    %34 = math.roundeven %33 : vector<16x16xf32>
    %35 = arith.fptosi %34 : vector<16x16xf32> to vector<16x16xi32>
    %c15_i32_23 = arith.constant 15 : i32
    %36 = vector.broadcast %c15_i32_23 : i32 to vector<16x16xi32>
    %37 = arith.andi %35, %36 : vector<16x16xi32>
    %38 = tpu.iota {dimensions = array<i32: 0>} : vector<8x8xi32>
    %39 = tpu.iota {dimensions = array<i32: 1>} : vector<8x8xi32>
    %40 = arith.cmpi sle, %38, %39 : vector<8x8xi32>
    %41 = vector.extract_strided_slice %13 {offsets = [0, 0], sizes = [8, 8], strides = [1, 1]} : vector<16x32xf32> to vector<8x8xf32>
    %42 = vector.extract_strided_slice %14 {offsets = [0, 0], sizes = [8, 8], strides = [1, 1]} : vector<16x32xf32> to vector<8x8xf32>
    %43 = vector.extract_strided_slice %12 {offsets = [0, 64], sizes = [8, 8], strides = [1, 1]} : vector<16x96xf32> to vector<8x8xf32>
    %44 = vector.extract_strided_slice %32 {offsets = [0, 0], sizes = [8, 1], strides = [1, 1]} : vector<16x16xi32> to vector<8x1xi32>
    %45 = vector.extract_strided_slice %37 {offsets = [0, 0], sizes = [1, 8], strides = [1, 1]} : vector<16x16xi32> to vector<1x8xi32>
    %46 = vector.broadcast %44 : vector<8x1xi32> to vector<8x8xi32>
    %47 = vector.broadcast %45 : vector<1x8xi32> to vector<8x8xi32>
    %48 = arith.cmpi eq, %46, %47 : vector<8x8xi32>
    %49 = vector.extract_strided_slice %32 {offsets = [0, 1], sizes = [8, 1], strides = [1, 1]} : vector<16x16xi32> to vector<8x1xi32>
    %50 = vector.extract_strided_slice %37 {offsets = [1, 0], sizes = [1, 8], strides = [1, 1]} : vector<16x16xi32> to vector<1x8xi32>
    %51 = vector.broadcast %49 : vector<8x1xi32> to vector<8x8xi32>
    %52 = vector.broadcast %50 : vector<1x8xi32> to vector<8x8xi32>
    %53 = arith.cmpi eq, %51, %52 : vector<8x8xi32>
    %54 = arith.ori %48, %53 : vector<8x8xi1>
    %cst_24 = arith.constant dense<0.000000e+00> : vector<8x8xf32>
    %55 = tpu.matmul %41, %42, %cst_24 {dimension_numbers = #tpu.dot_dimension_numbers<[1], [1], [0], [0], [0, 0, 1, 0], [], []>} : vector<8x8xf32>, vector<8x8xf32>, vector<8x8xf32> -> vector<8x8xf32>
    %cst_25 = arith.constant 0.000000e+00 : f32
    %56 = vector.broadcast %cst_25 : f32 to vector<8x8xf32>
    %57 = arith.select %54, %55, %56 : vector<8x8xi1>, vector<8x8xf32>
    %58 = tpu.transpose %57, [1, 0] : vector<8x8xf32> -> vector<8x8xf32>
    %59 = arith.select %40, %57, %58 : vector<8x8xi1>, vector<8x8xf32>
    %cst_26 = arith.constant 0.353553385 : f32
    %60 = vector.broadcast %cst_26 : f32 to vector<8x8xf32>
    %61 = arith.mulf %59, %60 : vector<8x8xf32>
    %cst_27 = arith.constant dense<0xFF800000> : vector<8xf32>
    %62 = vector.multi_reduction <maximumf>, %61, %cst_27 [1] : vector<8x8xf32> to vector<8xf32>
    %63 = vector.shape_cast %62 : vector<8xf32> to vector<8x1xf32>
    %64 = vector.broadcast %63 : vector<8x1xf32> to vector<8x8xf32>
    %65 = arith.subf %61, %64 : vector<8x8xf32>
    %66 = math.exp %65 : vector<8x8xf32>
    %cst_28 = arith.constant dense<0.000000e+00> : vector<8xf32>
    %67 = vector.multi_reduction <add>, %66, %cst_28 [1] : vector<8x8xf32> to vector<8xf32>
    %68 = vector.shape_cast %67 : vector<8xf32> to vector<8x1xf32>
    %69 = tpu.reciprocal %68 {approx = true} : vector<8x1xf32> -> vector<8x1xf32>
    %70 = vector.broadcast %69 : vector<8x1xf32> to vector<8x8xf32>
    %71 = arith.mulf %66, %70 : vector<8x8xf32>
    %cst_29 = arith.constant dense<0.000000e+00> : vector<8x8xf32>
    %72 = tpu.matmul %71, %43, %cst_29 {dimension_numbers = #tpu.dot_dimension_numbers<[1], [0], [0], [1], [0, 0, 1, 1], [], []>} : vector<8x8xf32>, vector<8x8xf32>, vector<8x8xf32> -> vector<8x8xf32>
    %c0_30 = arith.constant 0 : index
    %c0_31 = arith.constant 0 : index
    %73 = vector.load %arg5[%c0_30, %c0_31] : memref<16x32xf32, #tpu.memory_space<vmem>>, vector<8x8xf32>
    tpu.vector_store %arg5[%c0_30, %c0_31], %72 {strides = array<i32>} : memref<16x32xf32, #tpu.memory_space<vmem>>, vector<8x8xf32>,
    %74 = vector.extract_strided_slice %13 {offsets = [0, 8], sizes = [8, 8], strides = [1, 1]} : vector<16x32xf32> to vector<8x8xf32>
    %75 = vector.extract_strided_slice %14 {offsets = [0, 8], sizes = [8, 8], strides = [1, 1]} : vector<16x32xf32> to vector<8x8xf32>
    %76 = vector.extract_strided_slice %12 {offsets = [0, 72], sizes = [8, 8], strides = [1, 1]} : vector<16x96xf32> to vector<8x8xf32>
    %77 = vector.extract_strided_slice %32 {offsets = [0, 2], sizes = [8, 1], strides = [1, 1]} : vector<16x16xi32> to vector<8x1xi32>
    %78 = vector.extract_strided_slice %37 {offsets = [2, 0], sizes = [1, 8], strides = [1, 1]} : vector<16x16xi32> to vector<1x8xi32>
    %79 = vector.broadcast %77 : vector<8x1xi32> to vector<8x8xi32>
    %80 = vector.broadcast %78 : vector<1x8xi32> to vector<8x8xi32>
    %81 = arith.cmpi eq, %79, %80 : vector<8x8xi32>
    %82 = vector.extract_strided_slice %32 {offsets = [0, 3], sizes = [8, 1], strides = [1, 1]} : vector<16x16xi32> to vector<8x1xi32>
    %83 = vector.extract_strided_slice %37 {offsets = [3, 0], sizes = [1, 8], strides = [1, 1]} : vector<16x16xi32> to vector<1x8xi32>
    %84 = vector.broadcast %82 : vector<8x1xi32> to vector<8x8xi32>
    %85 = vector.broadcast %83 : vector<1x8xi32> to vector<8x8xi32>
    %86 = arith.cmpi eq, %84, %85 : vector<8x8xi32>
    %87 = arith.ori %81, %86 : vector<8x8xi1>
    %cst_32 = arith.constant dense<0.000000e+00> : vector<8x8xf32>
    %88 = tpu.matmul %74, %75, %cst_32 {dimension_numbers = #tpu.dot_dimension_numbers<[1], [1], [0], [0], [0, 0, 1, 0], [], []>} : vector<8x8xf32>, vector<8x8xf32>, vector<8x8xf32> -> vector<8x8xf32>
    %cst_33 = arith.constant 0.000000e+00 : f32
    %89 = vector.broadcast %cst_33 : f32 to vector<8x8xf32>
    %90 = arith.select %87, %88, %89 : vector<8x8xi1>, vector<8x8xf32>
    %91 = tpu.transpose %90, [1, 0] : vector<8x8xf32> -> vector<8x8xf32>
    %92 = arith.select %40, %90, %91 : vector<8x8xi1>, vector<8x8xf32>
    %cst_34 = arith.constant 0.353553385 : f32
    %93 = vector.broadcast %cst_34 : f32 to vector<8x8xf32>
    %94 = arith.mulf %92, %93 : vector<8x8xf32>
    %cst_35 = arith.constant dense<0xFF800000> : vector<8xf32>
    %95 = vector.multi_reduction <maximumf>, %94, %cst_35 [1] : vector<8x8xf32> to vector<8xf32>
    %96 = vector.shape_cast %95 : vector<8xf32> to vector<8x1xf32>
    %97 = vector.broadcast %96 : vector<8x1xf32> to vector<8x8xf32>
    %98 = arith.subf %94, %97 : vector<8x8xf32>
    %99 = math.exp %98 : vector<8x8xf32>
    %cst_36 = arith.constant dense<0.000000e+00> : vector<8xf32>
    %100 = vector.multi_reduction <add>, %99, %cst_36 [1] : vector<8x8xf32> to vector<8xf32>
    %101 = vector.shape_cast %100 : vector<8xf32> to vector<8x1xf32>
    %102 = tpu.reciprocal %101 {approx = true} : vector<8x1xf32> -> vector<8x1xf32>
    %103 = vector.broadcast %102 : vector<8x1xf32> to vector<8x8xf32>
    %104 = arith.mulf %99, %103 : vector<8x8xf32>
    %cst_37 = arith.constant dense<0.000000e+00> : vector<8x8xf32>
    %105 = tpu.matmul %104, %76, %cst_37 {dimension_numbers = #tpu.dot_dimension_numbers<[1], [0], [0], [1], [0, 0, 1, 1], [], []>} : vector<8x8xf32>, vector<8x8xf32>, vector<8x8xf32> -> vector<8x8xf32>
    %c0_38 = arith.constant 0 : index
    %c8 = arith.constant 8 : index
    %106 = vector.load %arg5[%c0_38, %c8] : memref<16x32xf32, #tpu.memory_space<vmem>>, vector<8x8xf32>
    tpu.vector_store %arg5[%c0_38, %c8], %105 {strides = array<i32>} : memref<16x32xf32, #tpu.memory_space<vmem>>, vector<8x8xf32>,
    %107 = vector.extract_strided_slice %13 {offsets = [0, 16], sizes = [8, 8], strides = [1, 1]} : vector<16x32xf32> to vector<8x8xf32>
    %108 = vector.extract_strided_slice %14 {offsets = [0, 16], sizes = [8, 8], strides = [1, 1]} : vector<16x32xf32> to vector<8x8xf32>
    %109 = vector.extract_strided_slice %12 {offsets = [0, 80], sizes = [8, 8], strides = [1, 1]} : vector<16x96xf32> to vector<8x8xf32>
    %110 = vector.extract_strided_slice %32 {offsets = [0, 4], sizes = [8, 1], strides = [1, 1]} : vector<16x16xi32> to vector<8x1xi32>
    %111 = vector.extract_strided_slice %37 {offsets = [4, 0], sizes = [1, 8], strides = [1, 1]} : vector<16x16xi32> to vector<1x8xi32>
    %112 = vector.broadcast %110 : vector<8x1xi32> to vector<8x8xi32>
    %113 = vector.broadcast %111 : vector<1x8xi32> to vector<8x8xi32>
    %114 = arith.cmpi eq, %112, %113 : vector<8x8xi32>
    %115 = vector.extract_strided_slice %32 {offsets = [0, 5], sizes = [8, 1], strides = [1, 1]} : vector<16x16xi32> to vector<8x1xi32>
    %116 = vector.extract_strided_slice %37 {offsets = [5, 0], sizes = [1, 8], strides = [1, 1]} : vector<16x16xi32> to vector<1x8xi32>
    %117 = vector.broadcast %115 : vector<8x1xi32> to vector<8x8xi32>
    %118 = vector.broadcast %116 : vector<1x8xi32> to vector<8x8xi32>
    %119 = arith.cmpi eq, %117, %118 : vector<8x8xi32>
    %120 = arith.ori %114, %119 : vector<8x8xi1>
    %cst_39 = arith.constant dense<0.000000e+00> : vector<8x8xf32>
    %121 = tpu.matmul %107, %108, %cst_39 {dimension_numbers = #tpu.dot_dimension_numbers<[1], [1], [0], [0], [0, 0, 1, 0], [], []>} : vector<8x8xf32>, vector<8x8xf32>, vector<8x8xf32> -> vector<8x8xf32>
    %cst_40 = arith.constant 0.000000e+00 : f32
    %122 = vector.broadcast %cst_40 : f32 to vector<8x8xf32>
    %123 = arith.select %120, %121, %122 : vector<8x8xi1>, vector<8x8xf32>
    %124 = tpu.transpose %123, [1, 0] : vector<8x8xf32> -> vector<8x8xf32>
    %125 = arith.select %40, %123, %124 : vector<8x8xi1>, vector<8x8xf32>
    %cst_41 = arith.constant 0.353553385 : f32
    %126 = vector.broadcast %cst_41 : f32 to vector<8x8xf32>
    %127 = arith.mulf %125, %126 : vector<8x8xf32>
    %cst_42 = arith.constant dense<0xFF800000> : vector<8xf32>
    %128 = vector.multi_reduction <maximumf>, %127, %cst_42 [1] : vector<8x8xf32> to vector<8xf32>
    %129 = vector.shape_cast %128 : vector<8xf32> to vector<8x1xf32>
    %130 = vector.broadcast %129 : vector<8x1xf32> to vector<8x8xf32>
    %131 = arith.subf %127, %130 : vector<8x8xf32>
    %132 = math.exp %131 : vector<8x8xf32>
    %cst_43 = arith.constant dense<0.000000e+00> : vector<8xf32>
    %133 = vector.multi_reduction <add>, %132, %cst_43 [1] : vector<8x8xf32> to vector<8xf32>
    %134 = vector.shape_cast %133 : vector<8xf32> to vector<8x1xf32>
    %135 = tpu.reciprocal %134 {approx = true} : vector<8x1xf32> -> vector<8x1xf32>
    %136 = vector.broadcast %135 : vector<8x1xf32> to vector<8x8xf32>
    %137 = arith.mulf %132, %136 : vector<8x8xf32>
    %cst_44 = arith.constant dense<0.000000e+00> : vector<8x8xf32>
    %138 = tpu.matmul %137, %109, %cst_44 {dimension_numbers = #tpu.dot_dimension_numbers<[1], [0], [0], [1], [0, 0, 1, 1], [], []>} : vector<8x8xf32>, vector<8x8xf32>, vector<8x8xf32> -> vector<8x8xf32>
    %c0_45 = arith.constant 0 : index
    %c16 = arith.constant 16 : index
    %139 = vector.load %arg5[%c0_45, %c16] : memref<16x32xf32, #tpu.memory_space<vmem>>, vector<8x8xf32>
    tpu.vector_store %arg5[%c0_45, %c16], %138 {strides = array<i32>} : memref<16x32xf32, #tpu.memory_space<vmem>>, vector<8x8xf32>,
    %140 = vector.extract_strided_slice %13 {offsets = [0, 24], sizes = [8, 8], strides = [1, 1]} : vector<16x32xf32> to vector<8x8xf32>
    %141 = vector.extract_strided_slice %14 {offsets = [0, 24], sizes = [8, 8], strides = [1, 1]} : vector<16x32xf32> to vector<8x8xf32>
    %142 = vector.extract_strided_slice %12 {offsets = [0, 88], sizes = [8, 8], strides = [1, 1]} : vector<16x96xf32> to vector<8x8xf32>
    %143 = vector.extract_strided_slice %32 {offsets = [0, 6], sizes = [8, 1], strides = [1, 1]} : vector<16x16xi32> to vector<8x1xi32>
    %144 = vector.extract_strided_slice %37 {offsets = [6, 0], sizes = [1, 8], strides = [1, 1]} : vector<16x16xi32> to vector<1x8xi32>
    %145 = vector.broadcast %143 : vector<8x1xi32> to vector<8x8xi32>
    %146 = vector.broadcast %144 : vector<1x8xi32> to vector<8x8xi32>
    %147 = arith.cmpi eq, %145, %146 : vector<8x8xi32>
    %148 = vector.extract_strided_slice %32 {offsets = [0, 7], sizes = [8, 1], strides = [1, 1]} : vector<16x16xi32> to vector<8x1xi32>
    %149 = vector.extract_strided_slice %37 {offsets = [7, 0], sizes = [1, 8], strides = [1, 1]} : vector<16x16xi32> to vector<1x8xi32>
    %150 = vector.broadcast %148 : vector<8x1xi32> to vector<8x8xi32>
    %151 = vector.broadcast %149 : vector<1x8xi32> to vector<8x8xi32>
    %152 = arith.cmpi eq, %150, %151 : vector<8x8xi32>
    %153 = arith.ori %147, %152 : vector<8x8xi1>
    %cst_46 = arith.constant dense<0.000000e+00> : vector<8x8xf32>
    %154 = tpu.matmul %140, %141, %cst_46 {dimension_numbers = #tpu.dot_dimension_numbers<[1], [1], [0], [0], [0, 0, 1, 0], [], []>} : vector<8x8xf32>, vector<8x8xf32>, vector<8x8xf32> -> vector<8x8xf32>
    %cst_47 = arith.constant 0.000000e+00 : f32
    %155 = vector.broadcast %cst_47 : f32 to vector<8x8xf32>
    %156 = arith.select %153, %154, %155 : vector<8x8xi1>, vector<8x8xf32>
    %157 = tpu.transpose %156, [1, 0] : vector<8x8xf32> -> vector<8x8xf32>
    %158 = arith.select %40, %156, %157 : vector<8x8xi1>, vector<8x8xf32>
    %cst_48 = arith.constant 0.353553385 : f32
    %159 = vector.broadcast %cst_48 : f32 to vector<8x8xf32>
    %160 = arith.mulf %158, %159 : vector<8x8xf32>
    %cst_49 = arith.constant dense<0xFF800000> : vector<8xf32>
    %161 = vector.multi_reduction <maximumf>, %160, %cst_49 [1] : vector<8x8xf32> to vector<8xf32>
    %162 = vector.shape_cast %161 : vector<8xf32> to vector<8x1xf32>
    %163 = vector.broadcast %162 : vector<8x1xf32> to vector<8x8xf32>
    %164 = arith.subf %160, %163 : vector<8x8xf32>
    %165 = math.exp %164 : vector<8x8xf32>
    %cst_50 = arith.constant dense<0.000000e+00> : vector<8xf32>
    %166 = vector.multi_reduction <add>, %165, %cst_50 [1] : vector<8x8xf32> to vector<8xf32>
    %167 = vector.shape_cast %166 : vector<8xf32> to vector<8x1xf32>
    %168 = tpu.reciprocal %167 {approx = true} : vector<8x1xf32> -> vector<8x1xf32>
    %169 = vector.broadcast %168 : vector<8x1xf32> to vector<8x8xf32>
    %170 = arith.mulf %165, %169 : vector<8x8xf32>
    %cst_51 = arith.constant dense<0.000000e+00> : vector<8x8xf32>
    %171 = tpu.matmul %170, %142, %cst_51 {dimension_numbers = #tpu.dot_dimension_numbers<[1], [0], [0], [1], [0, 0, 1, 1], [], []>} : vector<8x8xf32>, vector<8x8xf32>, vector<8x8xf32> -> vector<8x8xf32>
    %c0_52 = arith.constant 0 : index
    %c24 = arith.constant 24 : index
    %172 = vector.load %arg5[%c0_52, %c24] : memref<16x32xf32, #tpu.memory_space<vmem>>, vector<8x8xf32>
    tpu.vector_store %arg5[%c0_52, %c24], %171 {strides = array<i32>} : memref<16x32xf32, #tpu.memory_space<vmem>>, vector<8x8xf32>,
    %173 = vector.extract_strided_slice %13 {offsets = [8, 0], sizes = [8, 8], strides = [1, 1]} : vector<16x32xf32> to vector<8x8xf32>
    %174 = vector.extract_strided_slice %14 {offsets = [8, 0], sizes = [8, 8], strides = [1, 1]} : vector<16x32xf32> to vector<8x8xf32>
    %175 = vector.extract_strided_slice %12 {offsets = [8, 64], sizes = [8, 8], strides = [1, 1]} : vector<16x96xf32> to vector<8x8xf32>
    %176 = vector.extract_strided_slice %32 {offsets = [8, 8], sizes = [8, 1], strides = [1, 1]} : vector<16x16xi32> to vector<8x1xi32>
    %177 = vector.extract_strided_slice %37 {offsets = [8, 8], sizes = [1, 8], strides = [1, 1]} : vector<16x16xi32> to vector<1x8xi32>
    %178 = vector.broadcast %176 : vector<8x1xi32> to vector<8x8xi32>
    %179 = vector.broadcast %177 : vector<1x8xi32> to vector<8x8xi32>
    %180 = arith.cmpi eq, %178, %179 : vector<8x8xi32>
    %181 = vector.extract_strided_slice %32 {offsets = [8, 9], sizes = [8, 1], strides = [1, 1]} : vector<16x16xi32> to vector<8x1xi32>
    %182 = vector.extract_strided_slice %37 {offsets = [9, 8], sizes = [1, 8], strides = [1, 1]} : vector<16x16xi32> to vector<1x8xi32>
    %183 = vector.broadcast %181 : vector<8x1xi32> to vector<8x8xi32>
    %184 = vector.broadcast %182 : vector<1x8xi32> to vector<8x8xi32>
    %185 = arith.cmpi eq, %183, %184 : vector<8x8xi32>
    %186 = arith.ori %180, %185 : vector<8x8xi1>
    %cst_53 = arith.constant dense<0.000000e+00> : vector<8x8xf32>
    %187 = tpu.matmul %173, %174, %cst_53 {dimension_numbers = #tpu.dot_dimension_numbers<[1], [1], [0], [0], [0, 0, 1, 0], [], []>} : vector<8x8xf32>, vector<8x8xf32>, vector<8x8xf32> -> vector<8x8xf32>
    %cst_54 = arith.constant 0.000000e+00 : f32
    %188 = vector.broadcast %cst_54 : f32 to vector<8x8xf32>
    %189 = arith.select %186, %187, %188 : vector<8x8xi1>, vector<8x8xf32>
    %190 = tpu.transpose %189, [1, 0] : vector<8x8xf32> -> vector<8x8xf32>
    %191 = arith.select %40, %189, %190 : vector<8x8xi1>, vector<8x8xf32>
    %cst_55 = arith.constant 0.353553385 : f32
    %192 = vector.broadcast %cst_55 : f32 to vector<8x8xf32>
    %193 = arith.mulf %191, %192 : vector<8x8xf32>
    %cst_56 = arith.constant dense<0xFF800000> : vector<8xf32>
    %194 = vector.multi_reduction <maximumf>, %193, %cst_56 [1] : vector<8x8xf32> to vector<8xf32>
    %195 = vector.shape_cast %194 : vector<8xf32> to vector<8x1xf32>
    %196 = vector.broadcast %195 : vector<8x1xf32> to vector<8x8xf32>
    %197 = arith.subf %193, %196 : vector<8x8xf32>
    %198 = math.exp %197 : vector<8x8xf32>
    %cst_57 = arith.constant dense<0.000000e+00> : vector<8xf32>
    %199 = vector.multi_reduction <add>, %198, %cst_57 [1] : vector<8x8xf32> to vector<8xf32>
    %200 = vector.shape_cast %199 : vector<8xf32> to vector<8x1xf32>
    %201 = tpu.reciprocal %200 {approx = true} : vector<8x1xf32> -> vector<8x1xf32>
    %202 = vector.broadcast %201 : vector<8x1xf32> to vector<8x8xf32>
    %203 = arith.mulf %198, %202 : vector<8x8xf32>
    %cst_58 = arith.constant dense<0.000000e+00> : vector<8x8xf32>
    %204 = tpu.matmul %203, %175, %cst_58 {dimension_numbers = #tpu.dot_dimension_numbers<[1], [0], [0], [1], [0, 0, 1, 1], [], []>} : vector<8x8xf32>, vector<8x8xf32>, vector<8x8xf32> -> vector<8x8xf32>
    %c8_59 = arith.constant 8 : index
    %c0_60 = arith.constant 0 : index
    %205 = vector.load %arg5[%c8_59, %c0_60] : memref<16x32xf32, #tpu.memory_space<vmem>>, vector<8x8xf32>
    tpu.vector_store %arg5[%c8_59, %c0_60], %204 {strides = array<i32>} : memref<16x32xf32, #tpu.memory_space<vmem>>, vector<8x8xf32>,
    %206 = vector.extract_strided_slice %13 {offsets = [8, 8], sizes = [8, 8], strides = [1, 1]} : vector<16x32xf32> to vector<8x8xf32>
    %207 = vector.extract_strided_slice %14 {offsets = [8, 8], sizes = [8, 8], strides = [1, 1]} : vector<16x32xf32> to vector<8x8xf32>
    %208 = vector.extract_strided_slice %12 {offsets = [8, 72], sizes = [8, 8], strides = [1, 1]} : vector<16x96xf32> to vector<8x8xf32>
    %209 = vector.extract_strided_slice %32 {offsets = [8, 10], sizes = [8, 1], strides = [1, 1]} : vector<16x16xi32> to vector<8x1xi32>
    %210 = vector.extract_strided_slice %37 {offsets = [10, 8], sizes = [1, 8], strides = [1, 1]} : vector<16x16xi32> to vector<1x8xi32>
    %211 = vector.broadcast %209 : vector<8x1xi32> to vector<8x8xi32>
    %212 = vector.broadcast %210 : vector<1x8xi32> to vector<8x8xi32>
    %213 = arith.cmpi eq, %211, %212 : vector<8x8xi32>
    %214 = vector.extract_strided_slice %32 {offsets = [8, 11], sizes = [8, 1], strides = [1, 1]} : vector<16x16xi32> to vector<8x1xi32>
    %215 = vector.extract_strided_slice %37 {offsets = [11, 8], sizes = [1, 8], strides = [1, 1]} : vector<16x16xi32> to vector<1x8xi32>
    %216 = vector.broadcast %214 : vector<8x1xi32> to vector<8x8xi32>
    %217 = vector.broadcast %215 : vector<1x8xi32> to vector<8x8xi32>
    %218 = arith.cmpi eq, %216, %217 : vector<8x8xi32>
    %219 = arith.ori %213, %218 : vector<8x8xi1>
    %cst_61 = arith.constant dense<0.000000e+00> : vector<8x8xf32>
    %220 = tpu.matmul %206, %207, %cst_61 {dimension_numbers = #tpu.dot_dimension_numbers<[1], [1], [0], [0], [0, 0, 1, 0], [], []>} : vector<8x8xf32>, vector<8x8xf32>, vector<8x8xf32> -> vector<8x8xf32>
    %cst_62 = arith.constant 0.000000e+00 : f32
    %221 = vector.broadcast %cst_62 : f32 to vector<8x8xf32>
    %222 = arith.select %219, %220, %221 : vector<8x8xi1>, vector<8x8xf32>
    %223 = tpu.transpose %222, [1, 0] : vector<8x8xf32> -> vector<8x8xf32>
    %224 = arith.select %40, %222, %223 : vector<8x8xi1>, vector<8x8xf32>
    %cst_63 = arith.constant 0.353553385 : f32
    %225 = vector.broadcast %cst_63 : f32 to vector<8x8xf32>
    %226 = arith.mulf %224, %225 : vector<8x8xf32>
    %cst_64 = arith.constant dense<0xFF800000> : vector<8xf32>
    %227 = vector.multi_reduction <maximumf>, %226, %cst_64 [1] : vector<8x8xf32> to vector<8xf32>
    %228 = vector.shape_cast %227 : vector<8xf32> to vector<8x1xf32>
    %229 = vector.broadcast %228 : vector<8x1xf32> to vector<8x8xf32>
    %230 = arith.subf %226, %229 : vector<8x8xf32>
    %231 = math.exp %230 : vector<8x8xf32>
    %cst_65 = arith.constant dense<0.000000e+00> : vector<8xf32>
    %232 = vector.multi_reduction <add>, %231, %cst_65 [1] : vector<8x8xf32> to vector<8xf32>
    %233 = vector.shape_cast %232 : vector<8xf32> to vector<8x1xf32>
    %234 = tpu.reciprocal %233 {approx = true} : vector<8x1xf32> -> vector<8x1xf32>
    %235 = vector.broadcast %234 : vector<8x1xf32> to vector<8x8xf32>
    %236 = arith.mulf %231, %235 : vector<8x8xf32>
    %cst_66 = arith.constant dense<0.000000e+00> : vector<8x8xf32>
    %237 = tpu.matmul %236, %208, %cst_66 {dimension_numbers = #tpu.dot_dimension_numbers<[1], [0], [0], [1], [0, 0, 1, 1], [], []>} : vector<8x8xf32>, vector<8x8xf32>, vector<8x8xf32> -> vector<8x8xf32>
    %c8_67 = arith.constant 8 : index
    %c8_68 = arith.constant 8 : index
    %238 = vector.load %arg5[%c8_67, %c8_68] : memref<16x32xf32, #tpu.memory_space<vmem>>, vector<8x8xf32>
    tpu.vector_store %arg5[%c8_67, %c8_68], %237 {strides = array<i32>} : memref<16x32xf32, #tpu.memory_space<vmem>>, vector<8x8xf32>,
    %239 = vector.extract_strided_slice %13 {offsets = [8, 16], sizes = [8, 8], strides = [1, 1]} : vector<16x32xf32> to vector<8x8xf32>
    %240 = vector.extract_strided_slice %14 {offsets = [8, 16], sizes = [8, 8], strides = [1, 1]} : vector<16x32xf32> to vector<8x8xf32>
    %241 = vector.extract_strided_slice %12 {offsets = [8, 80], sizes = [8, 8], strides = [1, 1]} : vector<16x96xf32> to vector<8x8xf32>
    %242 = vector.extract_strided_slice %32 {offsets = [8, 12], sizes = [8, 1], strides = [1, 1]} : vector<16x16xi32> to vector<8x1xi32>
    %243 = vector.extract_strided_slice %37 {offsets = [12, 8], sizes = [1, 8], strides = [1, 1]} : vector<16x16xi32> to vector<1x8xi32>
    %244 = vector.broadcast %242 : vector<8x1xi32> to vector<8x8xi32>
    %245 = vector.broadcast %243 : vector<1x8xi32> to vector<8x8xi32>
    %246 = arith.cmpi eq, %244, %245 : vector<8x8xi32>
    %247 = vector.extract_strided_slice %32 {offsets = [8, 13], sizes = [8, 1], strides = [1, 1]} : vector<16x16xi32> to vector<8x1xi32>
    %248 = vector.extract_strided_slice %37 {offsets = [13, 8], sizes = [1, 8], strides = [1, 1]} : vector<16x16xi32> to vector<1x8xi32>
    %249 = vector.broadcast %247 : vector<8x1xi32> to vector<8x8xi32>
    %250 = vector.broadcast %248 : vector<1x8xi32> to vector<8x8xi32>
    %251 = arith.cmpi eq, %249, %250 : vector<8x8xi32>
    %252 = arith.ori %246, %251 : vector<8x8xi1>
    %cst_69 = arith.constant dense<0.000000e+00> : vector<8x8xf32>
    %253 = tpu.matmul %239, %240, %cst_69 {dimension_numbers = #tpu.dot_dimension_numbers<[1], [1], [0], [0], [0, 0, 1, 0], [], []>} : vector<8x8xf32>, vector<8x8xf32>, vector<8x8xf32> -> vector<8x8xf32>
    %cst_70 = arith.constant 0.000000e+00 : f32
    %254 = vector.broadcast %cst_70 : f32 to vector<8x8xf32>
    %255 = arith.select %252, %253, %254 : vector<8x8xi1>, vector<8x8xf32>
    %256 = tpu.transpose %255, [1, 0] : vector<8x8xf32> -> vector<8x8xf32>
    %257 = arith.select %40, %255, %256 : vector<8x8xi1>, vector<8x8xf32>
    %cst_71 = arith.constant 0.353553385 : f32
    %258 = vector.broadcast %cst_71 : f32 to vector<8x8xf32>
    %259 = arith.mulf %257, %258 : vector<8x8xf32>
    %cst_72 = arith.constant dense<0xFF800000> : vector<8xf32>
    %260 = vector.multi_reduction <maximumf>, %259, %cst_72 [1] : vector<8x8xf32> to vector<8xf32>
    %261 = vector.shape_cast %260 : vector<8xf32> to vector<8x1xf32>
    %262 = vector.broadcast %261 : vector<8x1xf32> to vector<8x8xf32>
    %263 = arith.subf %259, %262 : vector<8x8xf32>
    %264 = math.exp %263 : vector<8x8xf32>
    %cst_73 = arith.constant dense<0.000000e+00> : vector<8xf32>
    %265 = vector.multi_reduction <add>, %264, %cst_73 [1] : vector<8x8xf32> to vector<8xf32>
    %266 = vector.shape_cast %265 : vector<8xf32> to vector<8x1xf32>
    %267 = tpu.reciprocal %266 {approx = true} : vector<8x1xf32> -> vector<8x1xf32>
    %268 = vector.broadcast %267 : vector<8x1xf32> to vector<8x8xf32>
    %269 = arith.mulf %264, %268 : vector<8x8xf32>
    %cst_74 = arith.constant dense<0.000000e+00> : vector<8x8xf32>
    %270 = tpu.matmul %269, %241, %cst_74 {dimension_numbers = #tpu.dot_dimension_numbers<[1], [0], [0], [1], [0, 0, 1, 1], [], []>} : vector<8x8xf32>, vector<8x8xf32>, vector<8x8xf32> -> vector<8x8xf32>
    %c8_75 = arith.constant 8 : index
    %c16_76 = arith.constant 16 : index
    %271 = vector.load %arg5[%c8_75, %c16_76] : memref<16x32xf32, #tpu.memory_space<vmem>>, vector<8x8xf32>
    tpu.vector_store %arg5[%c8_75, %c16_76], %270 {strides = array<i32>} : memref<16x32xf32, #tpu.memory_space<vmem>>, vector<8x8xf32>,
    %272 = vector.extract_strided_slice %13 {offsets = [8, 24], sizes = [8, 8], strides = [1, 1]} : vector<16x32xf32> to vector<8x8xf32>
    %273 = vector.extract_strided_slice %14 {offsets = [8, 24], sizes = [8, 8], strides = [1, 1]} : vector<16x32xf32> to vector<8x8xf32>
    %274 = vector.extract_strided_slice %12 {offsets = [8, 88], sizes = [8, 8], strides = [1, 1]} : vector<16x96xf32> to vector<8x8xf32>
    %275 = vector.extract_strided_slice %32 {offsets = [8, 14], sizes = [8, 1], strides = [1, 1]} : vector<16x16xi32> to vector<8x1xi32>
    %276 = vector.extract_strided_slice %37 {offsets = [14, 8], sizes = [1, 8], strides = [1, 1]} : vector<16x16xi32> to vector<1x8xi32>
    %277 = vector.broadcast %275 : vector<8x1xi32> to vector<8x8xi32>
    %278 = vector.broadcast %276 : vector<1x8xi32> to vector<8x8xi32>
    %279 = arith.cmpi eq, %277, %278 : vector<8x8xi32>
    %280 = vector.extract_strided_slice %32 {offsets = [8, 15], sizes = [8, 1], strides = [1, 1]} : vector<16x16xi32> to vector<8x1xi32>
    %281 = vector.extract_strided_slice %37 {offsets = [15, 8], sizes = [1, 8], strides = [1, 1]} : vector<16x16xi32> to vector<1x8xi32>
    %282 = vector.broadcast %280 : vector<8x1xi32> to vector<8x8xi32>
    %283 = vector.broadcast %281 : vector<1x8xi32> to vector<8x8xi32>
    %284 = arith.cmpi eq, %282, %283 : vector<8x8xi32>
    %285 = arith.ori %279, %284 : vector<8x8xi1>
    %cst_77 = arith.constant dense<0.000000e+00> : vector<8x8xf32>
    %286 = tpu.matmul %272, %273, %cst_77 {dimension_numbers = #tpu.dot_dimension_numbers<[1], [1], [0], [0], [0, 0, 1, 0], [], []>} : vector<8x8xf32>, vector<8x8xf32>, vector<8x8xf32> -> vector<8x8xf32>
    %cst_78 = arith.constant 0.000000e+00 : f32
    %287 = vector.broadcast %cst_78 : f32 to vector<8x8xf32>
    %288 = arith.select %285, %286, %287 : vector<8x8xi1>, vector<8x8xf32>
    %289 = tpu.transpose %288, [1, 0] : vector<8x8xf32> -> vector<8x8xf32>
    %290 = arith.select %40, %288, %289 : vector<8x8xi1>, vector<8x8xf32>
    %cst_79 = arith.constant 0.353553385 : f32
    %291 = vector.broadcast %cst_79 : f32 to vector<8x8xf32>
    %292 = arith.mulf %290, %291 : vector<8x8xf32>
    %cst_80 = arith.constant dense<0xFF800000> : vector<8xf32>
    %293 = vector.multi_reduction <maximumf>, %292, %cst_80 [1] : vector<8x8xf32> to vector<8xf32>
    %294 = vector.shape_cast %293 : vector<8xf32> to vector<8x1xf32>
    %295 = vector.broadcast %294 : vector<8x1xf32> to vector<8x8xf32>
    %296 = arith.subf %292, %295 : vector<8x8xf32>
    %297 = math.exp %296 : vector<8x8xf32>
    %cst_81 = arith.constant dense<0.000000e+00> : vector<8xf32>
    %298 = vector.multi_reduction <add>, %297, %cst_81 [1] : vector<8x8xf32> to vector<8xf32>
    %299 = vector.shape_cast %298 : vector<8xf32> to vector<8x1xf32>
    %300 = tpu.reciprocal %299 {approx = true} : vector<8x1xf32> -> vector<8x1xf32>
    %301 = vector.broadcast %300 : vector<8x1xf32> to vector<8x8xf32>
    %302 = arith.mulf %297, %301 : vector<8x8xf32>
    %cst_82 = arith.constant dense<0.000000e+00> : vector<8x8xf32>
    %303 = tpu.matmul %302, %274, %cst_82 {dimension_numbers = #tpu.dot_dimension_numbers<[1], [0], [0], [1], [0, 0, 1, 1], [], []>} : vector<8x8xf32>, vector<8x8xf32>, vector<8x8xf32> -> vector<8x8xf32>
    %c8_83 = arith.constant 8 : index
    %c24_84 = arith.constant 24 : index
    %304 = vector.load %arg5[%c8_83, %c24_84] : memref<16x32xf32, #tpu.memory_space<vmem>>, vector<8x8xf32>
    tpu.vector_store %arg5[%c8_83, %c24_84], %303 {strides = array<i32>} : memref<16x32xf32, #tpu.memory_space<vmem>>, vector<8x8xf32>,
    %c0_85 = arith.constant 0 : index
    %c0_86 = arith.constant 0 : index
    %305 = vector.load %arg5[%c0_85, %c0_86] : memref<16x32xf32, #tpu.memory_space<vmem>>, vector<16x32xf32>
    %c0_87 = arith.constant 0 : index
    %c96_88 = arith.constant 96 : index
    %306 = vector.load %arg1[%c0_87, %c96_88] : memref<32x256xf32, #tpu.memory_space<vmem>>, vector<32x32xf32>
    %cst_89 = arith.constant dense<0.000000e+00> : vector<16x32xf32>
    %307 = tpu.matmul %305, %306, %cst_89 {dimension_numbers = #tpu.dot_dimension_numbers<[1], [0], [0], [1], [0, 0, 1, 1], [], []>} : vector<16x32xf32>, vector<32x32xf32>, vector<16x32xf32> -> vector<16x32xf32>
    %308 = vector.broadcast %2 : vector<1x32xf32> to vector<16x32xf32>
    %309 = arith.addf %307, %308 : vector<16x32xf32>
    %310 = arith.addf %309, %0 : vector<16x32xf32>
    %cst_90 = arith.constant dense<0.000000e+00> : vector<16xf32>
    %311 = vector.multi_reduction <add>, %310, %cst_90 [1] : vector<16x32xf32> to vector<16xf32>
    %312 = vector.shape_cast %311 : vector<16xf32> to vector<16x1xf32>
    %cst_91 = arith.constant 3.200000e+01 : f32
    %313 = vector.broadcast %cst_91 : f32 to vector<16x1xf32>
    %314 = arith.divf %312, %313 : vector<16x1xf32>
    %315 = vector.broadcast %314 : vector<16x1xf32> to vector<16x32xf32>
    %316 = arith.subf %310, %315 : vector<16x32xf32>
    %317 = arith.mulf %316, %316 : vector<16x32xf32>
    %cst_92 = arith.constant dense<0.000000e+00> : vector<16xf32>
    %318 = vector.multi_reduction <add>, %317, %cst_92 [1] : vector<16x32xf32> to vector<16xf32>
    %319 = vector.shape_cast %318 : vector<16xf32> to vector<16x1xf32>
    %cst_93 = arith.constant 3.200000e+01 : f32
    %320 = vector.broadcast %cst_93 : f32 to vector<16x1xf32>
    %321 = arith.divf %319, %320 : vector<16x1xf32>
    %cst_94 = arith.constant 9.99999996E-13 : f32
    %322 = vector.broadcast %cst_94 : f32 to vector<16x1xf32>
    %323 = arith.addf %321, %322 : vector<16x1xf32>
    %324 = math.rsqrt %323 : vector<16x1xf32>
    %325 = vector.broadcast %324 : vector<16x1xf32> to vector<16x32xf32>
    %326 = arith.mulf %316, %325 : vector<16x32xf32>
    %327 = vector.broadcast %3 : vector<1x32xf32> to vector<16x32xf32>
    %328 = arith.mulf %326, %327 : vector<16x32xf32>
    %329 = vector.broadcast %4 : vector<1x32xf32> to vector<16x32xf32>
    %330 = arith.addf %328, %329 : vector<16x32xf32>
    %c0_95 = arith.constant 0 : index
    %c128 = arith.constant 128 : index
    %331 = vector.load %arg1[%c0_95, %c128] : memref<32x256xf32, #tpu.memory_space<vmem>>, vector<32x64xf32>
    %cst_96 = arith.constant dense<0.000000e+00> : vector<16x64xf32>
    %332 = tpu.matmul %330, %331, %cst_96 {dimension_numbers = #tpu.dot_dimension_numbers<[1], [0], [0], [1], [0, 0, 1, 1], [], []>} : vector<16x32xf32>, vector<32x64xf32>, vector<16x64xf32> -> vector<16x64xf32>
    %333 = vector.broadcast %5 : vector<1x64xf32> to vector<16x64xf32>
    %334 = arith.addf %332, %333 : vector<16x64xf32>
    %cst_97 = arith.constant 5.000000e-01 : f32
    %335 = vector.broadcast %cst_97 : f32 to vector<16x64xf32>
    %336 = arith.mulf %335, %334 : vector<16x64xf32>
    %cst_98 = arith.constant 0.707106769 : f32
    %337 = vector.broadcast %cst_98 : f32 to vector<16x64xf32>
    %338 = arith.mulf %334, %337 : vector<16x64xf32>
    %339 = math.erf %338 : vector<16x64xf32>
    %cst_99 = arith.constant 1.000000e+00 : f32
    %340 = vector.broadcast %cst_99 : f32 to vector<16x64xf32>
    %341 = arith.addf %340, %339 : vector<16x64xf32>
    %342 = arith.mulf %336, %341 : vector<16x64xf32>
    %c0_100 = arith.constant 0 : index
    %c0_101 = arith.constant 0 : index
    %343 = vector.load %arg2[%c0_100, %c0_101] : memref<64x48xf32, #tpu.memory_space<vmem>>, vector<64x32xf32>
    %cst_102 = arith.constant dense<0.000000e+00> : vector<16x32xf32>
    %344 = tpu.matmul %342, %343, %cst_102 {dimension_numbers = #tpu.dot_dimension_numbers<[1], [0], [0], [1], [0, 0, 1, 1], [], []>} : vector<16x64xf32>, vector<64x32xf32>, vector<16x32xf32> -> vector<16x32xf32>
    %345 = vector.broadcast %6 : vector<1x32xf32> to vector<16x32xf32>
    %346 = arith.addf %344, %345 : vector<16x32xf32>
    %347 = arith.addf %346, %330 : vector<16x32xf32>
    %cst_103 = arith.constant dense<0.000000e+00> : vector<16xf32>
    %348 = vector.multi_reduction <add>, %347, %cst_103 [1] : vector<16x32xf32> to vector<16xf32>
    %349 = vector.shape_cast %348 : vector<16xf32> to vector<16x1xf32>
    %cst_104 = arith.constant 3.200000e+01 : f32
    %350 = vector.broadcast %cst_104 : f32 to vector<16x1xf32>
    %351 = arith.divf %349, %350 : vector<16x1xf32>
    %352 = vector.broadcast %351 : vector<16x1xf32> to vector<16x32xf32>
    %353 = arith.subf %347, %352 : vector<16x32xf32>
    %354 = arith.mulf %353, %353 : vector<16x32xf32>
    %cst_105 = arith.constant dense<0.000000e+00> : vector<16xf32>
    %355 = vector.multi_reduction <add>, %354, %cst_105 [1] : vector<16x32xf32> to vector<16xf32>
    %356 = vector.shape_cast %355 : vector<16xf32> to vector<16x1xf32>
    %cst_106 = arith.constant 3.200000e+01 : f32
    %357 = vector.broadcast %cst_106 : f32 to vector<16x1xf32>
    %358 = arith.divf %356, %357 : vector<16x1xf32>
    %cst_107 = arith.constant 9.99999996E-13 : f32
    %359 = vector.broadcast %cst_107 : f32 to vector<16x1xf32>
    %360 = arith.addf %358, %359 : vector<16x1xf32>
    %361 = math.rsqrt %360 : vector<16x1xf32>
    %362 = vector.broadcast %361 : vector<16x1xf32> to vector<16x32xf32>
    %363 = arith.mulf %353, %362 : vector<16x32xf32>
    %364 = vector.broadcast %7 : vector<1x32xf32> to vector<16x32xf32>
    %365 = arith.mulf %363, %364 : vector<16x32xf32>
    %366 = vector.broadcast %8 : vector<1x32xf32> to vector<16x32xf32>
    %367 = arith.addf %365, %366 : vector<16x32xf32>
    %c0_108 = arith.constant 0 : index
    %c0_109 = arith.constant 0 : index
    %368 = vector.load %arg4[%c0_108, %c0_109] : memref<16x32xf32, #tpu.memory_space<vmem>>, vector<16x32xf32>
    tpu.vector_store %arg4[%c0_108, %c0_109], %367 {strides = array<i32>} : memref<16x32xf32, #tpu.memory_space<vmem>>, vector<16x32xf32>,
    return
  }
}

</mosaic_0001>

<llo_original>
// kernel: bert_lsh_layer.1
$region0: #{bert_lsh_layer.1}
  #allocation0 [shape = 'u32[]', space=smem, size = 0x4, offset = 0x4, fixed_abs, tag = 'smem constant byte address 0x4 - core index']
  #allocation1 [shape = 'u32[144,128]{1,0:T(1,128)}', space=vmem, size = 0x12000, scoped, tag = 'internal scratch']
  #allocation2 [shape = 'f32[16,32]{1,0:T(8,128)}', space=vmem, size = 0x2000, scoped, tag = 'scratch operand']
  %s0 = inlined_call_operand.vmem [shape: f32[16,32], index: 0, kind: input, shape index: {}]
  %s1 = inlined_call_operand.vmem [shape: f32[32,256], index: 1, kind: input, shape index: {}]
  %s2 = inlined_call_operand.vmem [shape: f32[64,48], index: 2, kind: input, shape index: {}]
  %s3 = inlined_call_operand.vmem [shape: f32[3,128], index: 3, kind: input, shape index: {}]
  %s4 = inlined_call_operand.hbm [shape: f32[16,32], index: 4, kind: output, shape index: {}]
  %s5 = sld [smem:[#allocation0]]
  $region26: #{bert_lsh_layer.1} parent=0
    _
  %s7 = ssub.s32 1, %s5
  %s8 = scalar_select 0, %s7, %s5
  $region1: #{bert_lsh_layer.1} parent=0
    #allocation3 [shape = 'u8[8192]{0}', space=vmem, size = 0x2000, scoped, tag = 'output window, operand 0, single buffered']
    #allocation4 [shape = 's32[1]{0}', space=sflag, size = 0x4, scoped, tag = 'scoped memory for bert_lsh_layer.1']
    %9 = vsyncpa [#allocation4], 0
    // Predicated region
    $region2: #{bert_lsh_layer.1} parent=1 // pred_check
      _
    $region3: #{bert_lsh_layer.1} parent=1 // pred_check_branch
      %11 = sbr.rel (0) target = $region5
    $region4: #{bert_lsh_layer.1} parent=1 // pred_region
      _
    $region5: #{bert_lsh_layer.1} parent=1 // pred_fallthru
      _
    // Predicated region
    $region6: #{bert_lsh_layer.1} parent=1 // pred_check
      _
    $region7: #{bert_lsh_layer.1} parent=1 // pred_check_branch
      %13 = sbr.rel (0) target = $region9
    $region8: #{bert_lsh_layer.1} parent=1 // pred_region
      _
    $region9: #{bert_lsh_layer.1} parent=1 // pred_fallthru
      _
    // Predicated region
    $region10: #{bert_lsh_layer.1} parent=1 // pred_check
      _
    $region11: #{bert_lsh_layer.1} parent=1 // pred_check_branch
      %15 = sbr.rel (0) target = $region13
    $region12: #{bert_lsh_layer.1} parent=1 // pred_region
      _
    $region13: #{bert_lsh_layer.1} parent=1 // pred_fallthru
      _
    // Predicated region
    $region14: #{bert_lsh_layer.1} parent=1 // pred_check
      _
    $region15: #{bert_lsh_layer.1} parent=1 // pred_check_branch
      %17 = sbr.rel (0) target = $region17
    $region16: #{bert_lsh_layer.1} parent=1 // pred_region
      _
    $region17: #{bert_lsh_layer.1} parent=1 // pred_fallthru
      _
    %v18 = vld [vmem:[%s0] sm:$0xff]
    %v19 = vld [vmem:[%s0 + $0x8] sm:$0xff]
    %v20 = vld [vmem:[%s3] sm:$0x1]
    %v21 = vld [vmem:[%s3 + $0x1] sm:$0x1]
    %v22 = vld [vmem:[%s3 + $0x2] sm:$0x1]
    %v23 = vld [vmem:[%s1] sm:$0xff]
    %v24 = vld [vmem:[%s1 + $0x10] sm:$0xff]
    %v25 = vld [vmem:[%s1 + $0x20] sm:$0xff]
    %v26 = vld [vmem:[%s1 + $0x30] sm:$0xff]
    %v27 = vlaneseq
    %v28 = vshrl.u32 %v27, 7
    %v29 = vsub.s32 0, %v28
    %v30 = vrot.slane %v20, %v29
    %vm31 = vcmask 261120
    %v33 = vsel %vm31, %v18, 0
    %v36 = vsel %vm31, %v19, 0
    %38 = vmatprep.subr.mxu0 0.0
    %39 = vmatpush1.msra.mxu0 %v23
    %40 = vmatprep.subr.mxu0 0.0
    %41 = vmatpush1.msra.mxu0 %v24
    %42 = vmatprep.subr.mxu0 0.0
    %43 = vmatpush1.msra.mxu0 %v25
    %44 = vmatprep.subr.mxu0 0.0
    %45 = vmatpush1.msra.mxu0 %v26
    %46 = vmatprep.subr.mxu0 0.0
    %47 = vmatpush1.msra.mxu0 0.0
    %48 = vmatprep.subr.mxu0 0.0
    %49 = vmatpush1.msra.mxu0 0.0
    %50 = vmatprep.subr.mxu0 0.0
    %51 = vmatpush1.msra.mxu0 0.0
    %52 = vmatprep.subr.mxu0 0.0
    %53 = vmatpush1.msra.mxu0 0.0
    %54 = vmatprep.subr.mxu0 0.0
    %55 = vmatpush1.msra.mxu0 0.0
    %56 = vmatprep.subr.mxu0 0.0
    %57 = vmatpush1.msra.mxu0 0.0
    %58 = vmatprep.subr.mxu0 0.0
    %59 = vmatpush1.msra.mxu0 0.0
    %60 = vmatprep.subr.mxu0 0.0
    %61 = vmatpush1.msra.mxu0 0.0
    %62 = vmatprep.subr.mxu0 0.0
    %63 = vmatpush1.msra.mxu0 0.0
    %64 = vmatprep.subr.mxu0 0.0
    %65 = vmatpush1.msra.mxu0 0.0
    %66 = vmatprep.subr.mxu0 0.0
    %67 = vmatpush1.msra.mxu0 0.0
    %68 = vmatprep.subr.mxu0 0.0
    %69 = vmatpush1.msra.mxu0 0.0
    %70 = vmatprep.subr.mxu0 0.0
    %71 = vmatpush1.msra.mxu0 0.0
    %72 = vmatprep.subr.mxu0 0.0
    %73 = vmatpush1.msra.mxu0 0.0
    %74 = vmatprep.subr.mxu0 0.0
    %75 = vmatpush1.msra.mxu0 0.0
    %76 = vmatprep.subr.mxu0 0.0
    %77 = vmatpush1.msra.mxu0 0.0
    %78 = vmatprep.subr.mxu0 0.0
    %79 = vmatpush1.msra.mxu0 0.0
    %80 = vmatprep.subr.mxu0 0.0
    %81 = vmatpush1.msra.mxu0 0.0
    %82 = vmatprep.subr.mxu0 0.0
    %83 = vmatpush1.msra.mxu0 0.0
    %84 = vmatprep.subr.mxu0 0.0
    %85 = vmatpush1.msra.mxu0 0.0
    %86 = vmatprep.subr.mxu0 0.0
    %87 = vmatpush1.msra.mxu0 0.0
    %88 = vmatprep.subr.mxu0 0.0
    %89 = vmatpush1.msra.mxu0 0.0
    %90 = vmatprep.subr.mxu0 0.0
    %91 = vmatpush1.msra.mxu0 0.0
    %92 = vmatprep.subr.mxu0 0.0
    %93 = vmatpush1.msra.mxu0 0.0
    %94 = vmatprep.subr.mxu0 0.0
    %95 = vmatpush1.msra.mxu0 0.0
    %96 = vmatprep.subr.mxu0 0.0
    %97 = vmatpush1.msra.mxu0 0.0
    %98 = vmatprep.subr.mxu0 0.0
    %99 = vmatpush1.msra.mxu0 0.0
    %100 = vmatprep.subr.mxu0 0.0
    %101 = vmatpush1.msra.mxu0 0.0
    %102 = vmatprep.mubr.f32.mxu0 0.0
    %103 = vmatmul.mubr.f32.gmra.mrb[0].mxu0 %v33
    %v104 = vpop.f32.mrb[0].mxu0
    %v105 = vadd.f32 %v30, %v104
    %v106 = vpop.f32.mrb[0].mxu0
    %107 = vmatprep.mubr.f32.mxu0 0.0
    %108 = vmatmul.mubr.f32.gmra.mrb[0].mxu0 %v36
    %v109 = vpop.f32.mrb[0].mxu0
    %v110 = vadd.f32 %v30, %v109
    %v111 = vpop.f32.mrb[0].mxu0
    %112 = vdwg.mxu0
    %v113 = vld [vmem:[%s1 + $0x8] sm:$0xff]
    %v114 = vld [vmem:[%s1 + $0x18] sm:$0xff]
    %v115 = vld [vmem:[%s1 + $0x28] sm:$0xff]
    %v116 = vld [vmem:[%s1 + $0x38] sm:$0xff]
    %121 = vrot.lane.b32.xlu0 %v113, 64
    %v122 = vpop.permute.xlu0 %121
    %123 = vrot.lane.b32.xlu0 %v114, 64
    %v124 = vpop.permute.xlu0 %123
    %125 = vrot.lane.b32.xlu0 %v115, 64
    %v126 = vpop.permute.xlu0 %125
    %127 = vrot.lane.b32.xlu0 %v116, 64
    %v128 = vpop.permute.xlu0 %127
    %v134 = vsel %vm31, %v105, 0
    %v137 = vsel %vm31, %v110, 0
    %139 = vmatprep.subr.mxu0 0.0
    %140 = vmatpush1.msra.mxu0 %v122
    %141 = vmatprep.subr.mxu0 0.0
    %142 = vmatpush1.msra.mxu0 %v124
    %143 = vmatprep.subr.mxu0 0.0
    %144 = vmatpush1.msra.mxu0 %v126
    %145 = vmatprep.subr.mxu0 0.0
    %146 = vmatpush1.msra.mxu0 %v128
    %147 = vmatprep.subr.mxu0 0.0
    %148 = vmatpush1.msra.mxu0 0.0
    %149 = vmatprep.subr.mxu0 0.0
    %150 = vmatpush1.msra.mxu0 0.0
    %151 = vmatprep.subr.mxu0 0.0
    %152 = vmatpush1.msra.mxu0 0.0
    %153 = vmatprep.subr.mxu0 0.0
    %154 = vmatpush1.msra.mxu0 0.0
    %155 = vmatprep.subr.mxu0 0.0
    %156 = vmatpush1.msra.mxu0 0.0
    %157 = vmatprep.subr.mxu0 0.0
    %158 = vmatpush1.msra.mxu0 0.0
    %159 = vmatprep.subr.mxu0 0.0
    %160 = vmatpush1.msra.mxu0 0.0
    %161 = vmatprep.subr.mxu0 0.0
    %162 = vmatpush1.msra.mxu0 0.0
    %163 = vmatprep.subr.mxu0 0.0
    %164 = vmatpush1.msra.mxu0 0.0
    %165 = vmatprep.subr.mxu0 0.0
    %166 = vmatpush1.msra.mxu0 0.0
    %167 = vmatprep.subr.mxu0 0.0
    %168 = vmatpush1.msra.mxu0 0.0
    %169 = vmatprep.subr.mxu0 0.0
    %170 = vmatpush1.msra.mxu0 0.0
    %171 = vmatprep.subr.mxu0 0.0
    %172 = vmatpush1.msra.mxu0 0.0
    %173 = vmatprep.subr.mxu0 0.0
    %174 = vmatpush1.msra.mxu0 0.0
    %175 = vmatprep.subr.mxu0 0.0
    %176 = vmatpush1.msra.mxu0 0.0
    %177 = vmatprep.subr.mxu0 0.0
    %178 = vmatpush1.msra.mxu0 0.0
    %179 = vmatprep.subr.mxu0 0.0
    %180 = vmatpush1.msra.mxu0 0.0
    %181 = vmatprep.subr.mxu0 0.0
    %182 = vmatpush1.msra.mxu0 0.0
    %183 = vmatprep.subr.mxu0 0.0
    %184 = vmatpush1.msra.mxu0 0.0
    %185 = vmatprep.subr.mxu0 0.0
    %186 = vmatpush1.msra.mxu0 0.0
    %187 = vmatprep.subr.mxu0 0.0
    %188 = vmatpush1.msra.mxu0 0.0
    %189 = vmatprep.subr.mxu0 0.0
    %190 = vmatpush1.msra.mxu0 0.0
    %191 = vmatprep.subr.mxu0 0.0
    %192 = vmatpush1.msra.mxu0 0.0
    %193 = vmatprep.subr.mxu0 0.0
    %194 = vmatpush1.msra.mxu0 0.0
    %195 = vmatprep.subr.mxu0 0.0
    %196 = vmatpush1.msra.mxu0 0.0
    %197 = vmatprep.subr.mxu0 0.0
    %198 = vmatpush1.msra.mxu0 0.0
    %199 = vmatprep.subr.mxu0 0.0
    %200 = vmatpush1.msra.mxu0 0.0
    %201 = vmatprep.subr.mxu0 0.0
    %202 = vmatpush1.msra.mxu0 0.0
    %203 = vmatprep.mubr.f32.mxu0 0.0
    %204 = vmatmul.mubr.f32.gmra.mrb[0].mxu0 %v134
    %v205 = vpop.f32.mrb[0].mxu0
    %v206 = vadd.f32 0.0, %v205
    %v207 = vpop.f32.mrb[0].mxu0
    %208 = vmatprep.mubr.f32.mxu0 0.0
    %209 = vmatmul.mubr.f32.gmra.mrb[0].mxu0 %v137
    %v210 = vpop.f32.mrb[0].mxu0
    %v211 = vadd.f32 0.0, %v210
    %v212 = vpop.f32.mrb[0].mxu0
    %213 = vdwg.mxu0
    %vm214 = vcmp.gt.f32.partialorder %v206, 0.0
    %vm215 = vcmp.gt.f32.partialorder %v211, 0.0
    %v216 = vsel %vm214, 1, 0
    %v217 = vsel %vm215, 1, 0
    %v218 = vcvt.s32.f32 %v216
    %v219 = vcvt.s32.f32 %v217
    %220 = vrot.lane.b32.xlu0 %v105, 96
    %v221 = vpop.permute.xlu0 %220
    %222 = vrot.lane.b32.xlu0 %v110, 96
    %v223 = vpop.permute.xlu0 %222
    %v224 = vsel %vm31, %v221, 0
    %v226 = vsel %vm31, %v223, 0
    %228 = vmatprep.subr.mxu0 0.0
    %229 = vmatpush1.msra.mxu0 %v122
    %230 = vmatprep.subr.mxu0 0.0
    %231 = vmatpush1.msra.mxu0 %v124
    %232 = vmatprep.subr.mxu0 0.0
    %233 = vmatpush1.msra.mxu0 %v126
    %234 = vmatprep.subr.mxu0 0.0
    %235 = vmatpush1.msra.mxu0 %v128
    %236 = vmatprep.subr.mxu0 0.0
    %237 = vmatpush1.msra.mxu0 0.0
    %238 = vmatprep.subr.mxu0 0.0
    %239 = vmatpush1.msra.mxu0 0.0
    %240 = vmatprep.subr.mxu0 0.0
    %241 = vmatpush1.msra.mxu0 0.0
    %242 = vmatprep.subr.mxu0 0.0
    %243 = vmatpush1.msra.mxu0 0.0
    %244 = vmatprep.subr.mxu0 0.0
    %245 = vmatpush1.msra.mxu0 0.0
    %246 = vmatprep.subr.mxu0 0.0
    %247 = vmatpush1.msra.mxu0 0.0
    %248 = vmatprep.subr.mxu0 0.0
    %249 = vmatpush1.msra.mxu0 0.0
    %250 = vmatprep.subr.mxu0 0.0
    %251 = vmatpush1.msra.mxu0 0.0
    %252 = vmatprep.subr.mxu0 0.0
    %253 = vmatpush1.msra.mxu0 0.0
    %254 = vmatprep.subr.mxu0 0.0
    %255 = vmatpush1.msra.mxu0 0.0
    %256 = vmatprep.subr.mxu0 0.0
    %257 = vmatpush1.msra.mxu0 0.0
    %258 = vmatprep.subr.mxu0 0.0
    %259 = vmatpush1.msra.mxu0 0.0
    %260 = vmatprep.subr.mxu0 0.0
    %261 = vmatpush1.msra.mxu0 0.0
    %262 = vmatprep.subr.mxu0 0.0
    %263 = vmatpush1.msra.mxu0 0.0
    %264 = vmatprep.subr.mxu0 0.0
    %265 = vmatpush1.msra.mxu0 0.0
    %266 = vmatprep.subr.mxu0 0.0
    %267 = vmatpush1.msra.mxu0 0.0
    %268 = vmatprep.subr.mxu0 0.0
    %269 = vmatpush1.msra.mxu0 0.0
    %270 = vmatprep.subr.mxu0 0.0
    %271 = vmatpush1.msra.mxu0 0.0
    %272 = vmatprep.subr.mxu0 0.0
    %273 = vmatpush1.msra.mxu0 0.0
    %274 = vmatprep.subr.mxu0 0.0
    %275 = vmatpush1.msra.mxu0 0.0
    %276 = vmatprep.subr.mxu0 0.0
    %277 = vmatpush1.msra.mxu0 0.0
    %278 = vmatprep.subr.mxu0 0.0
    %279 = vmatpush1.msra.mxu0 0.0
    %280 = vmatprep.subr.mxu0 0.0
    %281 = vmatpush1.msra.mxu0 0.0
    %282 = vmatprep.subr.mxu0 0.0
    %283 = vmatpush1.msra.mxu0 0.0
    %284 = vmatprep.subr.mxu0 0.0
    %285 = vmatpush1.msra.mxu0 0.0
    %286 = vmatprep.subr.mxu0 0.0
    %287 = vmatpush1.msra.mxu0 0.0
    %288 = vmatprep.subr.mxu0 0.0
    %289 = vmatpush1.msra.mxu0 0.0
    %290 = vmatprep.subr.mxu0 0.0
    %291 = vmatpush1.msra.mxu0 0.0
    %292 = vmatprep.mubr.f32.mxu0 0.0
    %293 = vmatmul.mubr.f32.gmra.mrb[0].mxu0 %v224
    %v294 = vpop.f32.mrb[0].mxu0
    %v295 = vadd.f32 0.0, %v294
    %v296 = vpop.f32.mrb[0].mxu0
    %297 = vmatprep.mubr.f32.mxu0 0.0
    %298 = vmatmul.mubr.f32.gmra.mrb[0].mxu0 %v226
    %v299 = vpop.f32.mrb[0].mxu0
    %v300 = vadd.f32 0.0, %v299
    %v301 = vpop.f32.mrb[0].mxu0
    %302 = vdwg.mxu0
    %vm303 = vcmp.gt.f32.partialorder %v295, 0.0
    %vm304 = vcmp.gt.f32.partialorder %v300, 0.0
    %v305 = vsel %vm303, 1, 0
    %v306 = vsel %vm304, 1, 0
    %v307 = vcvt.s32.f32 %v305
    %v308 = vcvt.s32.f32 %v306
    %v309 = vld [vmem:[%s2] sm:$0xff]
    %v310 = vld [vmem:[%s2 + $0x8] sm:$0xff]
    %v311 = vld [vmem:[%s2 + $0x10] sm:$0xff]
    %v312 = vld [vmem:[%s2 + $0x18] sm:$0xff]
    %v313 = vld [vmem:[%s2 + $0x20] sm:$0xff]
    %v314 = vld [vmem:[%s2 + $0x28] sm:$0xff]
    %v315 = vld [vmem:[%s2 + $0x30] sm:$0xff]
    %v316 = vld [vmem:[%s2 + $0x38] sm:$0xff]
    %325 = vrot.lane.b32.xlu0 %v309, 96
    %v326 = vpop.permute.xlu0 %325
    %327 = vrot.lane.b32.xlu0 %v310, 96
    %v328 = vpop.permute.xlu0 %327
    %329 = vrot.lane.b32.xlu0 %v311, 96
    %v330 = vpop.permute.xlu0 %329
    %331 = vrot.lane.b32.xlu0 %v312, 96
    %v332 = vpop.permute.xlu0 %331
    %333 = vrot.lane.b32.xlu0 %v313, 96
    %v334 = vpop.permute.xlu0 %333
    %335 = vrot.lane.b32.xlu0 %v314, 96
    %v336 = vpop.permute.xlu0 %335
    %337 = vrot.lane.b32.xlu0 %v315, 96
    %v338 = vpop.permute.xlu0 %337
    %339 = vrot.lane.b32.xlu0 %v316, 96
    %v340 = vpop.permute.xlu0 %339
    %vm349 = vcmask 523264
    %v351 = vsel %vm349, %v218, 0
    %v354 = vsel %vm349, %v219, 0
    %356 = vmatprep.subr.mxu0 0.0
    %357 = vmatpush1.msra.mxu0 %v326
    %358 = vmatprep.subr.mxu0 0.0
    %359 = vmatpush1.msra.mxu0 %v328
    %360 = vmatprep.subr.mxu0 0.0
    %361 = vmatpush1.msra.mxu0 %v330
    %362 = vmatprep.subr.mxu0 0.0
    %363 = vmatpush1.msra.mxu0 %v332
    %364 = vmatprep.subr.mxu0 0.0
    %365 = vmatpush1.msra.mxu0 %v334
    %366 = vmatprep.subr.mxu0 0.0
    %367 = vmatpush1.msra.mxu0 %v336
    %368 = vmatprep.subr.mxu0 0.0
    %369 = vmatpush1.msra.mxu0 %v338
    %370 = vmatprep.subr.mxu0 0.0
    %371 = vmatpush1.msra.mxu0 %v340
    %372 = vmatprep.subr.mxu0 0.0
    %373 = vmatpush1.msra.mxu0 0.0
    %374 = vmatprep.subr.mxu0 0.0
    %375 = vmatpush1.msra.mxu0 0.0
    %376 = vmatprep.subr.mxu0 0.0
    %377 = vmatpush1.msra.mxu0 0.0
    %378 = vmatprep.subr.mxu0 0.0
    %379 = vmatpush1.msra.mxu0 0.0
    %380 = vmatprep.subr.mxu0 0.0
    %381 = vmatpush1.msra.mxu0 0.0
    %382 = vmatprep.subr.mxu0 0.0
    %383 = vmatpush1.msra.mxu0 0.0
    %384 = vmatprep.subr.mxu0 0.0
    %385 = vmatpush1.msra.mxu0 0.0
    %386 = vmatprep.subr.mxu0 0.0
    %387 = vmatpush1.msra.mxu0 0.0
    %388 = vmatprep.subr.mxu0 0.0
    %389 = vmatpush1.msra.mxu0 0.0
    %390 = vmatprep.subr.mxu0 0.0
    %391 = vmatpush1.msra.mxu0 0.0
    %392 = vmatprep.subr.mxu0 0.0
    %393 = vmatpush1.msra.mxu0 0.0
    %394 = vmatprep.subr.mxu0 0.0
    %395 = vmatpush1.msra.mxu0 0.0
    %396 = vmatprep.subr.mxu0 0.0
    %397 = vmatpush1.msra.mxu0 0.0
    %398 = vmatprep.subr.mxu0 0.0
    %399 = vmatpush1.msra.mxu0 0.0
    %400 = vmatprep.subr.mxu0 0.0
    %401 = vmatpush1.msra.mxu0 0.0
    %402 = vmatprep.subr.mxu0 0.0
    %403 = vmatpush1.msra.mxu0 0.0
    %404 = vmatprep.subr.mxu0 0.0
    %405 = vmatpush1.msra.mxu0 0.0
    %406 = vmatprep.subr.mxu0 0.0
    %407 = vmatpush1.msra.mxu0 0.0
    %408 = vmatprep.subr.mxu0 0.0
    %409 = vmatpush1.msra.mxu0 0.0
    %410 = vmatprep.subr.mxu0 0.0
    %411 = vmatpush1.msra.mxu0 0.0
    %412 = vmatprep.subr.mxu0 0.0
    %413 = vmatpush1.msra.mxu0 0.0
    %414 = vmatprep.subr.mxu0 0.0
    %415 = vmatpush1.msra.mxu0 0.0
    %416 = vmatprep.subr.mxu0 0.0
    %417 = vmatpush1.msra.mxu0 0.0
    %418 = vmatprep.subr.mxu0 0.0
    %419 = vmatpush1.msra.mxu0 0.0
    %420 = vmatprep.mubr.f32.mxu0 0.0
    %421 = vmatmul.mubr.f32.gmra.mrb[0].mxu0 %v351
    %v422 = vpop.f32.mrb[0].mxu0
    %v423 = vadd.f32 0.0, %v422
    %v424 = vpop.f32.mrb[0].mxu0
    %425 = vmatprep.mubr.f32.mxu0 0.0
    %426 = vmatmul.mubr.f32.gmra.mrb[0].mxu0 %v354
    %v427 = vpop.f32.mrb[0].mxu0
    %v428 = vadd.f32 0.0, %v427
    %v429 = vpop.f32.mrb[0].mxu0
    %430 = vdwg.mxu0
    %v432 = vsel %vm349, %v307, 0
    %v435 = vsel %vm349, %v308, 0
    %437 = vmatprep.subr.mxu0 0.0
    %438 = vmatpush1.msra.mxu0 %v326
    %439 = vmatprep.subr.mxu0 0.0
    %440 = vmatpush1.msra.mxu0 %v328
    %441 = vmatprep.subr.mxu0 0.0
    %442 = vmatpush1.msra.mxu0 %v330
    %443 = vmatprep.subr.mxu0 0.0
    %444 = vmatpush1.msra.mxu0 %v332
    %445 = vmatprep.subr.mxu0 0.0
    %446 = vmatpush1.msra.mxu0 %v334
    %447 = vmatprep.subr.mxu0 0.0
    %448 = vmatpush1.msra.mxu0 %v336
    %449 = vmatprep.subr.mxu0 0.0
    %450 = vmatpush1.msra.mxu0 %v338
    %451 = vmatprep.subr.mxu0 0.0
    %452 = vmatpush1.msra.mxu0 %v340
    %453 = vmatprep.subr.mxu0 0.0
    %454 = vmatpush1.msra.mxu0 0.0
    %455 = vmatprep.subr.mxu0 0.0
    %456 = vmatpush1.msra.mxu0 0.0
    %457 = vmatprep.subr.mxu0 0.0
    %458 = vmatpush1.msra.mxu0 0.0
    %459 = vmatprep.subr.mxu0 0.0
    %460 = vmatpush1.msra.mxu0 0.0
    %461 = vmatprep.subr.mxu0 0.0
    %462 = vmatpush1.msra.mxu0 0.0
    %463 = vmatprep.subr.mxu0 0.0
    %464 = vmatpush1.msra.mxu0 0.0
    %465 = vmatprep.subr.mxu0 0.0
    %466 = vmatpush1.msra.mxu0 0.0
    %467 = vmatprep.subr.mxu0 0.0
    %468 = vmatpush1.msra.mxu0 0.0
    %469 = vmatprep.subr.mxu0 0.0
    %470 = vmatpush1.msra.mxu0 0.0
    %471 = vmatprep.subr.mxu0 0.0
    %472 = vmatpush1.msra.mxu0 0.0
    %473 = vmatprep.subr.mxu0 0.0
    %474 = vmatpush1.msra.mxu0 0.0
    %475 = vmatprep.subr.mxu0 0.0
    %476 = vmatpush1.msra.mxu0 0.0
    %477 = vmatprep.subr.mxu0 0.0
    %478 = vmatpush1.msra.mxu0 0.0
    %479 = vmatprep.subr.mxu0 0.0
    %480 = vmatpush1.msra.mxu0 0.0
    %481 = vmatprep.subr.mxu0 0.0
    %482 = vmatpush1.msra.mxu0 0.0
    %483 = vmatprep.subr.mxu0 0.0
    %484 = vmatpush1.msra.mxu0 0.0
    %485 = vmatprep.subr.mxu0 0.0
    %486 = vmatpush1.msra.mxu0 0.0
    %487 = vmatprep.subr.mxu0 0.0
    %488 = vmatpush1.msra.mxu0 0.0
    %489 = vmatprep.subr.mxu0 0.0
    %490 = vmatpush1.msra.mxu0 0.0
    %491 = vmatprep.subr.mxu0 0.0
    %492 = vmatpush1.msra.mxu0 0.0
    %493 = vmatprep.subr.mxu0 0.0
    %494 = vmatpush1.msra.mxu0 0.0
    %495 = vmatprep.subr.mxu0 0.0
    %496 = vmatpush1.msra.mxu0 0.0
    %497 = vmatprep.subr.mxu0 0.0
    %498 = vmatpush1.msra.mxu0 0.0
    %499 = vmatprep.subr.mxu0 0.0
    %500 = vmatpush1.msra.mxu0 0.0
    %501 = vmatprep.mubr.f32.mxu0 0.0
    %502 = vmatmul.mubr.f32.gmra.mrb[0].mxu0 %v432
    %v503 = vpop.f32.mrb[0].mxu0
    %v504 = vadd.f32 0.0, %v503
    %v505 = vpop.f32.mrb[0].mxu0
    %506 = vmatprep.mubr.f32.mxu0 0.0
    %507 = vmatmul.mubr.f32.gmra.mrb[0].mxu0 %v435
    %v508 = vpop.f32.mrb[0].mxu0
    %v509 = vadd.f32 0.0, %v508
    %v510 = vpop.f32.mrb[0].mxu0
    %511 = vdwg.mxu0
    %v512 = vcvt.f32.s32.ties.to.even %v423
    %v513 = vcvt.f32.s32.ties.to.even %v428
    %v514 = vand.u32 %v512, 15
    %v515 = vand.u32 %v513, 15
    %516 = vxpose.xlu0.b32.start [1/16] %v504, 128
    %517 = vxpose.xlu0.b32.cont [2/16] %v509, 128
    %518 = vxpose.xlu0.b32.cont [3/16] 0.0, 128
    %519 = vxpose.xlu0.b32.cont [4/16] 0.0, 128
    %520 = vxpose.xlu0.b32.cont [5/16] 0.0, 128
    %521 = vxpose.xlu0.b32.cont [6/16] 0.0, 128
    %522 = vxpose.xlu0.b32.cont [7/16] 0.0, 128
    %523 = vxpose.xlu0.b32.cont [8/16] 0.0, 128
    %524 = vxpose.xlu0.b32.cont [9/16] 0.0, 128
    %525 = vxpose.xlu0.b32.cont [10/16] 0.0, 128
    %526 = vxpose.xlu0.b32.cont [11/16] 0.0, 128
    %527 = vxpose.xlu0.b32.cont [12/16] 0.0, 128
    %528 = vxpose.xlu0.b32.cont [13/16] 0.0, 128
    %529 = vxpose.xlu0.b32.cont [14/16] 0.0, 128
    %530 = vxpose.xlu0.b32.cont [15/16] 0.0, 128
    %531 = vxpose.xlu0.b32.end [16/16] 0.0, 128
    %v532 = vpop.trf.xlu0
    %v533 = vpop.trf.xlu0
    %v534 = vpop.trf.xlu0
    %v535 = vpop.trf.xlu0
    %v536 = vpop.trf.xlu0
    %v537 = vpop.trf.xlu0
    %v538 = vpop.trf.xlu0
    %v539 = vpop.trf.xlu0
    %v540 = vpop.trf.xlu0
    %v541 = vpop.trf.xlu0
    %v542 = vpop.trf.xlu0
    %v543 = vpop.trf.xlu0
    %v544 = vpop.trf.xlu0
    %v545 = vpop.trf.xlu0
    %v546 = vpop.trf.xlu0
    %v547 = vpop.trf.xlu0
    %v548 = vcvt.f32.s32.ties.to.even %v532
    %v549 = vcvt.f32.s32.ties.to.even %v533
    %v550 = vand.u32 %v548, 15
    %v551 = vand.u32 %v549, 15
    %v552 = vlaneseq
    %v553 = vshrl.u32 %v552, 7
    %v554 = vlaneseq
    %v555 = vand.u32 %v554, 127
    %vm556 = vcmp.le.s32.totalorder %v553, %v555
    %557 = vset.pattern.permute.xlu0 0
    %558 = vperm.xlu0 %557, %v514
    %v559 = vpop.permute.xlu0 %558
    %v560 = vlaneseq
    %v561 = vshrl.u32 %v560, 7
    %v562 = vsub.s32 0, %v561
    %v563 = vrot.slane %v550, %v562
    %vm564 = vcmp.eq.s32.totalorder %v559, %v563
    %565 = vset.pattern.permute.xlu0 1
    %566 = vperm.xlu0 %565, %v514
    %v567 = vpop.permute.xlu0 %566
    %v568 = vlaneseq
    %v569 = vshrl.u32 %v568, 7
    %v570 = vsub.s32 1, %v569
    %v571 = vrot.slane %v550, %v570
    %vm572 = vcmp.eq.s32.totalorder %v567, %v571
    %vm573 = vmor %vm564, %vm572
    %vm574 = vcmask 64512
    %v575 = vsel %vm574, %v105, 0
    %v577 = vsel %vm574, %v221, 0
    %579 = vmatprep.subr.mxu0 0.0
    %580 = vmatpush1.xpose.msra.mxu0 %v577
    %581 = vmatprep.subr.mxu0 0.0
    %582 = vmatpush1.xpose.msra.mxu0 0.0
    %583 = vmatprep.subr.mxu0 0.0
    %584 = vmatpush1.xpose.msra.mxu0 0.0
    %585 = vmatprep.subr.mxu0 0.0
    %586 = vmatpush1.xpose.msra.mxu0 0.0
    %587 = vmatprep.subr.mxu0 0.0
    %588 = vmatpush1.xpose.msra.mxu0 0.0
    %589 = vmatprep.subr.mxu0 0.0
    %590 = vmatpush1.xpose.msra.mxu0 0.0
    %591 = vmatprep.subr.mxu0 0.0
    %592 = vmatpush1.xpose.msra.mxu0 0.0
    %593 = vmatprep.subr.mxu0 0.0
    %594 = vmatpush1.xpose.msra.mxu0 0.0
    %595 = vmatprep.subr.mxu0 0.0
    %596 = vmatpush1.xpose.msra.mxu0 0.0
    %597 = vmatprep.subr.mxu0 0.0
    %598 = vmatpush1.xpose.msra.mxu0 0.0
    %599 = vmatprep.subr.mxu0 0.0
    %600 = vmatpush1.xpose.msra.mxu0 0.0
    %601 = vmatprep.subr.mxu0 0.0
    %602 = vmatpush1.xpose.msra.mxu0 0.0
    %603 = vmatprep.subr.mxu0 0.0
    %604 = vmatpush1.xpose.msra.mxu0 0.0
    %605 = vmatprep.subr.mxu0 0.0
    %606 = vmatpush1.xpose.msra.mxu0 0.0
    %607 = vmatprep.subr.mxu0 0.0
    %608 = vmatpush1.xpose.msra.mxu0 0.0
    %609 = vmatprep.subr.mxu0 0.0
    %610 = vmatpush1.xpose.msra.mxu0 0.0
    %611 = vmatprep.subr.mxu0 0.0
    %612 = vmatpush1.xpose.msra.mxu0 0.0
    %613 = vmatprep.subr.mxu0 0.0
    %614 = vmatpush1.xpose.msra.mxu0 0.0
    %615 = vmatprep.subr.mxu0 0.0
    %616 = vmatpush1.xpose.msra.mxu0 0.0
    %617 = vmatprep.subr.mxu0 0.0
    %618 = vmatpush1.xpose.msra.mxu0 0.0
    %619 = vmatprep.subr.mxu0 0.0
    %620 = vmatpush1.xpose.msra.mxu0 0.0
    %621 = vmatprep.subr.mxu0 0.0
    %622 = vmatpush1.xpose.msra.mxu0 0.0
    %623 = vmatprep.subr.mxu0 0.0
    %624 = vmatpush1.xpose.msra.mxu0 0.0
    %625 = vmatprep.subr.mxu0 0.0
    %626 = vmatpush1.xpose.msra.mxu0 0.0
    %627 = vmatprep.subr.mxu0 0.0
    %628 = vmatpush1.xpose.msra.mxu0 0.0
    %629 = vmatprep.subr.mxu0 0.0
    %630 = vmatpush1.xpose.msra.mxu0 0.0
    %631 = vmatprep.subr.mxu0 0.0
    %632 = vmatpush1.xpose.msra.mxu0 0.0
    %633 = vmatprep.subr.mxu0 0.0
    %634 = vmatpush1.xpose.msra.mxu0 0.0
    %635 = vmatprep.subr.mxu0 0.0
    %636 = vmatpush1.xpose.msra.mxu0 0.0
    %637 = vmatprep.subr.mxu0 0.0
    %638 = vmatpush1.xpose.msra.mxu0 0.0
    %639 = vmatprep.subr.mxu0 0.0
    %640 = vmatpush1.xpose.msra.mxu0 0.0
    %641 = vmatprep.subr.mxu0 0.0
    %642 = vmatpush1.xpose.msra.mxu0 0.0
    %643 = vmatprep.mubr.f32.mxu0 0.0
    %644 = vmatmul.mubr.f32.gmra.mrb[0].mxu0 %v575
    %v645 = vpop.f32.mrb[0].mxu0
    %v646 = vadd.f32 0.0, %v645
    %v647 = vpop.f32.mrb[0].mxu0
    %648 = vdwg.mxu0
    %v649 = vsel %vm573, %v646, 0.0
    %650 = vxpose.xlu0.b32.start [1/16] %v649, 128
    %651 = vxpose.xlu0.b32.cont [2/16] 0.0, 128
    %652 = vxpose.xlu0.b32.cont [3/16] 0.0, 128
    %653 = vxpose.xlu0.b32.cont [4/16] 0.0, 128
    %654 = vxpose.xlu0.b32.cont [5/16] 0.0, 128
    %655 = vxpose.xlu0.b32.cont [6/16] 0.0, 128
    %656 = vxpose.xlu0.b32.cont [7/16] 0.0, 128
    %657 = vxpose.xlu0.b32.cont [8/16] 0.0, 128
    %658 = vxpose.xlu0.b32.cont [9/16] 0.0, 128
    %659 = vxpose.xlu0.b32.cont [10/16] 0.0, 128
    %660 = vxpose.xlu0.b32.cont [11/16] 0.0, 128
    %661 = vxpose.xlu0.b32.cont [12/16] 0.0, 128
    %662 = vxpose.xlu0.b32.cont [13/16] 0.0, 128
    %663 = vxpose.xlu0.b32.cont [14/16] 0.0, 128
    %664 = vxpose.xlu0.b32.cont [15/16] 0.0, 128
    %665 = vxpose.xlu0.b32.end [16/16] 0.0, 128
    %v666 = vpop.trf.xlu0
    %v667 = vpop.trf.xlu0
    %v668 = vpop.trf.xlu0
    %v669 = vpop.trf.xlu0
    %v670 = vpop.trf.xlu0
    %v671 = vpop.trf.xlu0
    %v672 = vpop.trf.xlu0
    %v673 = vpop.trf.xlu0
    %v674 = vpop.trf.xlu0
    %v675 = vpop.trf.xlu0
    %v676 = vpop.trf.xlu0
    %v677 = vpop.trf.xlu0
    %v678 = vpop.trf.xlu0
    %v679 = vpop.trf.xlu0
    %v680 = vpop.trf.xlu0
    %v681 = vpop.trf.xlu0
    %v682 = vsel %vm556, %v649, %v666
    %v683 = vmul.f32 %v682, 0.35355338
    %v684 = vsel %vm574, %v683, -inf
    %685 = vmax.xlane.f32.xlu0 %v684
    %v686 = vpop.xlane.xlu0 %685
    %v687 = vsub.f32 %v683, %v686
    %v688 = vmul.f32 %v687, 1.442695
    %v689 = vpow.pop %v688
    %v690 = vsel %vm574, %v689, 0.0
    %691 = vadd.xlane.f32.xlu0 %v690
    %v692 = vpop.xlane.xlu0 %691
    %v693 = vrcp.pop %v692
    %v694 = vmul.f32 %v689, %v693
    %695 = vrot.lane.b32.xlu0 %v105, 64
    %v696 = vpop.permute.xlu0 %695
    %v699 = vsel %vm574, %v694, 0
    %701 = vmatprep.subr.mxu0 0.0
    %702 = vmatpush1.msra.mxu0 %v696
    %703 = vmatprep.subr.mxu0 0.0
    %704 = vmatpush1.msra.mxu0 0.0
    %705 = vmatprep.subr.mxu0 0.0
    %706 = vmatpush1.msra.mxu0 0.0
    %707 = vmatprep.subr.mxu0 0.0
    %708 = vmatpush1.msra.mxu0 0.0
    %709 = vmatprep.subr.mxu0 0.0
    %710 = vmatpush1.msra.mxu0 0.0
    %711 = vmatprep.subr.mxu0 0.0
    %712 = vmatpush1.msra.mxu0 0.0
    %713 = vmatprep.subr.mxu0 0.0
    %714 = vmatpush1.msra.mxu0 0.0
    %715 = vmatprep.subr.mxu0 0.0
    %716 = vmatpush1.msra.mxu0 0.0
    %717 = vmatprep.subr.mxu0 0.0
    %718 = vmatpush1.msra.mxu0 0.0
    %719 = vmatprep.subr.mxu0 0.0
    %720 = vmatpush1.msra.mxu0 0.0
    %721 = vmatprep.subr.mxu0 0.0
    %722 = vmatpush1.msra.mxu0 0.0
    %723 = vmatprep.subr.mxu0 0.0
    %724 = vmatpush1.msra.mxu0 0.0
    %725 = vmatprep.subr.mxu0 0.0
    %726 = vmatpush1.msra.mxu0 0.0
    %727 = vmatprep.subr.mxu0 0.0
    %728 = vmatpush1.msra.mxu0 0.0
    %729 = vmatprep.subr.mxu0 0.0
    %730 = vmatpush1.msra.mxu0 0.0
    %731 = vmatprep.subr.mxu0 0.0
    %732 = vmatpush1.msra.mxu0 0.0
    %733 = vmatprep.subr.mxu0 0.0
    %734 = vmatpush1.msra.mxu0 0.0
    %735 = vmatprep.subr.mxu0 0.0
    %736 = vmatpush1.msra.mxu0 0.0
    %737 = vmatprep.subr.mxu0 0.0
    %738 = vmatpush1.msra.mxu0 0.0
    %739 = vmatprep.subr.mxu0 0.0
    %740 = vmatpush1.msra.mxu0 0.0
    %741 = vmatprep.subr.mxu0 0.0
    %742 = vmatpush1.msra.mxu0 0.0
    %743 = vmatprep.subr.mxu0 0.0
    %744 = vmatpush1.msra.mxu0 0.0
    %745 = vmatprep.subr.mxu0 0.0
    %746 = vmatpush1.msra.mxu0 0.0
    %747 = vmatprep.subr.mxu0 0.0
    %748 = vmatpush1.msra.mxu0 0.0
    %749 = vmatprep.subr.mxu0 0.0
    %750 = vmatpush1.msra.mxu0 0.0
    %751 = vmatprep.subr.mxu0 0.0
    %752 = vmatpush1.msra.mxu0 0.0
    %753 = vmatprep.subr.mxu0 0.0
    %754 = vmatpush1.msra.mxu0 0.0
    %755 = vmatprep.subr.mxu0 0.0
    %756 = vmatpush1.msra.mxu0 0.0
    %757 = vmatprep.subr.mxu0 0.0
    %758 = vmatpush1.msra.mxu0 0.0
    %759 = vmatprep.subr.mxu0 0.0
    %760 = vmatpush1.msra.mxu0 0.0
    %761 = vmatprep.subr.mxu0 0.0
    %762 = vmatpush1.msra.mxu0 0.0
    %763 = vmatprep.subr.mxu0 0.0
    %764 = vmatpush1.msra.mxu0 0.0
    %765 = vmatprep.mubr.f32.mxu0 0.0
    %766 = vmatmul.mubr.f32.gmra.mrb[0].mxu0 %v699
    %v767 = vpop.f32.mrb[0].mxu0
    %v768 = vadd.f32 0.0, %v767
    %v769 = vpop.f32.mrb[0].mxu0
    %770 = vdwg.mxu0
    %771 = vst.msk [vmem:[#allocation2] sm:$0xff] %vm574, %v768
    %772 = vset.pattern.permute.xlu0 2
    %773 = vperm.xlu0 %772, %v514
    %v774 = vpop.permute.xlu0 %773
    %v775 = vlaneseq
    %v776 = vshrl.u32 %v775, 7
    %v777 = vsub.s32 2, %v776
    %v778 = vrot.slane %v550, %v777
    %vm779 = vcmp.eq.s32.totalorder %v774, %v778
    %780 = vset.pattern.permute.xlu0 3
    %781 = vperm.xlu0 %780, %v514
    %v782 = vpop.permute.xlu0 %781
    %v783 = vlaneseq
    %v784 = vshrl.u32 %v783, 7
    %v785 = vsub.s32 3, %v784
    %v786 = vrot.slane %v550, %v785
    %vm787 = vcmp.eq.s32.totalorder %v782, %v786
    %vm788 = vmor %vm779, %vm787
    %789 = vrot.lane.b32.xlu0 %v105, 120
    %v790 = vpop.permute.xlu0 %789
    %791 = vrot.lane.b32.xlu0 %v105, 88
    %v792 = vpop.permute.xlu0 %791
    %v793 = vsel %vm574, %v790, 0
    %v795 = vsel %vm574, %v792, 0
    %797 = vmatprep.subr.mxu0 0.0
    %798 = vmatpush1.xpose.msra.mxu0 %v795
    %799 = vmatprep.subr.mxu0 0.0
    %800 = vmatpush1.xpose.msra.mxu0 0.0
    %801 = vmatprep.subr.mxu0 0.0
    %802 = vmatpush1.xpose.msra.mxu0 0.0
    %803 = vmatprep.subr.mxu0 0.0
    %804 = vmatpush1.xpose.msra.mxu0 0.0
    %805 = vmatprep.subr.mxu0 0.0
    %806 = vmatpush1.xpose.msra.mxu0 0.0
    %807 = vmatprep.subr.mxu0 0.0
    %808 = vmatpush1.xpose.msra.mxu0 0.0
    %809 = vmatprep.subr.mxu0 0.0
    %810 = vmatpush1.xpose.msra.mxu0 0.0
    %811 = vmatprep.subr.mxu0 0.0
    %812 = vmatpush1.xpose.msra.mxu0 0.0
    %813 = vmatprep.subr.mxu0 0.0
    %814 = vmatpush1.xpose.msra.mxu0 0.0
    %815 = vmatprep.subr.mxu0 0.0
    %816 = vmatpush1.xpose.msra.mxu0 0.0
    %817 = vmatprep.subr.mxu0 0.0
    %818 = vmatpush1.xpose.msra.mxu0 0.0
    %819 = vmatprep.subr.mxu0 0.0
    %820 = vmatpush1.xpose.msra.mxu0 0.0
    %821 = vmatprep.subr.mxu0 0.0
    %822 = vmatpush1.xpose.msra.mxu0 0.0
    %823 = vmatprep.subr.mxu0 0.0
    %824 = vmatpush1.xpose.msra.mxu0 0.0
    %825 = vmatprep.subr.mxu0 0.0
    %826 = vmatpush1.xpose.msra.mxu0 0.0
    %827 = vmatprep.subr.mxu0 0.0
    %828 = vmatpush1.xpose.msra.mxu0 0.0
    %829 = vmatprep.subr.mxu0 0.0
    %830 = vmatpush1.xpose.msra.mxu0 0.0
    %831 = vmatprep.subr.mxu0 0.0
    %832 = vmatpush1.xpose.msra.mxu0 0.0
    %833 = vmatprep.subr.mxu0 0.0
    %834 = vmatpush1.xpose.msra.mxu0 0.0
    %835 = vmatprep.subr.mxu0 0.0
    %836 = vmatpush1.xpose.msra.mxu0 0.0
    %837 = vmatprep.subr.mxu0 0.0
    %838 = vmatpush1.xpose.msra.mxu0 0.0
    %839 = vmatprep.subr.mxu0 0.0
    %840 = vmatpush1.xpose.msra.mxu0 0.0
    %841 = vmatprep.subr.mxu0 0.0
    %842 = vmatpush1.xpose.msra.mxu0 0.0
    %843 = vmatprep.subr.mxu0 0.0
    %844 = vmatpush1.xpose.msra.mxu0 0.0
    %845 = vmatprep.subr.mxu0 0.0
    %846 = vmatpush1.xpose.msra.mxu0 0.0
    %847 = vmatprep.subr.mxu0 0.0
    %848 = vmatpush1.xpose.msra.mxu0 0.0
    %849 = vmatprep.subr.mxu0 0.0
    %850 = vmatpush1.xpose.msra.mxu0 0.0
    %851 = vmatprep.subr.mxu0 0.0
    %852 = vmatpush1.xpose.msra.mxu0 0.0
    %853 = vmatprep.subr.mxu0 0.0
    %854 = vmatpush1.xpose.msra.mxu0 0.0
    %855 = vmatprep.subr.mxu0 0.0
    %856 = vmatpush1.xpose.msra.mxu0 0.0
    %857 = vmatprep.subr.mxu0 0.0
    %858 = vmatpush1.xpose.msra.mxu0 0.0
    %859 = vmatprep.subr.mxu0 0.0
    %860 = vmatpush1.xpose.msra.mxu0 0.0
    %861 = vmatprep.mubr.f32.mxu0 0.0
    %862 = vmatmul.mubr.f32.gmra.mrb[0].mxu0 %v793
    %v863 = vpop.f32.mrb[0].mxu0
    %v864 = vadd.f32 0.0, %v863
    %v865 = vpop.f32.mrb[0].mxu0
    %866 = vdwg.mxu0
    %v867 = vsel %vm788, %v864, 0.0
    %868 = vxpose.xlu0.b32.start [1/16] %v867, 128
    %869 = vxpose.xlu0.b32.cont [2/16] 0.0, 128
    %870 = vxpose.xlu0.b32.cont [3/16] 0.0, 128
    %871 = vxpose.xlu0.b32.cont [4/16] 0.0, 128
    %872 = vxpose.xlu0.b32.cont [5/16] 0.0, 128
    %873 = vxpose.xlu0.b32.cont [6/16] 0.0, 128
    %874 = vxpose.xlu0.b32.cont [7/16] 0.0, 128
    %875 = vxpose.xlu0.b32.cont [8/16] 0.0, 128
    %876 = vxpose.xlu0.b32.cont [9/16] 0.0, 128
    %877 = vxpose.xlu0.b32.cont [10/16] 0.0, 128
    %878 = vxpose.xlu0.b32.cont [11/16] 0.0, 128
    %879 = vxpose.xlu0.b32.cont [12/16] 0.0, 128
    %880 = vxpose.xlu0.b32.cont [13/16] 0.0, 128
    %881 = vxpose.xlu0.b32.cont [14/16] 0.0, 128
    %882 = vxpose.xlu0.b32.cont [15/16] 0.0, 128
    %883 = vxpose.xlu0.b32.end [16/16] 0.0, 128
    %v884 = vpop.trf.xlu0
    %v885 = vpop.trf.xlu0
    %v886 = vpop.trf.xlu0
    %v887 = vpop.trf.xlu0
    %v888 = vpop.trf.xlu0
    %v889 = vpop.trf.xlu0
    %v890 = vpop.trf.xlu0
    %v891 = vpop.trf.xlu0
    %v892 = vpop.trf.xlu0
    %v893 = vpop.trf.xlu0
    %v894 = vpop.trf.xlu0
    %v895 = vpop.trf.xlu0
    %v896 = vpop.trf.xlu0
    %v897 = vpop.trf.xlu0
    %v898 = vpop.trf.xlu0
    %v899 = vpop.trf.xlu0
    %v900 = vsel %vm556, %v867, %v884
    %v901 = vmul.f32 %v900, 0.35355338
    %v902 = vsel %vm574, %v901, -inf
    %903 = vmax.xlane.f32.xlu0 %v902
    %v904 = vpop.xlane.xlu0 %903
    %v905 = vsub.f32 %v901, %v904
    %v906 = vmul.f32 %v905, 1.442695
    %v907 = vpow.pop %v906
    %v908 = vsel %vm574, %v907, 0.0
    %909 = vadd.xlane.f32.xlu0 %v908
    %v910 = vpop.xlane.xlu0 %909
    %v911 = vrcp.pop %v910
    %v912 = vmul.f32 %v907, %v911
    %913 = vrot.lane.b32.xlu0 %v105, 56
    %v914 = vpop.permute.xlu0 %913
    %v917 = vsel %vm574, %v912, 0
    %919 = vmatprep.subr.mxu0 0.0
    %920 = vmatpush1.msra.mxu0 %v914
    %921 = vmatprep.subr.mxu0 0.0
    %922 = vmatpush1.msra.mxu0 0.0
    %923 = vmatprep.subr.mxu0 0.0
    %924 = vmatpush1.msra.mxu0 0.0
    %925 = vmatprep.subr.mxu0 0.0
    %926 = vmatpush1.msra.mxu0 0.0
    %927 = vmatprep.subr.mxu0 0.0
    %928 = vmatpush1.msra.mxu0 0.0
    %929 = vmatprep.subr.mxu0 0.0
    %930 = vmatpush1.msra.mxu0 0.0
    %931 = vmatprep.subr.mxu0 0.0
    %932 = vmatpush1.msra.mxu0 0.0
    %933 = vmatprep.subr.mxu0 0.0
    %934 = vmatpush1.msra.mxu0 0.0
    %935 = vmatprep.subr.mxu0 0.0
    %936 = vmatpush1.msra.mxu0 0.0
    %937 = vmatprep.subr.mxu0 0.0
    %938 = vmatpush1.msra.mxu0 0.0
    %939 = vmatprep.subr.mxu0 0.0
    %940 = vmatpush1.msra.mxu0 0.0
    %941 = vmatprep.subr.mxu0 0.0
    %942 = vmatpush1.msra.mxu0 0.0
    %943 = vmatprep.subr.mxu0 0.0
    %944 = vmatpush1.msra.mxu0 0.0
    %945 = vmatprep.subr.mxu0 0.0
    %946 = vmatpush1.msra.mxu0 0.0
    %947 = vmatprep.subr.mxu0 0.0
    %948 = vmatpush1.msra.mxu0 0.0
    %949 = vmatprep.subr.mxu0 0.0
    %950 = vmatpush1.msra.mxu0 0.0
    %951 = vmatprep.subr.mxu0 0.0
    %952 = vmatpush1.msra.mxu0 0.0
    %953 = vmatprep.subr.mxu0 0.0
    %954 = vmatpush1.msra.mxu0 0.0
    %955 = vmatprep.subr.mxu0 0.0
    %956 = vmatpush1.msra.mxu0 0.0
    %957 = vmatprep.subr.mxu0 0.0
    %958 = vmatpush1.msra.mxu0 0.0
    %959 = vmatprep.subr.mxu0 0.0
    %960 = vmatpush1.msra.mxu0 0.0
    %961 = vmatprep.subr.mxu0 0.0
    %962 = vmatpush1.msra.mxu0 0.0
    %963 = vmatprep.subr.mxu0 0.0
    %964 = vmatpush1.msra.mxu0 0.0
    %965 = vmatprep.subr.mxu0 0.0
    %966 = vmatpush1.msra.mxu0 0.0
    %967 = vmatprep.subr.mxu0 0.0
    %968 = vmatpush1.msra.mxu0 0.0
    %969 = vmatprep.subr.mxu0 0.0
    %970 = vmatpush1.msra.mxu0 0.0
    %971 = vmatprep.subr.mxu0 0.0
    %972 = vmatpush1.msra.mxu0 0.0
    %973 = vmatprep.subr.mxu0 0.0
    %974 = vmatpush1.msra.mxu0 0.0
    %975 = vmatprep.subr.mxu0 0.0
    %976 = vmatpush1.msra.mxu0 0.0
    %977 = vmatprep.subr.mxu0 0.0
    %978 = vmatpush1.msra.mxu0 0.0
    %979 = vmatprep.subr.mxu0 0.0
    %980 = vmatpush1.msra.mxu0 0.0
    %981 = vmatprep.subr.mxu0 0.0
    %982 = vmatpush1.msra.mxu0 0.0
    %983 = vmatprep.mubr.f32.mxu0 0.0
    %984 = vmatmul.mubr.f32.gmra.mrb[0].mxu0 %v917
    %v985 = vpop.f32.mrb[0].mxu0
    %v986 = vadd.f32 0.0, %v985
    %v987 = vpop.f32.mrb[0].mxu0
    %988 = vdwg.mxu0
    %990 = vrot.lane.b32.xlu0 %v986, 8
    %v991 = vpop.permute.xlu0 %990
    %vm993 = vcmask 130112
    %994 = vst.msk [vmem:[#allocation2] sm:$0xff] %vm993, %v991
    %995 = vset.pattern.permute.xlu0 4
    %996 = vperm.xlu0 %995, %v514
    %v997 = vpop.permute.xlu0 %996
    %v998 = vlaneseq
    %v999 = vshrl.u32 %v998, 7
    %v1000 = vsub.s32 4, %v999
    %v1001 = vrot.slane %v550, %v1000
    %vm1002 = vcmp.eq.s32.totalorder %v997, %v1001
    %1003 = vset.pattern.permute.xlu0 5
    %1004 = vperm.xlu0 %1003, %v514
    %v1005 = vpop.permute.xlu0 %1004
    %v1006 = vlaneseq
    %v1007 = vshrl.u32 %v1006, 7
    %v1008 = vsub.s32 5, %v1007
    %v1009 = vrot.slane %v550, %v1008
    %vm1010 = vcmp.eq.s32.totalorder %v1005, %v1009
    %vm1011 = vmor %vm1002, %vm1010
    %1012 = vrot.lane.b32.xlu0 %v105, 112
    %v1013 = vpop.permute.xlu0 %1012
    %1014 = vrot.lane.b32.xlu0 %v105, 80
    %v1015 = vpop.permute.xlu0 %1014
    %v1016 = vsel %vm574, %v1013, 0
    %v1018 = vsel %vm574, %v1015, 0
    %1020 = vmatprep.subr.mxu0 0.0
    %1021 = vmatpush1.xpose.msra.mxu0 %v1018
    %1022 = vmatprep.subr.mxu0 0.0
    %1023 = vmatpush1.xpose.msra.mxu0 0.0
    %1024 = vmatprep.subr.mxu0 0.0
    %1025 = vmatpush1.xpose.msra.mxu0 0.0
    %1026 = vmatprep.subr.mxu0 0.0
    %1027 = vmatpush1.xpose.msra.mxu0 0.0
    %1028 = vmatprep.subr.mxu0 0.0
    %1029 = vmatpush1.xpose.msra.mxu0 0.0
    %1030 = vmatprep.subr.mxu0 0.0
    %1031 = vmatpush1.xpose.msra.mxu0 0.0
    %1032 = vmatprep.subr.mxu0 0.0
    %1033 = vmatpush1.xpose.msra.mxu0 0.0
    %1034 = vmatprep.subr.mxu0 0.0
    %1035 = vmatpush1.xpose.msra.mxu0 0.0
    %1036 = vmatprep.subr.mxu0 0.0
    %1037 = vmatpush1.xpose.msra.mxu0 0.0
    %1038 = vmatprep.subr.mxu0 0.0
    %1039 = vmatpush1.xpose.msra.mxu0 0.0
    %1040 = vmatprep.subr.mxu0 0.0
    %1041 = vmatpush1.xpose.msra.mxu0 0.0
    %1042 = vmatprep.subr.mxu0 0.0
    %1043 = vmatpush1.xpose.msra.mxu0 0.0
    %1044 = vmatprep.subr.mxu0 0.0
    %1045 = vmatpush1.xpose.msra.mxu0 0.0
    %1046 = vmatprep.subr.mxu0 0.0
    %1047 = vmatpush1.xpose.msra.mxu0 0.0
    %1048 = vmatprep.subr.mxu0 0.0
    %1049 = vmatpush1.xpose.msra.mxu0 0.0
    %1050 = vmatprep.subr.mxu0 0.0
    %1051 = vmatpush1.xpose.msra.mxu0 0.0
    %1052 = vmatprep.subr.mxu0 0.0
    %1053 = vmatpush1.xpose.msra.mxu0 0.0
    %1054 = vmatprep.subr.mxu0 0.0
    %1055 = vmatpush1.xpose.msra.mxu0 0.0
    %1056 = vmatprep.subr.mxu0 0.0
    %1057 = vmatpush1.xpose.msra.mxu0 0.0
    %1058 = vmatprep.subr.mxu0 0.0
    %1059 = vmatpush1.xpose.msra.mxu0 0.0
    %1060 = vmatprep.subr.mxu0 0.0
    %1061 = vmatpush1.xpose.msra.mxu0 0.0
    %1062 = vmatprep.subr.mxu0 0.0
    %1063 = vmatpush1.xpose.msra.mxu0 0.0
    %1064 = vmatprep.subr.mxu0 0.0
    %1065 = vmatpush1.xpose.msra.mxu0 0.0
    %1066 = vmatprep.subr.mxu0 0.0
    %1067 = vmatpush1.xpose.msra.mxu0 0.0
    %1068 = vmatprep.subr.mxu0 0.0
    %1069 = vmatpush1.xpose.msra.mxu0 0.0
    %1070 = vmatprep.subr.mxu0 0.0
    %1071 = vmatpush1.xpose.msra.mxu0 0.0
    %1072 = vmatprep.subr.mxu0 0.0
    %1073 = vmatpush1.xpose.msra.mxu0 0.0
    %1074 = vmatprep.subr.mxu0 0.0
    %1075 = vmatpush1.xpose.msra.mxu0 0.0
    %1076 = vmatprep.subr.mxu0 0.0
    %1077 = vmatpush1.xpose.msra.mxu0 0.0
    %1078 = vmatprep.subr.mxu0 0.0
    %1079 = vmatpush1.xpose.msra.mxu0 0.0
    %1080 = vmatprep.subr.mxu0 0.0
    %1081 = vmatpush1.xpose.msra.mxu0 0.0
    %1082 = vmatprep.subr.mxu0 0.0
    %1083 = vmatpush1.xpose.msra.mxu0 0.0
    %1084 = vmatprep.mubr.f32.mxu0 0.0
    %1085 = vmatmul.mubr.f32.gmra.mrb[0].mxu0 %v1016
    %v1086 = vpop.f32.mrb[0].mxu0
    %v1087 = vadd.f32 0.0, %v1086
    %v1088 = vpop.f32.mrb[0].mxu0
    %1089 = vdwg.mxu0
    %v1090 = vsel %vm1011, %v1087, 0.0
    %1091 = vxpose.xlu0.b32.start [1/16] %v1090, 128
    %1092 = vxpose.xlu0.b32.cont [2/16] 0.0, 128
    %1093 = vxpose.xlu0.b32.cont [3/16] 0.0, 128
    %1094 = vxpose.xlu0.b32.cont [4/16] 0.0, 128
    %1095 = vxpose.xlu0.b32.cont [5/16] 0.0, 128
    %1096 = vxpose.xlu0.b32.cont [6/16] 0.0, 128
    %1097 = vxpose.xlu0.b32.cont [7/16] 0.0, 128
    %1098 = vxpose.xlu0.b32.cont [8/16] 0.0, 128
    %1099 = vxpose.xlu0.b32.cont [9/16] 0.0, 128
    %1100 = vxpose.xlu0.b32.cont [10/16] 0.0, 128
    %1101 = vxpose.xlu0.b32.cont [11/16] 0.0, 128
    %1102 = vxpose.xlu0.b32.cont [12/16] 0.0, 128
    %1103 = vxpose.xlu0.b32.cont [13/16] 0.0, 128
    %1104 = vxpose.xlu0.b32.cont [14/16] 0.0, 128
    %1105 = vxpose.xlu0.b32.cont [15/16] 0.0, 128
    %1106 = vxpose.xlu0.b32.end [16/16] 0.0, 128
    %v1107 = vpop.trf.xlu0
    %v1108 = vpop.trf.xlu0
    %v1109 = vpop.trf.xlu0
    %v1110 = vpop.trf.xlu0
    %v1111 = vpop.trf.xlu0
    %v1112 = vpop.trf.xlu0
    %v1113 = vpop.trf.xlu0
    %v1114 = vpop.trf.xlu0
    %v1115 = vpop.trf.xlu0
    %v1116 = vpop.trf.xlu0
    %v1117 = vpop.trf.xlu0
    %v1118 = vpop.trf.xlu0
    %v1119 = vpop.trf.xlu0
    %v1120 = vpop.trf.xlu0
    %v1121 = vpop.trf.xlu0
    %v1122 = vpop.trf.xlu0
    %v1123 = vsel %vm556, %v1090, %v1107
    %v1124 = vmul.f32 %v1123, 0.35355338
    %v1125 = vsel %vm574, %v1124, -inf
    %1126 = vmax.xlane.f32.xlu0 %v1125
    %v1127 = vpop.xlane.xlu0 %1126
    %v1128 = vsub.f32 %v1124, %v1127
    %v1129 = vmul.f32 %v1128, 1.442695
    %v1130 = vpow.pop %v1129
    %v1131 = vsel %vm574, %v1130, 0.0
    %1132 = vadd.xlane.f32.xlu0 %v1131
    %v1133 = vpop.xlane.xlu0 %1132
    %v1134 = vrcp.pop %v1133
    %v1135 = vmul.f32 %v1130, %v1134
    %1136 = vrot.lane.b32.xlu0 %v105, 48
    %v1137 = vpop.permute.xlu0 %1136
    %v1140 = vsel %vm574, %v1135, 0
    %1142 = vmatprep.subr.mxu0 0.0
    %1143 = vmatpush1.msra.mxu0 %v1137
    %1144 = vmatprep.subr.mxu0 0.0
    %1145 = vmatpush1.msra.mxu0 0.0
    %1146 = vmatprep.subr.mxu0 0.0
    %1147 = vmatpush1.msra.mxu0 0.0
    %1148 = vmatprep.subr.mxu0 0.0
    %1149 = vmatpush1.msra.mxu0 0.0
    %1150 = vmatprep.subr.mxu0 0.0
    %1151 = vmatpush1.msra.mxu0 0.0
    %1152 = vmatprep.subr.mxu0 0.0
    %1153 = vmatpush1.msra.mxu0 0.0
    %1154 = vmatprep.subr.mxu0 0.0
    %1155 = vmatpush1.msra.mxu0 0.0
    %1156 = vmatprep.subr.mxu0 0.0
    %1157 = vmatpush1.msra.mxu0 0.0
    %1158 = vmatprep.subr.mxu0 0.0
    %1159 = vmatpush1.msra.mxu0 0.0
    %1160 = vmatprep.subr.mxu0 0.0
    %1161 = vmatpush1.msra.mxu0 0.0
    %1162 = vmatprep.subr.mxu0 0.0
    %1163 = vmatpush1.msra.mxu0 0.0
    %1164 = vmatprep.subr.mxu0 0.0
    %1165 = vmatpush1.msra.mxu0 0.0
    %1166 = vmatprep.subr.mxu0 0.0
    %1167 = vmatpush1.msra.mxu0 0.0
    %1168 = vmatprep.subr.mxu0 0.0
    %1169 = vmatpush1.msra.mxu0 0.0
    %1170 = vmatprep.subr.mxu0 0.0
    %1171 = vmatpush1.msra.mxu0 0.0
    %1172 = vmatprep.subr.mxu0 0.0
    %1173 = vmatpush1.msra.mxu0 0.0
    %1174 = vmatprep.subr.mxu0 0.0
    %1175 = vmatpush1.msra.mxu0 0.0
    %1176 = vmatprep.subr.mxu0 0.0
    %1177 = vmatpush1.msra.mxu0 0.0
    %1178 = vmatprep.subr.mxu0 0.0
    %1179 = vmatpush1.msra.mxu0 0.0
    %1180 = vmatprep.subr.mxu0 0.0
    %1181 = vmatpush1.msra.mxu0 0.0
    %1182 = vmatprep.subr.mxu0 0.0
    %1183 = vmatpush1.msra.mxu0 0.0
    %1184 = vmatprep.subr.mxu0 0.0
    %1185 = vmatpush1.msra.mxu0 0.0
    %1186 = vmatprep.subr.mxu0 0.0
    %1187 = vmatpush1.msra.mxu0 0.0
    %1188 = vmatprep.subr.mxu0 0.0
    %1189 = vmatpush1.msra.mxu0 0.0
    %1190 = vmatprep.subr.mxu0 0.0
    %1191 = vmatpush1.msra.mxu0 0.0
    %1192 = vmatprep.subr.mxu0 0.0
    %1193 = vmatpush1.msra.mxu0 0.0
    %1194 = vmatprep.subr.mxu0 0.0
    %1195 = vmatpush1.msra.mxu0 0.0
    %1196 = vmatprep.subr.mxu0 0.0
    %1197 = vmatpush1.msra.mxu0 0.0
    %1198 = vmatprep.subr.mxu0 0.0
    %1199 = vmatpush1.msra.mxu0 0.0
    %1200 = vmatprep.subr.mxu0 0.0
    %1201 = vmatpush1.msra.mxu0 0.0
    %1202 = vmatprep.subr.mxu0 0.0
    %1203 = vmatpush1.msra.mxu0 0.0
    %1204 = vmatprep.subr.mxu0 0.0
    %1205 = vmatpush1.msra.mxu0 0.0
    %1206 = vmatprep.mubr.f32.mxu0 0.0
    %1207 = vmatmul.mubr.f32.gmra.mrb[0].mxu0 %v1140
    %v1208 = vpop.f32.mrb[0].mxu0
    %v1209 = vadd.f32 0.0, %v1208
    %v1210 = vpop.f32.mrb[0].mxu0
    %1211 = vdwg.mxu0
    %1213 = vrot.lane.b32.xlu0 %v1209, 16
    %v1214 = vpop.permute.xlu0 %1213
    %vm1216 = vcmask 195712
    %1217 = vst.msk [vmem:[#allocation2] sm:$0xff] %vm1216, %v1214
    %1218 = vset.pattern.permute.xlu0 6
    %1219 = vperm.xlu0 %1218, %v514
    %v1220 = vpop.permute.xlu0 %1219
    %v1221 = vlaneseq
    %v1222 = vshrl.u32 %v1221, 7
    %v1223 = vsub.s32 6, %v1222
    %v1224 = vrot.slane %v550, %v1223
    %vm1225 = vcmp.eq.s32.totalorder %v1220, %v1224
    %1226 = vset.pattern.permute.xlu0 7
    %1227 = vperm.xlu0 %1226, %v514
    %v1228 = vpop.permute.xlu0 %1227
    %v1229 = vlaneseq
    %v1230 = vshrl.u32 %v1229, 7
    %v1231 = vsub.s32 7, %v1230
    %v1232 = vrot.slane %v550, %v1231
    %vm1233 = vcmp.eq.s32.totalorder %v1228, %v1232
    %vm1234 = vmor %vm1225, %vm1233
    %1235 = vrot.lane.b32.xlu0 %v105, 104
    %v1236 = vpop.permute.xlu0 %1235
    %1237 = vrot.lane.b32.xlu0 %v105, 72
    %v1238 = vpop.permute.xlu0 %1237
    %v1239 = vsel %vm574, %v1236, 0
    %v1241 = vsel %vm574, %v1238, 0
    %1243 = vmatprep.subr.mxu0 0.0
    %1244 = vmatpush1.xpose.msra.mxu0 %v1241
    %1245 = vmatprep.subr.mxu0 0.0
    %1246 = vmatpush1.xpose.msra.mxu0 0.0
    %1247 = vmatprep.subr.mxu0 0.0
    %1248 = vmatpush1.xpose.msra.mxu0 0.0
    %1249 = vmatprep.subr.mxu0 0.0
    %1250 = vmatpush1.xpose.msra.mxu0 0.0
    %1251 = vmatprep.subr.mxu0 0.0
    %1252 = vmatpush1.xpose.msra.mxu0 0.0
    %1253 = vmatprep.subr.mxu0 0.0
    %1254 = vmatpush1.xpose.msra.mxu0 0.0
    %1255 = vmatprep.subr.mxu0 0.0
    %1256 = vmatpush1.xpose.msra.mxu0 0.0
    %1257 = vmatprep.subr.mxu0 0.0
    %1258 = vmatpush1.xpose.msra.mxu0 0.0
    %1259 = vmatprep.subr.mxu0 0.0
    %1260 = vmatpush1.xpose.msra.mxu0 0.0
    %1261 = vmatprep.subr.mxu0 0.0
    %1262 = vmatpush1.xpose.msra.mxu0 0.0
    %1263 = vmatprep.subr.mxu0 0.0
    %1264 = vmatpush1.xpose.msra.mxu0 0.0
    %1265 = vmatprep.subr.mxu0 0.0
    %1266 = vmatpush1.xpose.msra.mxu0 0.0
    %1267 = vmatprep.subr.mxu0 0.0
    %1268 = vmatpush1.xpose.msra.mxu0 0.0
    %1269 = vmatprep.subr.mxu0 0.0
    %1270 = vmatpush1.xpose.msra.mxu0 0.0
    %1271 = vmatprep.subr.mxu0 0.0
    %1272 = vmatpush1.xpose.msra.mxu0 0.0
    %1273 = vmatprep.subr.mxu0 0.0
    %1274 = vmatpush1.xpose.msra.mxu0 0.0
    %1275 = vmatprep.subr.mxu0 0.0
    %1276 = vmatpush1.xpose.msra.mxu0 0.0
    %1277 = vmatprep.subr.mxu0 0.0
    %1278 = vmatpush1.xpose.msra.mxu0 0.0
    %1279 = vmatprep.subr.mxu0 0.0
    %1280 = vmatpush1.xpose.msra.mxu0 0.0
    %1281 = vmatprep.subr.mxu0 0.0
    %1282 = vmatpush1.xpose.msra.mxu0 0.0
    %1283 = vmatprep.subr.mxu0 0.0
    %1284 = vmatpush1.xpose.msra.mxu0 0.0
    %1285 = vmatprep.subr.mxu0 0.0
    %1286 = vmatpush1.xpose.msra.mxu0 0.0
    %1287 = vmatprep.subr.mxu0 0.0
    %1288 = vmatpush1.xpose.msra.mxu0 0.0
    %1289 = vmatprep.subr.mxu0 0.0
    %1290 = vmatpush1.xpose.msra.mxu0 0.0
    %1291 = vmatprep.subr.mxu0 0.0
    %1292 = vmatpush1.xpose.msra.mxu0 0.0
    %1293 = vmatprep.subr.mxu0 0.0
    %1294 = vmatpush1.xpose.msra.mxu0 0.0
    %1295 = vmatprep.subr.mxu0 0.0
    %1296 = vmatpush1.xpose.msra.mxu0 0.0
    %1297 = vmatprep.subr.mxu0 0.0
    %1298 = vmatpush1.xpose.msra.mxu0 0.0
    %1299 = vmatprep.subr.mxu0 0.0
    %1300 = vmatpush1.xpose.msra.mxu0 0.0
    %1301 = vmatprep.subr.mxu0 0.0
    %1302 = vmatpush1.xpose.msra.mxu0 0.0
    %1303 = vmatprep.subr.mxu0 0.0
    %1304 = vmatpush1.xpose.msra.mxu0 0.0
    %1305 = vmatprep.subr.mxu0 0.0
    %1306 = vmatpush1.xpose.msra.mxu0 0.0
    %1307 = vmatprep.mubr.f32.mxu0 0.0
    %1308 = vmatmul.mubr.f32.gmra.mrb[0].mxu0 %v1239
    %v1309 = vpop.f32.mrb[0].mxu0
    %v1310 = vadd.f32 0.0, %v1309
    %v1311 = vpop.f32.mrb[0].mxu0
    %1312 = vdwg.mxu0
    %v1313 = vsel %vm1234, %v1310, 0.0
    %1314 = vxpose.xlu0.b32.start [1/16] %v1313, 128
    %1315 = vxpose.xlu0.b32.cont [2/16] 0.0, 128
    %1316 = vxpose.xlu0.b32.cont [3/16] 0.0, 128
    %1317 = vxpose.xlu0.b32.cont [4/16] 0.0, 128
    %1318 = vxpose.xlu0.b32.cont [5/16] 0.0, 128
    %1319 = vxpose.xlu0.b32.cont [6/16] 0.0, 128
    %1320 = vxpose.xlu0.b32.cont [7/16] 0.0, 128
    %1321 = vxpose.xlu0.b32.cont [8/16] 0.0, 128
    %1322 = vxpose.xlu0.b32.cont [9/16] 0.0, 128
    %1323 = vxpose.xlu0.b32.cont [10/16] 0.0, 128
    %1324 = vxpose.xlu0.b32.cont [11/16] 0.0, 128
    %1325 = vxpose.xlu0.b32.cont [12/16] 0.0, 128
    %1326 = vxpose.xlu0.b32.cont [13/16] 0.0, 128
    %1327 = vxpose.xlu0.b32.cont [14/16] 0.0, 128
    %1328 = vxpose.xlu0.b32.cont [15/16] 0.0, 128
    %1329 = vxpose.xlu0.b32.end [16/16] 0.0, 128
    %v1330 = vpop.trf.xlu0
    %v1331 = vpop.trf.xlu0
    %v1332 = vpop.trf.xlu0
    %v1333 = vpop.trf.xlu0
    %v1334 = vpop.trf.xlu0
    %v1335 = vpop.trf.xlu0
    %v1336 = vpop.trf.xlu0
    %v1337 = vpop.trf.xlu0
    %v1338 = vpop.trf.xlu0
    %v1339 = vpop.trf.xlu0
    %v1340 = vpop.trf.xlu0
    %v1341 = vpop.trf.xlu0
    %v1342 = vpop.trf.xlu0
    %v1343 = vpop.trf.xlu0
    %v1344 = vpop.trf.xlu0
    %v1345 = vpop.trf.xlu0
    %v1346 = vsel %vm556, %v1313, %v1330
    %v1347 = vmul.f32 %v1346, 0.35355338
    %v1348 = vsel %vm574, %v1347, -inf
    %1349 = vmax.xlane.f32.xlu0 %v1348
    %v1350 = vpop.xlane.xlu0 %1349
    %v1351 = vsub.f32 %v1347, %v1350
    %v1352 = vmul.f32 %v1351, 1.442695
    %v1353 = vpow.pop %v1352
    %v1354 = vsel %vm574, %v1353, 0.0
    %1355 = vadd.xlane.f32.xlu0 %v1354
    %v1356 = vpop.xlane.xlu0 %1355
    %v1357 = vrcp.pop %v1356
    %v1358 = vmul.f32 %v1353, %v1357
    %1359 = vrot.lane.b32.xlu0 %v105, 40
    %v1360 = vpop.permute.xlu0 %1359
    %v1363 = vsel %vm574, %v1358, 0
    %1365 = vmatprep.subr.mxu0 0.0
    %1366 = vmatpush1.msra.mxu0 %v1360
    %1367 = vmatprep.subr.mxu0 0.0
    %1368 = vmatpush1.msra.mxu0 0.0
    %1369 = vmatprep.subr.mxu0 0.0
    %1370 = vmatpush1.msra.mxu0 0.0
    %1371 = vmatprep.subr.mxu0 0.0
    %1372 = vmatpush1.msra.mxu0 0.0
    %1373 = vmatprep.subr.mxu0 0.0
    %1374 = vmatpush1.msra.mxu0 0.0
    %1375 = vmatprep.subr.mxu0 0.0
    %1376 = vmatpush1.msra.mxu0 0.0
    %1377 = vmatprep.subr.mxu0 0.0
    %1378 = vmatpush1.msra.mxu0 0.0
    %1379 = vmatprep.subr.mxu0 0.0
    %1380 = vmatpush1.msra.mxu0 0.0
    %1381 = vmatprep.subr.mxu0 0.0
    %1382 = vmatpush1.msra.mxu0 0.0
    %1383 = vmatprep.subr.mxu0 0.0
    %1384 = vmatpush1.msra.mxu0 0.0
    %1385 = vmatprep.subr.mxu0 0.0
    %1386 = vmatpush1.msra.mxu0 0.0
    %1387 = vmatprep.subr.mxu0 0.0
    %1388 = vmatpush1.msra.mxu0 0.0
    %1389 = vmatprep.subr.mxu0 0.0
    %1390 = vmatpush1.msra.mxu0 0.0
    %1391 = vmatprep.subr.mxu0 0.0
    %1392 = vmatpush1.msra.mxu0 0.0
    %1393 = vmatprep.subr.mxu0 0.0
    %1394 = vmatpush1.msra.mxu0 0.0
    %1395 = vmatprep.subr.mxu0 0.0
    %1396 = vmatpush1.msra.mxu0 0.0
    %1397 = vmatprep.subr.mxu0 0.0
    %1398 = vmatpush1.msra.mxu0 0.0
    %1399 = vmatprep.subr.mxu0 0.0
    %1400 = vmatpush1.msra.mxu0 0.0
    %1401 = vmatprep.subr.mxu0 0.0
    %1402 = vmatpush1.msra.mxu0 0.0
    %1403 = vmatprep.subr.mxu0 0.0
    %1404 = vmatpush1.msra.mxu0 0.0
    %1405 = vmatprep.subr.mxu0 0.0
    %1406 = vmatpush1.msra.mxu0 0.0
    %1407 = vmatprep.subr.mxu0 0.0
    %1408 = vmatpush1.msra.mxu0 0.0
    %1409 = vmatprep.subr.mxu0 0.0
    %1410 = vmatpush1.msra.mxu0 0.0
    %1411 = vmatprep.subr.mxu0 0.0
    %1412 = vmatpush1.msra.mxu0 0.0
    %1413 = vmatprep.subr.mxu0 0.0
    %1414 = vmatpush1.msra.mxu0 0.0
    %1415 = vmatprep.subr.mxu0 0.0
    %1416 = vmatpush1.msra.mxu0 0.0
    %1417 = vmatprep.subr.mxu0 0.0
    %1418 = vmatpush1.msra.mxu0 0.0
    %1419 = vmatprep.subr.mxu0 0.0
    %1420 = vmatpush1.msra.mxu0 0.0
    %1421 = vmatprep.subr.mxu0 0.0
    %1422 = vmatpush1.msra.mxu0 0.0
    %1423 = vmatprep.subr.mxu0 0.0
    %1424 = vmatpush1.msra.mxu0 0.0
    %1425 = vmatprep.subr.mxu0 0.0
    %1426 = vmatpush1.msra.mxu0 0.0
    %1427 = vmatprep.subr.mxu0 0.0
    %1428 = vmatpush1.msra.mxu0 0.0
    %1429 = vmatprep.mubr.f32.mxu0 0.0
    %1430 = vmatmul.mubr.f32.gmra.mrb[0].mxu0 %v1363
    %v1431 = vpop.f32.mrb[0].mxu0
    %v1432 = vadd.f32 0.0, %v1431
    %v1433 = vpop.f32.mrb[0].mxu0
    %1434 = vdwg.mxu0
    %1436 = vrot.lane.b32.xlu0 %v1432, 24
    %v1437 = vpop.permute.xlu0 %1436
    %vm1439 = vcmask 261312
    %1440 = vst.msk [vmem:[#allocation2] sm:$0xff] %vm1439, %v1437
    %1441 = vset.pattern.permute.xlu0 8
    %1442 = vperm.xlu0 %1441, %v515
    %v1443 = vpop.permute.xlu0 %1442
    %v1444 = vlaneseq
    %v1445 = vshrl.u32 %v1444, 7
    %v1446 = vsub.s32 0, %v1445
    %v1447 = vrot.slane %v551, %v1446
    %vm1448 = vcmp.eq.s32.totalorder %v1443, %v1447
    %1449 = vset.pattern.permute.xlu0 9
    %1450 = vperm.xlu0 %1449, %v515
    %v1451 = vpop.permute.xlu0 %1450
    %v1452 = vlaneseq
    %v1453 = vshrl.u32 %v1452, 7
    %v1454 = vsub.s32 1, %v1453
    %v1455 = vrot.slane %v551, %v1454
    %vm1456 = vcmp.eq.s32.totalorder %v1451, %v1455
    %vm1457 = vmor %vm1448, %vm1456
    %v1458 = vsel %vm574, %v110, 0
    %v1460 = vsel %vm574, %v223, 0
    %1462 = vmatprep.subr.mxu0 0.0
    %1463 = vmatpush1.xpose.msra.mxu0 %v1460
    %1464 = vmatprep.subr.mxu0 0.0
    %1465 = vmatpush1.xpose.msra.mxu0 0.0
    %1466 = vmatprep.subr.mxu0 0.0
    %1467 = vmatpush1.xpose.msra.mxu0 0.0
    %1468 = vmatprep.subr.mxu0 0.0
    %1469 = vmatpush1.xpose.msra.mxu0 0.0
    %1470 = vmatprep.subr.mxu0 0.0
    %1471 = vmatpush1.xpose.msra.mxu0 0.0
    %1472 = vmatprep.subr.mxu0 0.0
    %1473 = vmatpush1.xpose.msra.mxu0 0.0
    %1474 = vmatprep.subr.mxu0 0.0
    %1475 = vmatpush1.xpose.msra.mxu0 0.0
    %1476 = vmatprep.subr.mxu0 0.0
    %1477 = vmatpush1.xpose.msra.mxu0 0.0
    %1478 = vmatprep.subr.mxu0 0.0
    %1479 = vmatpush1.xpose.msra.mxu0 0.0
    %1480 = vmatprep.subr.mxu0 0.0
    %1481 = vmatpush1.xpose.msra.mxu0 0.0
    %1482 = vmatprep.subr.mxu0 0.0
    %1483 = vmatpush1.xpose.msra.mxu0 0.0
    %1484 = vmatprep.subr.mxu0 0.0
    %1485 = vmatpush1.xpose.msra.mxu0 0.0
    %1486 = vmatprep.subr.mxu0 0.0
    %1487 = vmatpush1.xpose.msra.mxu0 0.0
    %1488 = vmatprep.subr.mxu0 0.0
    %1489 = vmatpush1.xpose.msra.mxu0 0.0
    %1490 = vmatprep.subr.mxu0 0.0
    %1491 = vmatpush1.xpose.msra.mxu0 0.0
    %1492 = vmatprep.subr.mxu0 0.0
    %1493 = vmatpush1.xpose.msra.mxu0 0.0
    %1494 = vmatprep.subr.mxu0 0.0
    %1495 = vmatpush1.xpose.msra.mxu0 0.0
    %1496 = vmatprep.subr.mxu0 0.0
    %1497 = vmatpush1.xpose.msra.mxu0 0.0
    %1498 = vmatprep.subr.mxu0 0.0
    %1499 = vmatpush1.xpose.msra.mxu0 0.0
    %1500 = vmatprep.subr.mxu0 0.0
    %1501 = vmatpush1.xpose.msra.mxu0 0.0
    %1502 = vmatprep.subr.mxu0 0.0
    %1503 = vmatpush1.xpose.msra.mxu0 0.0
    %1504 = vmatprep.subr.mxu0 0.0
    %1505 = vmatpush1.xpose.msra.mxu0 0.0
    %1506 = vmatprep.subr.mxu0 0.0
    %1507 = vmatpush1.xpose.msra.mxu0 0.0
    %1508 = vmatprep.subr.mxu0 0.0
    %1509 = vmatpush1.xpose.msra.mxu0 0.0
    %1510 = vmatprep.subr.mxu0 0.0
    %1511 = vmatpush1.xpose.msra.mxu0 0.0
    %1512 = vmatprep.subr.mxu0 0.0
    %1513 = vmatpush1.xpose.msra.mxu0 0.0
    %1514 = vmatprep.subr.mxu0 0.0
    %1515 = vmatpush1.xpose.msra.mxu0 0.0
    %1516 = vmatprep.subr.mxu0 0.0
    %1517 = vmatpush1.xpose.msra.mxu0 0.0
    %1518 = vmatprep.subr.mxu0 0.0
    %1519 = vmatpush1.xpose.msra.mxu0 0.0
    %1520 = vmatprep.subr.mxu0 0.0
    %1521 = vmatpush1.xpose.msra.mxu0 0.0
    %1522 = vmatprep.subr.mxu0 0.0
    %1523 = vmatpush1.xpose.msra.mxu0 0.0
    %1524 = vmatprep.subr.mxu0 0.0
    %1525 = vmatpush1.xpose.msra.mxu0 0.0
    %1526 = vmatprep.mubr.f32.mxu0 0.0
    %1527 = vmatmul.mubr.f32.gmra.mrb[0].mxu0 %v1458
    %v1528 = vpop.f32.mrb[0].mxu0
    %v1529 = vadd.f32 0.0, %v1528
    %v1530 = vpop.f32.mrb[0].mxu0
    %1531 = vdwg.mxu0
    %1533 = vrot.lane.b32.xlu0 %v1529, 8
    %v1534 = vpop.permute.xlu0 %1533
    %v1536 = vsel %vm1457, %v1534, 0.0
    %1538 = vrot.lane.b32.xlu0 %v1536, 120
    %v1539 = vpop.permute.xlu0 %1538
    %1541 = vxpose.xlu0.b32.start [1/16] %v1539, 128
    %1542 = vxpose.xlu0.b32.cont [2/16] 0.0, 128
    %1543 = vxpose.xlu0.b32.cont [3/16] 0.0, 128
    %1544 = vxpose.xlu0.b32.cont [4/16] 0.0, 128
    %1545 = vxpose.xlu0.b32.cont [5/16] 0.0, 128
    %1546 = vxpose.xlu0.b32.cont [6/16] 0.0, 128
    %1547 = vxpose.xlu0.b32.cont [7/16] 0.0, 128
    %1548 = vxpose.xlu0.b32.cont [8/16] 0.0, 128
    %1549 = vxpose.xlu0.b32.cont [9/16] 0.0, 128
    %1550 = vxpose.xlu0.b32.cont [10/16] 0.0, 128
    %1551 = vxpose.xlu0.b32.cont [11/16] 0.0, 128
    %1552 = vxpose.xlu0.b32.cont [12/16] 0.0, 128
    %1553 = vxpose.xlu0.b32.cont [13/16] 0.0, 128
    %1554 = vxpose.xlu0.b32.cont [14/16] 0.0, 128
    %1555 = vxpose.xlu0.b32.cont [15/16] 0.0, 128
    %1556 = vxpose.xlu0.b32.end [16/16] 0.0, 128
    %v1557 = vpop.trf.xlu0
    %v1558 = vpop.trf.xlu0
    %v1559 = vpop.trf.xlu0
    %v1560 = vpop.trf.xlu0
    %v1561 = vpop.trf.xlu0
    %v1562 = vpop.trf.xlu0
    %v1563 = vpop.trf.xlu0
    %v1564 = vpop.trf.xlu0
    %v1565 = vpop.trf.xlu0
    %v1566 = vpop.trf.xlu0
    %v1567 = vpop.trf.xlu0
    %v1568 = vpop.trf.xlu0
    %v1569 = vpop.trf.xlu0
    %v1570 = vpop.trf.xlu0
    %v1571 = vpop.trf.xlu0
    %v1572 = vpop.trf.xlu0
    %v1573 = vsel %vm556, %v1539, %v1557
    %v1574 = vmul.f32 %v1573, 0.35355338
    %v1575 = vsel %vm574, %v1574, -inf
    %1576 = vmax.xlane.f32.xlu0 %v1575
    %v1577 = vpop.xlane.xlu0 %1576
    %v1578 = vsub.f32 %v1574, %v1577
    %v1579 = vmul.f32 %v1578, 1.442695
    %v1580 = vpow.pop %v1579
    %v1581 = vsel %vm574, %v1580, 0.0
    %1582 = vadd.xlane.f32.xlu0 %v1581
    %v1583 = vpop.xlane.xlu0 %1582
    %v1584 = vrcp.pop %v1583
    %v1585 = vmul.f32 %v1580, %v1584
    %1586 = vrot.lane.b32.xlu0 %v110, 64
    %v1587 = vpop.permute.xlu0 %1586
    %v1590 = vsel %vm574, %v1585, 0
    %1592 = vmatprep.subr.mxu0 0.0
    %1593 = vmatpush1.msra.mxu0 %v1587
    %1594 = vmatprep.subr.mxu0 0.0
    %1595 = vmatpush1.msra.mxu0 0.0
    %1596 = vmatprep.subr.mxu0 0.0
    %1597 = vmatpush1.msra.mxu0 0.0
    %1598 = vmatprep.subr.mxu0 0.0
    %1599 = vmatpush1.msra.mxu0 0.0
    %1600 = vmatprep.subr.mxu0 0.0
    %1601 = vmatpush1.msra.mxu0 0.0
    %1602 = vmatprep.subr.mxu0 0.0
    %1603 = vmatpush1.msra.mxu0 0.0
    %1604 = vmatprep.subr.mxu0 0.0
    %1605 = vmatpush1.msra.mxu0 0.0
    %1606 = vmatprep.subr.mxu0 0.0
    %1607 = vmatpush1.msra.mxu0 0.0
    %1608 = vmatprep.subr.mxu0 0.0
    %1609 = vmatpush1.msra.mxu0 0.0
    %1610 = vmatprep.subr.mxu0 0.0
    %1611 = vmatpush1.msra.mxu0 0.0
    %1612 = vmatprep.subr.mxu0 0.0
    %1613 = vmatpush1.msra.mxu0 0.0
    %1614 = vmatprep.subr.mxu0 0.0
    %1615 = vmatpush1.msra.mxu0 0.0
    %1616 = vmatprep.subr.mxu0 0.0
    %1617 = vmatpush1.msra.mxu0 0.0
    %1618 = vmatprep.subr.mxu0 0.0
    %1619 = vmatpush1.msra.mxu0 0.0
    %1620 = vmatprep.subr.mxu0 0.0
    %1621 = vmatpush1.msra.mxu0 0.0
    %1622 = vmatprep.subr.mxu0 0.0
    %1623 = vmatpush1.msra.mxu0 0.0
    %1624 = vmatprep.subr.mxu0 0.0
    %1625 = vmatpush1.msra.mxu0 0.0
    %1626 = vmatprep.subr.mxu0 0.0
    %1627 = vmatpush1.msra.mxu0 0.0
    %1628 = vmatprep.subr.mxu0 0.0
    %1629 = vmatpush1.msra.mxu0 0.0
    %1630 = vmatprep.subr.mxu0 0.0
    %1631 = vmatpush1.msra.mxu0 0.0
    %1632 = vmatprep.subr.mxu0 0.0
    %1633 = vmatpush1.msra.mxu0 0.0
    %1634 = vmatprep.subr.mxu0 0.0
    %1635 = vmatpush1.msra.mxu0 0.0
    %1636 = vmatprep.subr.mxu0 0.0
    %1637 = vmatpush1.msra.mxu0 0.0
    %1638 = vmatprep.subr.mxu0 0.0
    %1639 = vmatpush1.msra.mxu0 0.0
    %1640 = vmatprep.subr.mxu0 0.0
    %1641 = vmatpush1.msra.mxu0 0.0
    %1642 = vmatprep.subr.mxu0 0.0
    %1643 = vmatpush1.msra.mxu0 0.0
    %1644 = vmatprep.subr.mxu0 0.0
    %1645 = vmatpush1.msra.mxu0 0.0
    %1646 = vmatprep.subr.mxu0 0.0
    %1647 = vmatpush1.msra.mxu0 0.0
    %1648 = vmatprep.subr.mxu0 0.0
    %1649 = vmatpush1.msra.mxu0 0.0
    %1650 = vmatprep.subr.mxu0 0.0
    %1651 = vmatpush1.msra.mxu0 0.0
    %1652 = vmatprep.subr.mxu0 0.0
    %1653 = vmatpush1.msra.mxu0 0.0
    %1654 = vmatprep.subr.mxu0 0.0
    %1655 = vmatpush1.msra.mxu0 0.0
    %1656 = vmatprep.mubr.f32.mxu0 0.0
    %1657 = vmatmul.mubr.f32.gmra.mrb[0].mxu0 %v1590
    %v1658 = vpop.f32.mrb[0].mxu0
    %v1659 = vadd.f32 0.0, %v1658
    %v1660 = vpop.f32.mrb[0].mxu0
    %1661 = vdwg.mxu0
    %1662 = vst.msk [vmem:[#allocation2 + $0x8] sm:$0xff] %vm574, %v1659
    %1663 = vset.pattern.permute.xlu0 10
    %1664 = vperm.xlu0 %1663, %v515
    %v1665 = vpop.permute.xlu0 %1664
    %v1666 = vlaneseq
    %v1667 = vshrl.u32 %v1666, 7
    %v1668 = vsub.s32 2, %v1667
    %v1669 = vrot.slane %v551, %v1668
    %vm1670 = vcmp.eq.s32.totalorder %v1665, %v1669
    %1671 = vset.pattern.permute.xlu0 11
    %1672 = vperm.xlu0 %1671, %v515
    %v1673 = vpop.permute.xlu0 %1672
    %v1674 = vlaneseq
    %v1675 = vshrl.u32 %v1674, 7
    %v1676 = vsub.s32 3, %v1675
    %v1677 = vrot.slane %v551, %v1676
    %vm1678 = vcmp.eq.s32.totalorder %v1673, %v1677
    %vm1679 = vmor %vm1670, %vm1678
    %1680 = vrot.lane.b32.xlu0 %v110, 120
    %v1681 = vpop.permute.xlu0 %1680
    %1682 = vrot.lane.b32.xlu0 %v110, 88
    %v1683 = vpop.permute.xlu0 %1682
    %v1684 = vsel %vm574, %v1681, 0
    %v1686 = vsel %vm574, %v1683, 0
    %1688 = vmatprep.subr.mxu0 0.0
    %1689 = vmatpush1.xpose.msra.mxu0 %v1686
    %1690 = vmatprep.subr.mxu0 0.0
    %1691 = vmatpush1.xpose.msra.mxu0 0.0
    %1692 = vmatprep.subr.mxu0 0.0
    %1693 = vmatpush1.xpose.msra.mxu0 0.0
    %1694 = vmatprep.subr.mxu0 0.0
    %1695 = vmatpush1.xpose.msra.mxu0 0.0
    %1696 = vmatprep.subr.mxu0 0.0
    %1697 = vmatpush1.xpose.msra.mxu0 0.0
    %1698 = vmatprep.subr.mxu0 0.0
    %1699 = vmatpush1.xpose.msra.mxu0 0.0
    %1700 = vmatprep.subr.mxu0 0.0
    %1701 = vmatpush1.xpose.msra.mxu0 0.0
    %1702 = vmatprep.subr.mxu0 0.0
    %1703 = vmatpush1.xpose.msra.mxu0 0.0
    %1704 = vmatprep.subr.mxu0 0.0
    %1705 = vmatpush1.xpose.msra.mxu0 0.0
    %1706 = vmatprep.subr.mxu0 0.0
    %1707 = vmatpush1.xpose.msra.mxu0 0.0
    %1708 = vmatprep.subr.mxu0 0.0
    %1709 = vmatpush1.xpose.msra.mxu0 0.0
    %1710 = vmatprep.subr.mxu0 0.0
    %1711 = vmatpush1.xpose.msra.mxu0 0.0
    %1712 = vmatprep.subr.mxu0 0.0
    %1713 = vmatpush1.xpose.msra.mxu0 0.0
    %1714 = vmatprep.subr.mxu0 0.0
    %1715 = vmatpush1.xpose.msra.mxu0 0.0
    %1716 = vmatprep.subr.mxu0 0.0
    %1717 = vmatpush1.xpose.msra.mxu0 0.0
    %1718 = vmatprep.subr.mxu0 0.0
    %1719 = vmatpush1.xpose.msra.mxu0 0.0
    %1720 = vmatprep.subr.mxu0 0.0
    %1721 = vmatpush1.xpose.msra.mxu0 0.0
    %1722 = vmatprep.subr.mxu0 0.0
    %1723 = vmatpush1.xpose.msra.mxu0 0.0
    %1724 = vmatprep.subr.mxu0 0.0
    %1725 = vmatpush1.xpose.msra.mxu0 0.0
    %1726 = vmatprep.subr.mxu0 0.0
    %1727 = vmatpush1.xpose.msra.mxu0 0.0
    %1728 = vmatprep.subr.mxu0 0.0
    %1729 = vmatpush1.xpose.msra.mxu0 0.0
    %1730 = vmatprep.subr.mxu0 0.0
    %1731 = vmatpush1.xpose.msra.mxu0 0.0
    %1732 = vmatprep.subr.mxu0 0.0
    %1733 = vmatpush1.xpose.msra.mxu0 0.0
    %1734 = vmatprep.subr.mxu0 0.0
    %1735 = vmatpush1.xpose.msra.mxu0 0.0
    %1736 = vmatprep.subr.mxu0 0.0
    %1737 = vmatpush1.xpose.msra.mxu0 0.0
    %1738 = vmatprep.subr.mxu0 0.0
    %1739 = vmatpush1.xpose.msra.mxu0 0.0
    %1740 = vmatprep.subr.mxu0 0.0
    %1741 = vmatpush1.xpose.msra.mxu0 0.0
    %1742 = vmatprep.subr.mxu0 0.0
    %1743 = vmatpush1.xpose.msra.mxu0 0.0
    %1744 = vmatprep.subr.mxu0 0.0
    %1745 = vmatpush1.xpose.msra.mxu0 0.0
    %1746 = vmatprep.subr.mxu0 0.0
    %1747 = vmatpush1.xpose.msra.mxu0 0.0
    %1748 = vmatprep.subr.mxu0 0.0
    %1749 = vmatpush1.xpose.msra.mxu0 0.0
    %1750 = vmatprep.subr.mxu0 0.0
    %1751 = vmatpush1.xpose.msra.mxu0 0.0
    %1752 = vmatprep.mubr.f32.mxu0 0.0
    %1753 = vmatmul.mubr.f32.gmra.mrb[0].mxu0 %v1684
    %v1754 = vpop.f32.mrb[0].mxu0
    %v1755 = vadd.f32 0.0, %v1754
    %v1756 = vpop.f32.mrb[0].mxu0
    %1757 = vdwg.mxu0
    %1759 = vrot.lane.b32.xlu0 %v1755, 8
    %v1760 = vpop.permute.xlu0 %1759
    %v1762 = vsel %vm1679, %v1760, 0.0
    %1764 = vrot.lane.b32.xlu0 %v1762, 120
    %v1765 = vpop.permute.xlu0 %1764
    %1767 = vxpose.xlu0.b32.start [1/16] %v1765, 128
    %1768 = vxpose.xlu0.b32.cont [2/16] 0.0, 128
    %1769 = vxpose.xlu0.b32.cont [3/16] 0.0, 128
    %1770 = vxpose.xlu0.b32.cont [4/16] 0.0, 128
    %1771 = vxpose.xlu0.b32.cont [5/16] 0.0, 128
    %1772 = vxpose.xlu0.b32.cont [6/16] 0.0, 128
    %1773 = vxpose.xlu0.b32.cont [7/16] 0.0, 128
    %1774 = vxpose.xlu0.b32.cont [8/16] 0.0, 128
    %1775 = vxpose.xlu0.b32.cont [9/16] 0.0, 128
    %1776 = vxpose.xlu0.b32.cont [10/16] 0.0, 128
    %1777 = vxpose.xlu0.b32.cont [11/16] 0.0, 128
    %1778 = vxpose.xlu0.b32.cont [12/16] 0.0, 128
    %1779 = vxpose.xlu0.b32.cont [13/16] 0.0, 128
    %1780 = vxpose.xlu0.b32.cont [14/16] 0.0, 128
    %1781 = vxpose.xlu0.b32.cont [15/16] 0.0, 128
    %1782 = vxpose.xlu0.b32.end [16/16] 0.0, 128
    %v1783 = vpop.trf.xlu0
    %v1784 = vpop.trf.xlu0
    %v1785 = vpop.trf.xlu0
    %v1786 = vpop.trf.xlu0
    %v1787 = vpop.trf.xlu0
    %v1788 = vpop.trf.xlu0
    %v1789 = vpop.trf.xlu0
    %v1790 = vpop.trf.xlu0
    %v1791 = vpop.trf.xlu0
    %v1792 = vpop.trf.xlu0
    %v1793 = vpop.trf.xlu0
    %v1794 = vpop.trf.xlu0
    %v1795 = vpop.trf.xlu0
    %v1796 = vpop.trf.xlu0
    %v1797 = vpop.trf.xlu0
    %v1798 = vpop.trf.xlu0
    %v1799 = vsel %vm556, %v1765, %v1783
    %v1800 = vmul.f32 %v1799, 0.35355338
    %v1801 = vsel %vm574, %v1800, -inf
    %1802 = vmax.xlane.f32.xlu0 %v1801
    %v1803 = vpop.xlane.xlu0 %1802
    %v1804 = vsub.f32 %v1800, %v1803
    %v1805 = vmul.f32 %v1804, 1.442695
    %v1806 = vpow.pop %v1805
    %v1807 = vsel %vm574, %v1806, 0.0
    %1808 = vadd.xlane.f32.xlu0 %v1807
    %v1809 = vpop.xlane.xlu0 %1808
    %v1810 = vrcp.pop %v1809
    %v1811 = vmul.f32 %v1806, %v1810
    %1812 = vrot.lane.b32.xlu0 %v110, 56
    %v1813 = vpop.permute.xlu0 %1812
    %v1816 = vsel %vm574, %v1811, 0
    %1818 = vmatprep.subr.mxu0 0.0
    %1819 = vmatpush1.msra.mxu0 %v1813
    %1820 = vmatprep.subr.mxu0 0.0
    %1821 = vmatpush1.msra.mxu0 0.0
    %1822 = vmatprep.subr.mxu0 0.0
    %1823 = vmatpush1.msra.mxu0 0.0
    %1824 = vmatprep.subr.mxu0 0.0
    %1825 = vmatpush1.msra.mxu0 0.0
    %1826 = vmatprep.subr.mxu0 0.0
    %1827 = vmatpush1.msra.mxu0 0.0
    %1828 = vmatprep.subr.mxu0 0.0
    %1829 = vmatpush1.msra.mxu0 0.0
    %1830 = vmatprep.subr.mxu0 0.0
    %1831 = vmatpush1.msra.mxu0 0.0
    %1832 = vmatprep.subr.mxu0 0.0
    %1833 = vmatpush1.msra.mxu0 0.0
    %1834 = vmatprep.subr.mxu0 0.0
    %1835 = vmatpush1.msra.mxu0 0.0
    %1836 = vmatprep.subr.mxu0 0.0
    %1837 = vmatpush1.msra.mxu0 0.0
    %1838 = vmatprep.subr.mxu0 0.0
    %1839 = vmatpush1.msra.mxu0 0.0
    %1840 = vmatprep.subr.mxu0 0.0
    %1841 = vmatpush1.msra.mxu0 0.0
    %1842 = vmatprep.subr.mxu0 0.0
    %1843 = vmatpush1.msra.mxu0 0.0
    %1844 = vmatprep.subr.mxu0 0.0
    %1845 = vmatpush1.msra.mxu0 0.0
    %1846 = vmatprep.subr.mxu0 0.0
    %1847 = vmatpush1.msra.mxu0 0.0
    %1848 = vmatprep.subr.mxu0 0.0
    %1849 = vmatpush1.msra.mxu0 0.0
    %1850 = vmatprep.subr.mxu0 0.0
    %1851 = vmatpush1.msra.mxu0 0.0
    %1852 = vmatprep.subr.mxu0 0.0
    %1853 = vmatpush1.msra.mxu0 0.0
    %1854 = vmatprep.subr.mxu0 0.0
    %1855 = vmatpush1.msra.mxu0 0.0
    %1856 = vmatprep.subr.mxu0 0.0
    %1857 = vmatpush1.msra.mxu0 0.0
    %1858 = vmatprep.subr.mxu0 0.0
    %1859 = vmatpush1.msra.mxu0 0.0
    %1860 = vmatprep.subr.mxu0 0.0
    %1861 = vmatpush1.msra.mxu0 0.0
    %1862 = vmatprep.subr.mxu0 0.0
    %1863 = vmatpush1.msra.mxu0 0.0
    %1864 = vmatprep.subr.mxu0 0.0
    %1865 = vmatpush1.msra.mxu0 0.0
    %1866 = vmatprep.subr.mxu0 0.0
    %1867 = vmatpush1.msra.mxu0 0.0
    %1868 = vmatprep.subr.mxu0 0.0
    %1869 = vmatpush1.msra.mxu0 0.0
    %1870 = vmatprep.subr.mxu0 0.0
    %1871 = vmatpush1.msra.mxu0 0.0
    %1872 = vmatprep.subr.mxu0 0.0
    %1873 = vmatpush1.msra.mxu0 0.0
    %1874 = vmatprep.subr.mxu0 0.0
    %1875 = vmatpush1.msra.mxu0 0.0
    %1876 = vmatprep.subr.mxu0 0.0
    %1877 = vmatpush1.msra.mxu0 0.0
    %1878 = vmatprep.subr.mxu0 0.0
    %1879 = vmatpush1.msra.mxu0 0.0
    %1880 = vmatprep.subr.mxu0 0.0
    %1881 = vmatpush1.msra.mxu0 0.0
    %1882 = vmatprep.mubr.f32.mxu0 0.0
    %1883 = vmatmul.mubr.f32.gmra.mrb[0].mxu0 %v1816
    %v1884 = vpop.f32.mrb[0].mxu0
    %v1885 = vadd.f32 0.0, %v1884
    %v1886 = vpop.f32.mrb[0].mxu0
    %1887 = vdwg.mxu0
    %1889 = vrot.lane.b32.xlu0 %v1885, 8
    %v1890 = vpop.permute.xlu0 %1889
    %1892 = vst.msk [vmem:[#allocation2 + $0x8] sm:$0xff] %vm993, %v1890
    %1893 = vset.pattern.permute.xlu0 12
    %1894 = vperm.xlu0 %1893, %v515
    %v1895 = vpop.permute.xlu0 %1894
    %v1896 = vlaneseq
    %v1897 = vshrl.u32 %v1896, 7
    %v1898 = vsub.s32 4, %v1897
    %v1899 = vrot.slane %v551, %v1898
    %vm1900 = vcmp.eq.s32.totalorder %v1895, %v1899
    %1901 = vset.pattern.permute.xlu0 13
    %1902 = vperm.xlu0 %1901, %v515
    %v1903 = vpop.permute.xlu0 %1902
    %v1904 = vlaneseq
    %v1905 = vshrl.u32 %v1904, 7
    %v1906 = vsub.s32 5, %v1905
    %v1907 = vrot.slane %v551, %v1906
    %vm1908 = vcmp.eq.s32.totalorder %v1903, %v1907
    %vm1909 = vmor %vm1900, %vm1908
    %1910 = vrot.lane.b32.xlu0 %v110, 112
    %v1911 = vpop.permute.xlu0 %1910
    %1912 = vrot.lane.b32.xlu0 %v110, 80
    %v1913 = vpop.permute.xlu0 %1912
    %v1914 = vsel %vm574, %v1911, 0
    %v1916 = vsel %vm574, %v1913, 0
    %1918 = vmatprep.subr.mxu0 0.0
    %1919 = vmatpush1.xpose.msra.mxu0 %v1916
    %1920 = vmatprep.subr.mxu0 0.0
    %1921 = vmatpush1.xpose.msra.mxu0 0.0
    %1922 = vmatprep.subr.mxu0 0.0
    %1923 = vmatpush1.xpose.msra.mxu0 0.0
    %1924 = vmatprep.subr.mxu0 0.0
    %1925 = vmatpush1.xpose.msra.mxu0 0.0
    %1926 = vmatprep.subr.mxu0 0.0
    %1927 = vmatpush1.xpose.msra.mxu0 0.0
    %1928 = vmatprep.subr.mxu0 0.0
    %1929 = vmatpush1.xpose.msra.mxu0 0.0
    %1930 = vmatprep.subr.mxu0 0.0
    %1931 = vmatpush1.xpose.msra.mxu0 0.0
    %1932 = vmatprep.subr.mxu0 0.0
    %1933 = vmatpush1.xpose.msra.mxu0 0.0
    %1934 = vmatprep.subr.mxu0 0.0
    %1935 = vmatpush1.xpose.msra.mxu0 0.0
    %1936 = vmatprep.subr.mxu0 0.0
    %1937 = vmatpush1.xpose.msra.mxu0 0.0
    %1938 = vmatprep.subr.mxu0 0.0
    %1939 = vmatpush1.xpose.msra.mxu0 0.0
    %1940 = vmatprep.subr.mxu0 0.0
    %1941 = vmatpush1.xpose.msra.mxu0 0.0
    %1942 = vmatprep.subr.mxu0 0.0
    %1943 = vmatpush1.xpose.msra.mxu0 0.0
    %1944 = vmatprep.subr.mxu0 0.0
    %1945 = vmatpush1.xpose.msra.mxu0 0.0
    %1946 = vmatprep.subr.mxu0 0.0
    %1947 = vmatpush1.xpose.msra.mxu0 0.0
    %1948 = vmatprep.subr.mxu0 0.0
    %1949 = vmatpush1.xpose.msra.mxu0 0.0
    %1950 = vmatprep.subr.mxu0 0.0
    %1951 = vmatpush1.xpose.msra.mxu0 0.0
    %1952 = vmatprep.subr.mxu0 0.0
    %1953 = vmatpush1.xpose.msra.mxu0 0.0
    %1954 = vmatprep.subr.mxu0 0.0
    %1955 = vmatpush1.xpose.msra.mxu0 0.0
    %1956 = vmatprep.subr.mxu0 0.0
    %1957 = vmatpush1.xpose.msra.mxu0 0.0
    %1958 = vmatprep.subr.mxu0 0.0
    %1959 = vmatpush1.xpose.msra.mxu0 0.0
    %1960 = vmatprep.subr.mxu0 0.0
    %1961 = vmatpush1.xpose.msra.mxu0 0.0
    %1962 = vmatprep.subr.mxu0 0.0
    %1963 = vmatpush1.xpose.msra.mxu0 0.0
    %1964 = vmatprep.subr.mxu0 0.0
    %1965 = vmatpush1.xpose.msra.mxu0 0.0
    %1966 = vmatprep.subr.mxu0 0.0
    %1967 = vmatpush1.xpose.msra.mxu0 0.0
    %1968 = vmatprep.subr.mxu0 0.0
    %1969 = vmatpush1.xpose.msra.mxu0 0.0
    %1970 = vmatprep.subr.mxu0 0.0
    %1971 = vmatpush1.xpose.msra.mxu0 0.0
    %1972 = vmatprep.subr.mxu0 0.0
    %1973 = vmatpush1.xpose.msra.mxu0 0.0
    %1974 = vmatprep.subr.mxu0 0.0
    %1975 = vmatpush1.xpose.msra.mxu0 0.0
    %1976 = vmatprep.subr.mxu0 0.0
    %1977 = vmatpush1.xpose.msra.mxu0 0.0
    %1978 = vmatprep.subr.mxu0 0.0
    %1979 = vmatpush1.xpose.msra.mxu0 0.0
    %1980 = vmatprep.subr.mxu0 0.0
    %1981 = vmatpush1.xpose.msra.mxu0 0.0
    %1982 = vmatprep.mubr.f32.mxu0 0.0
    %1983 = vmatmul.mubr.f32.gmra.mrb[0].mxu0 %v1914
    %v1984 = vpop.f32.mrb[0].mxu0
    %v1985 = vadd.f32 0.0, %v1984
    %v1986 = vpop.f32.mrb[0].mxu0
    %1987 = vdwg.mxu0
    %1989 = vrot.lane.b32.xlu0 %v1985, 8
    %v1990 = vpop.permute.xlu0 %1989
    %v1992 = vsel %vm1909, %v1990, 0.0
    %1994 = vrot.lane.b32.xlu0 %v1992, 120
    %v1995 = vpop.permute.xlu0 %1994
    %1997 = vxpose.xlu0.b32.start [1/16] %v1995, 128
    %1998 = vxpose.xlu0.b32.cont [2/16] 0.0, 128
    %1999 = vxpose.xlu0.b32.cont [3/16] 0.0, 128
    %2000 = vxpose.xlu0.b32.cont [4/16] 0.0, 128
    %2001 = vxpose.xlu0.b32.cont [5/16] 0.0, 128
    %2002 = vxpose.xlu0.b32.cont [6/16] 0.0, 128
    %2003 = vxpose.xlu0.b32.cont [7/16] 0.0, 128
    %2004 = vxpose.xlu0.b32.cont [8/16] 0.0, 128
    %2005 = vxpose.xlu0.b32.cont [9/16] 0.0, 128
    %2006 = vxpose.xlu0.b32.cont [10/16] 0.0, 128
    %2007 = vxpose.xlu0.b32.cont [11/16] 0.0, 128
    %2008 = vxpose.xlu0.b32.cont [12/16] 0.0, 128
    %2009 = vxpose.xlu0.b32.cont [13/16] 0.0, 128
    %2010 = vxpose.xlu0.b32.cont [14/16] 0.0, 128
    %2011 = vxpose.xlu0.b32.cont [15/16] 0.0, 128
    %2012 = vxpose.xlu0.b32.end [16/16] 0.0, 128
    %v2013 = vpop.trf.xlu0
    %v2014 = vpop.trf.xlu0
    %v2015 = vpop.trf.xlu0
    %v2016 = vpop.trf.xlu0
    %v2017 = vpop.trf.xlu0
    %v2018 = vpop.trf.xlu0
    %v2019 = vpop.trf.xlu0
    %v2020 = vpop.trf.xlu0
    %v2021 = vpop.trf.xlu0
    %v2022 = vpop.trf.xlu0
    %v2023 = vpop.trf.xlu0
    %v2024 = vpop.trf.xlu0
    %v2025 = vpop.trf.xlu0
    %v2026 = vpop.trf.xlu0
    %v2027 = vpop.trf.xlu0
    %v2028 = vpop.trf.xlu0
    %v2029 = vsel %vm556, %v1995, %v2013
    %v2030 = vmul.f32 %v2029, 0.35355338
    %v2031 = vsel %vm574, %v2030, -inf
    %2032 = vmax.xlane.f32.xlu0 %v2031
    %v2033 = vpop.xlane.xlu0 %2032
    %v2034 = vsub.f32 %v2030, %v2033
    %v2035 = vmul.f32 %v2034, 1.442695
    %v2036 = vpow.pop %v2035
    %v2037 = vsel %vm574, %v2036, 0.0
    %2038 = vadd.xlane.f32.xlu0 %v2037
    %v2039 = vpop.xlane.xlu0 %2038
    %v2040 = vrcp.pop %v2039
    %v2041 = vmul.f32 %v2036, %v2040
    %2042 = vrot.lane.b32.xlu0 %v110, 48
    %v2043 = vpop.permute.xlu0 %2042
    %v2046 = vsel %vm574, %v2041, 0
    %2048 = vmatprep.subr.mxu0 0.0
    %2049 = vmatpush1.msra.mxu0 %v2043
    %2050 = vmatprep.subr.mxu0 0.0
    %2051 = vmatpush1.msra.mxu0 0.0
    %2052 = vmatprep.subr.mxu0 0.0
    %2053 = vmatpush1.msra.mxu0 0.0
    %2054 = vmatprep.subr.mxu0 0.0
    %2055 = vmatpush1.msra.mxu0 0.0
    %2056 = vmatprep.subr.mxu0 0.0
    %2057 = vmatpush1.msra.mxu0 0.0
    %2058 = vmatprep.subr.mxu0 0.0
    %2059 = vmatpush1.msra.mxu0 0.0
    %2060 = vmatprep.subr.mxu0 0.0
    %2061 = vmatpush1.msra.mxu0 0.0
    %2062 = vmatprep.subr.mxu0 0.0
    %2063 = vmatpush1.msra.mxu0 0.0
    %2064 = vmatprep.subr.mxu0 0.0
    %2065 = vmatpush1.msra.mxu0 0.0
    %2066 = vmatprep.subr.mxu0 0.0
    %2067 = vmatpush1.msra.mxu0 0.0
    %2068 = vmatprep.subr.mxu0 0.0
    %2069 = vmatpush1.msra.mxu0 0.0
    %2070 = vmatprep.subr.mxu0 0.0
    %2071 = vmatpush1.msra.mxu0 0.0
    %2072 = vmatprep.subr.mxu0 0.0
    %2073 = vmatpush1.msra.mxu0 0.0
    %2074 = vmatprep.subr.mxu0 0.0
    %2075 = vmatpush1.msra.mxu0 0.0
    %2076 = vmatprep.subr.mxu0 0.0
    %2077 = vmatpush1.msra.mxu0 0.0
    %2078 = vmatprep.subr.mxu0 0.0
    %2079 = vmatpush1.msra.mxu0 0.0
    %2080 = vmatprep.subr.mxu0 0.0
    %2081 = vmatpush1.msra.mxu0 0.0
    %2082 = vmatprep.subr.mxu0 0.0
    %2083 = vmatpush1.msra.mxu0 0.0
    %2084 = vmatprep.subr.mxu0 0.0
    %2085 = vmatpush1.msra.mxu0 0.0
    %2086 = vmatprep.subr.mxu0 0.0
    %2087 = vmatpush1.msra.mxu0 0.0
    %2088 = vmatprep.subr.mxu0 0.0
    %2089 = vmatpush1.msra.mxu0 0.0
    %2090 = vmatprep.subr.mxu0 0.0
    %2091 = vmatpush1.msra.mxu0 0.0
    %2092 = vmatprep.subr.mxu0 0.0
    %2093 = vmatpush1.msra.mxu0 0.0
    %2094 = vmatprep.subr.mxu0 0.0
    %2095 = vmatpush1.msra.mxu0 0.0
    %2096 = vmatprep.subr.mxu0 0.0
    %2097 = vmatpush1.msra.mxu0 0.0
    %2098 = vmatprep.subr.mxu0 0.0
    %2099 = vmatpush1.msra.mxu0 0.0
    %2100 = vmatprep.subr.mxu0 0.0
    %2101 = vmatpush1.msra.mxu0 0.0
    %2102 = vmatprep.subr.mxu0 0.0
    %2103 = vmatpush1.msra.mxu0 0.0
    %2104 = vmatprep.subr.mxu0 0.0
    %2105 = vmatpush1.msra.mxu0 0.0
    %2106 = vmatprep.subr.mxu0 0.0
    %2107 = vmatpush1.msra.mxu0 0.0
    %2108 = vmatprep.subr.mxu0 0.0
    %2109 = vmatpush1.msra.mxu0 0.0
    %2110 = vmatprep.subr.mxu0 0.0
    %2111 = vmatpush1.msra.mxu0 0.0
    %2112 = vmatprep.mubr.f32.mxu0 0.0
    %2113 = vmatmul.mubr.f32.gmra.mrb[0].mxu0 %v2046
    %v2114 = vpop.f32.mrb[0].mxu0
    %v2115 = vadd.f32 0.0, %v2114
    %v2116 = vpop.f32.mrb[0].mxu0
    %2117 = vdwg.mxu0
    %2119 = vrot.lane.b32.xlu0 %v2115, 16
    %v2120 = vpop.permute.xlu0 %2119
    %2122 = vst.msk [vmem:[#allocation2 + $0x8] sm:$0xff] %vm1216, %v2120
    %2123 = vset.pattern.permute.xlu0 14
    %2124 = vperm.xlu0 %2123, %v515
    %v2125 = vpop.permute.xlu0 %2124
    %v2126 = vlaneseq
    %v2127 = vshrl.u32 %v2126, 7
    %v2128 = vsub.s32 6, %v2127
    %v2129 = vrot.slane %v551, %v2128
    %vm2130 = vcmp.eq.s32.totalorder %v2125, %v2129
    %2131 = vset.pattern.permute.xlu0 15
    %2132 = vperm.xlu0 %2131, %v515
    %v2133 = vpop.permute.xlu0 %2132
    %v2134 = vlaneseq
    %v2135 = vshrl.u32 %v2134, 7
    %v2136 = vsub.s32 7, %v2135
    %v2137 = vrot.slane %v551, %v2136
    %vm2138 = vcmp.eq.s32.totalorder %v2133, %v2137
    %vm2139 = vmor %vm2130, %vm2138
    %2140 = vrot.lane.b32.xlu0 %v110, 104
    %v2141 = vpop.permute.xlu0 %2140
    %2142 = vrot.lane.b32.xlu0 %v110, 72
    %v2143 = vpop.permute.xlu0 %2142
    %v2144 = vsel %vm574, %v2141, 0
    %v2146 = vsel %vm574, %v2143, 0
    %2148 = vmatprep.subr.mxu0 0.0
    %2149 = vmatpush1.xpose.msra.mxu0 %v2146
    %2150 = vmatprep.subr.mxu0 0.0
    %2151 = vmatpush1.xpose.msra.mxu0 0.0
    %2152 = vmatprep.subr.mxu0 0.0
    %2153 = vmatpush1.xpose.msra.mxu0 0.0
    %2154 = vmatprep.subr.mxu0 0.0
    %2155 = vmatpush1.xpose.msra.mxu0 0.0
    %2156 = vmatprep.subr.mxu0 0.0
    %2157 = vmatpush1.xpose.msra.mxu0 0.0
    %2158 = vmatprep.subr.mxu0 0.0
    %2159 = vmatpush1.xpose.msra.mxu0 0.0
    %2160 = vmatprep.subr.mxu0 0.0
    %2161 = vmatpush1.xpose.msra.mxu0 0.0
    %2162 = vmatprep.subr.mxu0 0.0
    %2163 = vmatpush1.xpose.msra.mxu0 0.0
    %2164 = vmatprep.subr.mxu0 0.0
    %2165 = vmatpush1.xpose.msra.mxu0 0.0
    %2166 = vmatprep.subr.mxu0 0.0
    %2167 = vmatpush1.xpose.msra.mxu0 0.0
    %2168 = vmatprep.subr.mxu0 0.0
    %2169 = vmatpush1.xpose.msra.mxu0 0.0
    %2170 = vmatprep.subr.mxu0 0.0
    %2171 = vmatpush1.xpose.msra.mxu0 0.0
    %2172 = vmatprep.subr.mxu0 0.0
    %2173 = vmatpush1.xpose.msra.mxu0 0.0
    %2174 = vmatprep.subr.mxu0 0.0
    %2175 = vmatpush1.xpose.msra.mxu0 0.0
    %2176 = vmatprep.subr.mxu0 0.0
    %2177 = vmatpush1.xpose.msra.mxu0 0.0
    %2178 = vmatprep.subr.mxu0 0.0
    %2179 = vmatpush1.xpose.msra.mxu0 0.0
    %2180 = vmatprep.subr.mxu0 0.0
    %2181 = vmatpush1.xpose.msra.mxu0 0.0
    %2182 = vmatprep.subr.mxu0 0.0
    %2183 = vmatpush1.xpose.msra.mxu0 0.0
    %2184 = vmatprep.subr.mxu0 0.0
    %2185 = vmatpush1.xpose.msra.mxu0 0.0
    %2186 = vmatprep.subr.mxu0 0.0
    %2187 = vmatpush1.xpose.msra.mxu0 0.0
    %2188 = vmatprep.subr.mxu0 0.0
    %2189 = vmatpush1.xpose.msra.mxu0 0.0
    %2190 = vmatprep.subr.mxu0 0.0
    %2191 = vmatpush1.xpose.msra.mxu0 0.0
    %2192 = vmatprep.subr.mxu0 0.0
    %2193 = vmatpush1.xpose.msra.mxu0 0.0
    %2194 = vmatprep.subr.mxu0 0.0
    %2195 = vmatpush1.xpose.msra.mxu0 0.0
    %2196 = vmatprep.subr.mxu0 0.0
    %2197 = vmatpush1.xpose.msra.mxu0 0.0
    %2198 = vmatprep.subr.mxu0 0.0
    %2199 = vmatpush1.xpose.msra.mxu0 0.0
    %2200 = vmatprep.subr.mxu0 0.0
    %2201 = vmatpush1.xpose.msra.mxu0 0.0
    %2202 = vmatprep.subr.mxu0 0.0
    %2203 = vmatpush1.xpose.msra.mxu0 0.0
    %2204 = vmatprep.subr.mxu0 0.0
    %2205 = vmatpush1.xpose.msra.mxu0 0.0
    %2206 = vmatprep.subr.mxu0 0.0
    %2207 = vmatpush1.xpose.msra.mxu0 0.0
    %2208 = vmatprep.subr.mxu0 0.0
    %2209 = vmatpush1.xpose.msra.mxu0 0.0
    %2210 = vmatprep.subr.mxu0 0.0
    %2211 = vmatpush1.xpose.msra.mxu0 0.0
    %2212 = vmatprep.mubr.f32.mxu0 0.0
    %2213 = vmatmul.mubr.f32.gmra.mrb[0].mxu0 %v2144
    %v2214 = vpop.f32.mrb[0].mxu0
    %v2215 = vadd.f32 0.0, %v2214
    %v2216 = vpop.f32.mrb[0].mxu0
    %2217 = vdwg.mxu0
    %2219 = vrot.lane.b32.xlu0 %v2215, 8
    %v2220 = vpop.permute.xlu0 %2219
    %v2222 = vsel %vm2139, %v2220, 0.0
    %2224 = vrot.lane.b32.xlu0 %v2222, 120
    %v2225 = vpop.permute.xlu0 %2224
    %2227 = vxpose.xlu0.b32.start [1/16] %v2225, 128
    %2228 = vxpose.xlu0.b32.cont [2/16] 0.0, 128
    %2229 = vxpose.xlu0.b32.cont [3/16] 0.0, 128
    %2230 = vxpose.xlu0.b32.cont [4/16] 0.0, 128
    %2231 = vxpose.xlu0.b32.cont [5/16] 0.0, 128
    %2232 = vxpose.xlu0.b32.cont [6/16] 0.0, 128
    %2233 = vxpose.xlu0.b32.cont [7/16] 0.0, 128
    %2234 = vxpose.xlu0.b32.cont [8/16] 0.0, 128
    %2235 = vxpose.xlu0.b32.cont [9/16] 0.0, 128
    %2236 = vxpose.xlu0.b32.cont [10/16] 0.0, 128
    %2237 = vxpose.xlu0.b32.cont [11/16] 0.0, 128
    %2238 = vxpose.xlu0.b32.cont [12/16] 0.0, 128
    %2239 = vxpose.xlu0.b32.cont [13/16] 0.0, 128
    %2240 = vxpose.xlu0.b32.cont [14/16] 0.0, 128
    %2241 = vxpose.xlu0.b32.cont [15/16] 0.0, 128
    %2242 = vxpose.xlu0.b32.end [16/16] 0.0, 128
    %v2243 = vpop.trf.xlu0
    %v2244 = vpop.trf.xlu0
    %v2245 = vpop.trf.xlu0
    %v2246 = vpop.trf.xlu0
    %v2247 = vpop.trf.xlu0
    %v2248 = vpop.trf.xlu0
    %v2249 = vpop.trf.xlu0
    %v2250 = vpop.trf.xlu0
    %v2251 = vpop.trf.xlu0
    %v2252 = vpop.trf.xlu0
    %v2253 = vpop.trf.xlu0
    %v2254 = vpop.trf.xlu0
    %v2255 = vpop.trf.xlu0
    %v2256 = vpop.trf.xlu0
    %v2257 = vpop.trf.xlu0
    %v2258 = vpop.trf.xlu0
    %v2259 = vsel %vm556, %v2225, %v2243
    %v2260 = vmul.f32 %v2259, 0.35355338
    %v2261 = vsel %vm574, %v2260, -inf
    %2262 = vmax.xlane.f32.xlu0 %v2261
    %v2263 = vpop.xlane.xlu0 %2262
    %v2264 = vsub.f32 %v2260, %v2263
    %v2265 = vmul.f32 %v2264, 1.442695
    %v2266 = vpow.pop %v2265
    %v2267 = vsel %vm574, %v2266, 0.0
    %2268 = vadd.xlane.f32.xlu0 %v2267
    %v2269 = vpop.xlane.xlu0 %2268
    %v2270 = vrcp.pop %v2269
    %v2271 = vmul.f32 %v2266, %v2270
    %2272 = vrot.lane.b32.xlu0 %v110, 40
    %v2273 = vpop.permute.xlu0 %2272
    %v2276 = vsel %vm574, %v2271, 0
    %2278 = vmatprep.subr.mxu0 0.0
    %2279 = vmatpush1.msra.mxu0 %v2273
    %2280 = vmatprep.subr.mxu0 0.0
    %2281 = vmatpush1.msra.mxu0 0.0
    %2282 = vmatprep.subr.mxu0 0.0
    %2283 = vmatpush1.msra.mxu0 0.0
    %2284 = vmatprep.subr.mxu0 0.0
    %2285 = vmatpush1.msra.mxu0 0.0
    %2286 = vmatprep.subr.mxu0 0.0
    %2287 = vmatpush1.msra.mxu0 0.0
    %2288 = vmatprep.subr.mxu0 0.0
    %2289 = vmatpush1.msra.mxu0 0.0
    %2290 = vmatprep.subr.mxu0 0.0
    %2291 = vmatpush1.msra.mxu0 0.0
    %2292 = vmatprep.subr.mxu0 0.0
    %2293 = vmatpush1.msra.mxu0 0.0
    %2294 = vmatprep.subr.mxu0 0.0
    %2295 = vmatpush1.msra.mxu0 0.0
    %2296 = vmatprep.subr.mxu0 0.0
    %2297 = vmatpush1.msra.mxu0 0.0
    %2298 = vmatprep.subr.mxu0 0.0
    %2299 = vmatpush1.msra.mxu0 0.0
    %2300 = vmatprep.subr.mxu0 0.0
    %2301 = vmatpush1.msra.mxu0 0.0
    %2302 = vmatprep.subr.mxu0 0.0
    %2303 = vmatpush1.msra.mxu0 0.0
    %2304 = vmatprep.subr.mxu0 0.0
    %2305 = vmatpush1.msra.mxu0 0.0
    %2306 = vmatprep.subr.mxu0 0.0
    %2307 = vmatpush1.msra.mxu0 0.0
    %2308 = vmatprep.subr.mxu0 0.0
    %2309 = vmatpush1.msra.mxu0 0.0
    %2310 = vmatprep.subr.mxu0 0.0
    %2311 = vmatpush1.msra.mxu0 0.0
    %2312 = vmatprep.subr.mxu0 0.0
    %2313 = vmatpush1.msra.mxu0 0.0
    %2314 = vmatprep.subr.mxu0 0.0
    %2315 = vmatpush1.msra.mxu0 0.0
    %2316 = vmatprep.subr.mxu0 0.0
    %2317 = vmatpush1.msra.mxu0 0.0
    %2318 = vmatprep.subr.mxu0 0.0
    %2319 = vmatpush1.msra.mxu0 0.0
    %2320 = vmatprep.subr.mxu0 0.0
    %2321 = vmatpush1.msra.mxu0 0.0
    %2322 = vmatprep.subr.mxu0 0.0
    %2323 = vmatpush1.msra.mxu0 0.0
    %2324 = vmatprep.subr.mxu0 0.0
    %2325 = vmatpush1.msra.mxu0 0.0
    %2326 = vmatprep.subr.mxu0 0.0
    %2327 = vmatpush1.msra.mxu0 0.0
    %2328 = vmatprep.subr.mxu0 0.0
    %2329 = vmatpush1.msra.mxu0 0.0
    %2330 = vmatprep.subr.mxu0 0.0
    %2331 = vmatpush1.msra.mxu0 0.0
    %2332 = vmatprep.subr.mxu0 0.0
    %2333 = vmatpush1.msra.mxu0 0.0
    %2334 = vmatprep.subr.mxu0 0.0
    %2335 = vmatpush1.msra.mxu0 0.0
    %2336 = vmatprep.subr.mxu0 0.0
    %2337 = vmatpush1.msra.mxu0 0.0
    %2338 = vmatprep.subr.mxu0 0.0
    %2339 = vmatpush1.msra.mxu0 0.0
    %2340 = vmatprep.subr.mxu0 0.0
    %2341 = vmatpush1.msra.mxu0 0.0
    %2342 = vmatprep.mubr.f32.mxu0 0.0
    %2343 = vmatmul.mubr.f32.gmra.mrb[0].mxu0 %v2276
    %v2344 = vpop.f32.mrb[0].mxu0
    %v2345 = vadd.f32 0.0, %v2344
    %v2346 = vpop.f32.mrb[0].mxu0
    %2347 = vdwg.mxu0
    %2349 = vrot.lane.b32.xlu0 %v2345, 24
    %v2350 = vpop.permute.xlu0 %2349
    %2352 = vst.msk [vmem:[#allocation2 + $0x8] sm:$0xff] %vm1439, %v2350
    %v2353 = vld [vmem:[#allocation2] sm:$0xff]
    %v2354 = vld [vmem:[#allocation2 + $0x8] sm:$0xff]
    %v2355 = vld [vmem:[%s1] sm:$0xff]
    %v2356 = vld [vmem:[%s1 + $0x10] sm:$0xff]
    %v2357 = vld [vmem:[%s1 + $0x20] sm:$0xff]
    %v2358 = vld [vmem:[%s1 + $0x30] sm:$0xff]
    %2363 = vrot.lane.b32.xlu0 %v2355, 32
    %v2364 = vpop.permute.xlu0 %2363
    %2365 = vrot.lane.b32.xlu0 %v2356, 32
    %v2366 = vpop.permute.xlu0 %2365
    %2367 = vrot.lane.b32.xlu0 %v2357, 32
    %v2368 = vpop.permute.xlu0 %2367
    %2369 = vrot.lane.b32.xlu0 %v2358, 32
    %v2370 = vpop.permute.xlu0 %2369
    %2376 = vrot.lane.b32.xlu0 %v30, 32
    %v2377 = vpop.permute.xlu0 %2376
    %v2380 = vsel %vm31, %v2353, 0
    %v2383 = vsel %vm31, %v2354, 0
    %2385 = vmatprep.subr.mxu0 0.0
    %2386 = vmatpush1.msra.mxu0 %v2364
    %2387 = vmatprep.subr.mxu0 0.0
    %2388 = vmatpush1.msra.mxu0 %v2366
    %2389 = vmatprep.subr.mxu0 0.0
    %2390 = vmatpush1.msra.mxu0 %v2368
    %2391 = vmatprep.subr.mxu0 0.0
    %2392 = vmatpush1.msra.mxu0 %v2370
    %2393 = vmatprep.subr.mxu0 0.0
    %2394 = vmatpush1.msra.mxu0 0.0
    %2395 = vmatprep.subr.mxu0 0.0
    %2396 = vmatpush1.msra.mxu0 0.0
    %2397 = vmatprep.subr.mxu0 0.0
    %2398 = vmatpush1.msra.mxu0 0.0
    %2399 = vmatprep.subr.mxu0 0.0
    %2400 = vmatpush1.msra.mxu0 0.0
    %2401 = vmatprep.subr.mxu0 0.0
    %2402 = vmatpush1.msra.mxu0 0.0
    %2403 = vmatprep.subr.mxu0 0.0
    %2404 = vmatpush1.msra.mxu0 0.0
    %2405 = vmatprep.subr.mxu0 0.0
    %2406 = vmatpush1.msra.mxu0 0.0
    %2407 = vmatprep.subr.mxu0 0.0
    %2408 = vmatpush1.msra.mxu0 0.0
    %2409 = vmatprep.subr.mxu0 0.0
    %2410 = vmatpush1.msra.mxu0 0.0
    %2411 = vmatprep.subr.mxu0 0.0
    %2412 = vmatpush1.msra.mxu0 0.0
    %2413 = vmatprep.subr.mxu0 0.0
    %2414 = vmatpush1.msra.mxu0 0.0
    %2415 = vmatprep.subr.mxu0 0.0
    %2416 = vmatpush1.msra.mxu0 0.0
    %2417 = vmatprep.subr.mxu0 0.0
    %2418 = vmatpush1.msra.mxu0 0.0
    %2419 = vmatprep.subr.mxu0 0.0
    %2420 = vmatpush1.msra.mxu0 0.0
    %2421 = vmatprep.subr.mxu0 0.0
    %2422 = vmatpush1.msra.mxu0 0.0
    %2423 = vmatprep.subr.mxu0 0.0
    %2424 = vmatpush1.msra.mxu0 0.0
    %2425 = vmatprep.subr.mxu0 0.0
    %2426 = vmatpush1.msra.mxu0 0.0
    %2427 = vmatprep.subr.mxu0 0.0
    %2428 = vmatpush1.msra.mxu0 0.0
    %2429 = vmatprep.subr.mxu0 0.0
    %2430 = vmatpush1.msra.mxu0 0.0
    %2431 = vmatprep.subr.mxu0 0.0
    %2432 = vmatpush1.msra.mxu0 0.0
    %2433 = vmatprep.subr.mxu0 0.0
    %2434 = vmatpush1.msra.mxu0 0.0
    %2435 = vmatprep.subr.mxu0 0.0
    %2436 = vmatpush1.msra.mxu0 0.0
    %2437 = vmatprep.subr.mxu0 0.0
    %2438 = vmatpush1.msra.mxu0 0.0
    %2439 = vmatprep.subr.mxu0 0.0
    %2440 = vmatpush1.msra.mxu0 0.0
    %2441 = vmatprep.subr.mxu0 0.0
    %2442 = vmatpush1.msra.mxu0 0.0
    %2443 = vmatprep.subr.mxu0 0.0
    %2444 = vmatpush1.msra.mxu0 0.0
    %2445 = vmatprep.subr.mxu0 0.0
    %2446 = vmatpush1.msra.mxu0 0.0
    %2447 = vmatprep.subr.mxu0 0.0
    %2448 = vmatpush1.msra.mxu0 0.0
    %2449 = vmatprep.mubr.f32.mxu0 0.0
    %2450 = vmatmul.mubr.f32.gmra.mrb[0].mxu0 %v2380
    %v2451 = vpop.f32.mrb[0].mxu0
    %v2452 = vadd.f32 %v2377, %v2451
    %v2453 = vpop.f32.mrb[0].mxu0
    %2454 = vmatprep.mubr.f32.mxu0 0.0
    %2455 = vmatmul.mubr.f32.gmra.mrb[0].mxu0 %v2383
    %v2456 = vpop.f32.mrb[0].mxu0
    %v2457 = vadd.f32 %v2377, %v2456
    %v2458 = vpop.f32.mrb[0].mxu0
    %2459 = vdwg.mxu0
    %v2460 = vadd.f32 %v2452, %v18
    %v2461 = vadd.f32 %v2457, %v19
    %v2462 = vsel %vm31, %v2460, 0.0
    %2463 = vadd.xlane.f32.xlu0 %v2462
    %v2464 = vpop.xlane.xlu0 %2463
    %v2465 = vsel %vm31, %v2461, 0.0
    %2466 = vadd.xlane.f32.xlu0 %v2465
    %v2467 = vpop.xlane.xlu0 %2466
    %v2468 = vrcp.pop 32.0
    %v2469 = vmul.f32 %v2464, %v2468
    %v2470 = vmul.f32 %v2467, %v2468
    %v2471 = vsub.f32 %v2460, %v2469
    %v2472 = vsub.f32 %v2461, %v2470
    %v2473 = vmul.f32 %v2471, %v2471
    %v2474 = vmul.f32 %v2472, %v2472
    %v2475 = vsel %vm31, %v2473, 0.0
    %2476 = vadd.xlane.f32.xlu0 %v2475
    %v2477 = vpop.xlane.xlu0 %2476
    %v2478 = vsel %vm31, %v2474, 0.0
    %2479 = vadd.xlane.f32.xlu0 %v2478
    %v2480 = vpop.xlane.xlu0 %2479
    %v2481 = vmul.f32 %v2477, %v2468
    %v2482 = vmul.f32 %v2480, %v2468
    %v2483 = vadd.f32 %v2481, 1e-12
    %v2484 = vadd.f32 %v2482, 1e-12
    %v2485 = vrsqrt.pop %v2483
    %v2486 = vrsqrt.pop %v2484
    %v2487 = vmul.f32 %v2471, %v2485
    %v2488 = vmul.f32 %v2472, %v2486
    %v2489 = vlaneseq
    %v2490 = vshrl.u32 %v2489, 7
    %v2491 = vsub.s32 0, %v2490
    %v2492 = vrot.slane %v21, %v2491
    %v2493 = vmul.f32 %v2487, %v2492
    %v2494 = vmul.f32 %v2488, %v2492
    %2496 = vrot.lane.b32.xlu0 %v2492, 96
    %v2497 = vpop.permute.xlu0 %2496
    %v2499 = vadd.f32 %v2493, %v2497
    %v2500 = vadd.f32 %v2494, %v2497
    %v2501 = vld [vmem:[%s1 + $0x8] sm:$0xff]
    %v2502 = vld [vmem:[%s1 + $0x18] sm:$0xff]
    %v2503 = vld [vmem:[%s1 + $0x28] sm:$0xff]
    %v2504 = vld [vmem:[%s1 + $0x38] sm:$0xff]
    %2505 = vrot.lane.b32.xlu0 %v2492, 64
    %v2506 = vpop.permute.xlu0 %2505
    %v2509 = vsel %vm31, %v2499, 0
    %v2512 = vsel %vm31, %v2500, 0
    %2514 = vmatprep.subr.mxu0 0.0
    %2515 = vmatpush1.msra.mxu0 %v2501
    %2516 = vmatprep.subr.mxu0 0.0
    %2517 = vmatpush1.msra.mxu0 %v2502
    %2518 = vmatprep.subr.mxu0 0.0
    %2519 = vmatpush1.msra.mxu0 %v2503
    %2520 = vmatprep.subr.mxu0 0.0
    %2521 = vmatpush1.msra.mxu0 %v2504
    %2522 = vmatprep.subr.mxu0 0.0
    %2523 = vmatpush1.msra.mxu0 0.0
    %2524 = vmatprep.subr.mxu0 0.0
    %2525 = vmatpush1.msra.mxu0 0.0
    %2526 = vmatprep.subr.mxu0 0.0
    %2527 = vmatpush1.msra.mxu0 0.0
    %2528 = vmatprep.subr.mxu0 0.0
    %2529 = vmatpush1.msra.mxu0 0.0
    %2530 = vmatprep.subr.mxu0 0.0
    %2531 = vmatpush1.msra.mxu0 0.0
    %2532 = vmatprep.subr.mxu0 0.0
    %2533 = vmatpush1.msra.mxu0 0.0
    %2534 = vmatprep.subr.mxu0 0.0
    %2535 = vmatpush1.msra.mxu0 0.0
    %2536 = vmatprep.subr.mxu0 0.0
    %2537 = vmatpush1.msra.mxu0 0.0
    %2538 = vmatprep.subr.mxu0 0.0
    %2539 = vmatpush1.msra.mxu0 0.0
    %2540 = vmatprep.subr.mxu0 0.0
    %2541 = vmatpush1.msra.mxu0 0.0
    %2542 = vmatprep.subr.mxu0 0.0
    %2543 = vmatpush1.msra.mxu0 0.0
    %2544 = vmatprep.subr.mxu0 0.0
    %2545 = vmatpush1.msra.mxu0 0.0
    %2546 = vmatprep.subr.mxu0 0.0
    %2547 = vmatpush1.msra.mxu0 0.0
    %2548 = vmatprep.subr.mxu0 0.0
    %2549 = vmatpush1.msra.mxu0 0.0
    %2550 = vmatprep.subr.mxu0 0.0
    %2551 = vmatpush1.msra.mxu0 0.0
    %2552 = vmatprep.subr.mxu0 0.0
    %2553 = vmatpush1.msra.mxu0 0.0
    %2554 = vmatprep.subr.mxu0 0.0
    %2555 = vmatpush1.msra.mxu0 0.0
    %2556 = vmatprep.subr.mxu0 0.0
    %2557 = vmatpush1.msra.mxu0 0.0
    %2558 = vmatprep.subr.mxu0 0.0
    %2559 = vmatpush1.msra.mxu0 0.0
    %2560 = vmatprep.subr.mxu0 0.0
    %2561 = vmatpush1.msra.mxu0 0.0
    %2562 = vmatprep.subr.mxu0 0.0
    %2563 = vmatpush1.msra.mxu0 0.0
    %2564 = vmatprep.subr.mxu0 0.0
    %2565 = vmatpush1.msra.mxu0 0.0
    %2566 = vmatprep.subr.mxu0 0.0
    %2567 = vmatpush1.msra.mxu0 0.0
    %2568 = vmatprep.subr.mxu0 0.0
    %2569 = vmatpush1.msra.mxu0 0.0
    %2570 = vmatprep.subr.mxu0 0.0
    %2571 = vmatpush1.msra.mxu0 0.0
    %2572 = vmatprep.subr.mxu0 0.0
    %2573 = vmatpush1.msra.mxu0 0.0
    %2574 = vmatprep.subr.mxu0 0.0
    %2575 = vmatpush1.msra.mxu0 0.0
    %2576 = vmatprep.subr.mxu0 0.0
    %2577 = vmatpush1.msra.mxu0 0.0
    %2578 = vmatprep.mubr.f32.mxu0 0.0
    %2579 = vmatmul.mubr.f32.gmra.mrb[0].mxu0 %v2509
    %v2580 = vpop.f32.mrb[0].mxu0
    %v2581 = vadd.f32 %v2506, %v2580
    %v2582 = vpop.f32.mrb[0].mxu0
    %2583 = vmatprep.mubr.f32.mxu0 0.0
    %2584 = vmatmul.mubr.f32.gmra.mrb[0].mxu0 %v2512
    %v2585 = vpop.f32.mrb[0].mxu0
    %v2586 = vadd.f32 %v2506, %v2585
    %v2587 = vpop.f32.mrb[0].mxu0
    %2588 = vdwg.mxu0
    %v2589 = vmul.f32 %v2581, 0.5
    %v2590 = vmul.f32 %v2586, 0.5
    %v2591 = vmul.f32 %v2581, 0.70710677
    %v2592 = vmul.f32 %v2586, 0.70710677
    %v2593 = verf.f32.pop %v2591
    %v2594 = verf.f32.pop %v2592
    %v2595 = vadd.f32 %v2593, 1.0
    %v2596 = vadd.f32 %v2594, 1.0
    %v2597 = vmul.f32 %v2589, %v2595
    %v2598 = vmul.f32 %v2590, %v2596
    %v2599 = vld [vmem:[%s2] sm:$0xff]
    %v2600 = vld [vmem:[%s2 + $0x8] sm:$0xff]
    %v2601 = vld [vmem:[%s2 + $0x10] sm:$0xff]
    %v2602 = vld [vmem:[%s2 + $0x18] sm:$0xff]
    %v2603 = vld [vmem:[%s2 + $0x20] sm:$0xff]
    %v2604 = vld [vmem:[%s2 + $0x28] sm:$0xff]
    %v2605 = vld [vmem:[%s2 + $0x30] sm:$0xff]
    %v2606 = vld [vmem:[%s2 + $0x38] sm:$0xff]
    %v2607 = vlaneseq
    %v2608 = vshrl.u32 %v2607, 7
    %v2609 = vsub.s32 0, %v2608
    %v2610 = vrot.slane %v22, %v2609
    %v2612 = vsel %vm349, %v2597, 0
    %v2615 = vsel %vm349, %v2598, 0
    %2617 = vmatprep.subr.mxu0 0.0
    %2618 = vmatpush1.msra.mxu0 %v2599
    %2619 = vmatprep.subr.mxu0 0.0
    %2620 = vmatpush1.msra.mxu0 %v2600
    %2621 = vmatprep.subr.mxu0 0.0
    %2622 = vmatpush1.msra.mxu0 %v2601
    %2623 = vmatprep.subr.mxu0 0.0
    %2624 = vmatpush1.msra.mxu0 %v2602
    %2625 = vmatprep.subr.mxu0 0.0
    %2626 = vmatpush1.msra.mxu0 %v2603
    %2627 = vmatprep.subr.mxu0 0.0
    %2628 = vmatpush1.msra.mxu0 %v2604
    %2629 = vmatprep.subr.mxu0 0.0
    %2630 = vmatpush1.msra.mxu0 %v2605
    %2631 = vmatprep.subr.mxu0 0.0
    %2632 = vmatpush1.msra.mxu0 %v2606
    %2633 = vmatprep.subr.mxu0 0.0
    %2634 = vmatpush1.msra.mxu0 0.0
    %2635 = vmatprep.subr.mxu0 0.0
    %2636 = vmatpush1.msra.mxu0 0.0
    %2637 = vmatprep.subr.mxu0 0.0
    %2638 = vmatpush1.msra.mxu0 0.0
    %2639 = vmatprep.subr.mxu0 0.0
    %2640 = vmatpush1.msra.mxu0 0.0
    %2641 = vmatprep.subr.mxu0 0.0
    %2642 = vmatpush1.msra.mxu0 0.0
    %2643 = vmatprep.subr.mxu0 0.0
    %2644 = vmatpush1.msra.mxu0 0.0
    %2645 = vmatprep.subr.mxu0 0.0
    %2646 = vmatpush1.msra.mxu0 0.0
    %2647 = vmatprep.subr.mxu0 0.0
    %2648 = vmatpush1.msra.mxu0 0.0
    %2649 = vmatprep.subr.mxu0 0.0
    %2650 = vmatpush1.msra.mxu0 0.0
    %2651 = vmatprep.subr.mxu0 0.0
    %2652 = vmatpush1.msra.mxu0 0.0
    %2653 = vmatprep.subr.mxu0 0.0
    %2654 = vmatpush1.msra.mxu0 0.0
    %2655 = vmatprep.subr.mxu0 0.0
    %2656 = vmatpush1.msra.mxu0 0.0
    %2657 = vmatprep.subr.mxu0 0.0
    %2658 = vmatpush1.msra.mxu0 0.0
    %2659 = vmatprep.subr.mxu0 0.0
    %2660 = vmatpush1.msra.mxu0 0.0
    %2661 = vmatprep.subr.mxu0 0.0
    %2662 = vmatpush1.msra.mxu0 0.0
    %2663 = vmatprep.subr.mxu0 0.0
    %2664 = vmatpush1.msra.mxu0 0.0
    %2665 = vmatprep.subr.mxu0 0.0
    %2666 = vmatpush1.msra.mxu0 0.0
    %2667 = vmatprep.subr.mxu0 0.0
    %2668 = vmatpush1.msra.mxu0 0.0
    %2669 = vmatprep.subr.mxu0 0.0
    %2670 = vmatpush1.msra.mxu0 0.0
    %2671 = vmatprep.subr.mxu0 0.0
    %2672 = vmatpush1.msra.mxu0 0.0
    %2673 = vmatprep.subr.mxu0 0.0
    %2674 = vmatpush1.msra.mxu0 0.0
    %2675 = vmatprep.subr.mxu0 0.0
    %2676 = vmatpush1.msra.mxu0 0.0
    %2677 = vmatprep.subr.mxu0 0.0
    %2678 = vmatpush1.msra.mxu0 0.0
    %2679 = vmatprep.subr.mxu0 0.0
    %2680 = vmatpush1.msra.mxu0 0.0
    %2681 = vmatprep.mubr.f32.mxu0 0.0
    %2682 = vmatmul.mubr.f32.gmra.mrb[0].mxu0 %v2612
    %v2683 = vpop.f32.mrb[0].mxu0
    %v2684 = vadd.f32 %v2610, %v2683
    %v2685 = vpop.f32.mrb[0].mxu0
    %2686 = vmatprep.mubr.f32.mxu0 0.0
    %2687 = vmatmul.mubr.f32.gmra.mrb[0].mxu0 %v2615
    %v2688 = vpop.f32.mrb[0].mxu0
    %v2689 = vadd.f32 %v2610, %v2688
    %v2690 = vpop.f32.mrb[0].mxu0
    %2691 = vdwg.mxu0
    %v2692 = vadd.f32 %v2684, %v2499
    %v2693 = vadd.f32 %v2689, %v2500
    %v2694 = vsel %vm31, %v2692, 0.0
    %2695 = vadd.xlane.f32.xlu0 %v2694
    %v2696 = vpop.xlane.xlu0 %2695
    %v2697 = vsel %vm31, %v2693, 0.0
    %2698 = vadd.xlane.f32.xlu0 %v2697
    %v2699 = vpop.xlane.xlu0 %2698
    %v2700 = vmul.f32 %v2696, %v2468
    %v2701 = vmul.f32 %v2699, %v2468
    %v2702 = vsub.f32 %v2692, %v2700
    %v2703 = vsub.f32 %v2693, %v2701
    %v2704 = vmul.f32 %v2702, %v2702
    %v2705 = vmul.f32 %v2703, %v2703
    %v2706 = vsel %vm31, %v2704, 0.0
    %2707 = vadd.xlane.f32.xlu0 %v2706
    %v2708 = vpop.xlane.xlu0 %2707
    %v2709 = vsel %vm31, %v2705, 0.0
    %2710 = vadd.xlane.f32.xlu0 %v2709
    %v2711 = vpop.xlane.xlu0 %2710
    %v2712 = vmul.f32 %v2708, %v2468
    %v2713 = vmul.f32 %v2711, %v2468
    %v2714 = vadd.f32 %v2712, 1e-12
    %v2715 = vadd.f32 %v2713, 1e-12
    %v2716 = vrsqrt.pop %v2714
    %v2717 = vrsqrt.pop %v2715
    %v2718 = vmul.f32 %v2702, %v2716
    %v2719 = vmul.f32 %v2703, %v2717
    %2721 = vrot.lane.b32.xlu0 %v2610, 96
    %v2722 = vpop.permute.xlu0 %2721
    %v2724 = vmul.f32 %v2718, %v2722
    %v2725 = vmul.f32 %v2719, %v2722
    %2726 = vrot.lane.b32.xlu0 %v2610, 64
    %v2727 = vpop.permute.xlu0 %2726
    %v2729 = vadd.f32 %v2724, %v2727
    %v2730 = vadd.f32 %v2725, %v2727
    %2731 = vst.msk [vmem:[#allocation3] sm:$0xff] %vm31, %v2729
    %2732 = vst.msk [vmem:[#allocation3 + $0x8] sm:$0xff] %vm31, %v2730
    // Predicated region
    $region18: #{bert_lsh_layer.1} parent=1 // pred_check
      _
    $region19: #{bert_lsh_layer.1} parent=1 // pred_check_branch
      %2734 = sbr.rel (0) target = $region21
    $region20: #{bert_lsh_layer.1} parent=1 // pred_region
      %s2736 = ssub.s32 256, 256
      %2737 = vsyncadd [#allocation4], %s2736
      %s2738 = sshll.u32 [#allocation3], 4
      %s2739 = int_to_ptr.vmem [resolvable:$true] %s2738
      %2744 = dma.vmem_to_hbm [thread:$0]  %s2739, 256, %s4, [#allocation4], 128, 128, 8
    $region21: #{bert_lsh_layer.1} parent=1 // pred_fallthru
      _
    // Predicated region
    $region22: #{bert_lsh_layer.1} parent=1 // pred_check
      _
    $region23: #{bert_lsh_layer.1} parent=1 // pred_check_branch
      %2746 = sbr.rel (0) target = $region25
    $region24: #{bert_lsh_layer.1} parent=1 // pred_region
      %2747 = dma.done [#allocation4], 256
    $region25: #{bert_lsh_layer.1} parent=1 // pred_fallthru
      _
    %2748 = vsyncpa [#allocation4], 1

</llo_original>
